<compile_context>
chip_gen: v7x
topology: tpu7x:2x2x1
jax: 0.10.0
libtpu: 0.0.40
codegen_flags: <defaults>
</compile_context>

<pallas_src>
import jax
import jax.numpy as jnp
from jax.experimental import pallas as pl
from jax.experimental.pallas import tpu as pltpu


# -----------------------------------------------------------------------------
# Fused kernel:
#   conv3x3(1->2) -> avgpool2x2 -> relu -> conv3x3(2->4) -> avgpool2x2 -> relu
# One grid step processes `block_b` images; all intermediates stay in VMEM/vregs.
# -----------------------------------------------------------------------------
def _downsample_disparity_kernel(x_ref, l1_ref, r1_ref, l2_ref, r2_ref,
                                 w1_ref, b1_ref, w2_ref, b2_ref, o_ref):
    f32 = jnp.float32
    bb = x_ref.shape[0]
    H, W = x_ref.shape[2], x_ref.shape[3]
    H2, W2 = H // 2, W // 2

    # Resident 0/1 pair-sum matrices (loaded once per step from VMEM; never
    # reconstructed with iota/compare).
    L1, R1 = l1_ref[...], r1_ref[...]
    L2, R2 = l2_ref[...], r2_ref[...]

    def pool_sum(y, L, R):
        # Sum over 2x2 windows: (L @ y) @ R with 0/1 matrices on the idle MXU.
        return jnp.dot(jnp.dot(L, y, preferred_element_type=f32), R,
                       preferred_element_type=f32)

    def pad1(x):
        # Zero-pad by 1 pixel on each side (lane-dim concat then sublane concat).
        h, w = x.shape
        zc = jnp.zeros((h, 1), f32)
        xp = jnp.concatenate([zc, x, zc], axis=1)            # (h, w+2)
        zr = jnp.zeros((1, w + 2), f32)
        return jnp.concatenate([zr, xp, zr], axis=0)          # (h+2, w+2)

    for n in range(bb):                                        # static unroll
        # ---- layer1: conv3x3(1 -> 2); weights pre-scaled by 1/4 at wrap time ----
        x = x_ref[n, 0].astype(f32)                            # (H, W)
        xp = pad1(x)                                           # (H+2, W+2)
        acc1 = [None, None]
        for dy in range(3):
            for dx in range(3):
                tap = xp[dy:dy + H, dx:dx + W]                 # only ONE tap live
                for co in range(2):
                    prod = tap * w1_ref[co * 9 + dy * 3 + dx]  # scalar weight (SMEM)
                    acc1[co] = prod if acc1[co] is None else acc1[co] + prod
        # pool-sum -> +bias -> relu  (bias & 1/4 commute with average pooling)
        h1 = [jnp.maximum(pool_sum(acc1[co], L1, R1) + b1_ref[co], 0.0)
              for co in range(2)]                              # 2 x (H2, W2)

        # ---- layer2: conv3x3(2 -> 4); weights pre-scaled by 1/4 at wrap time ----
        acc2 = [None] * 4
        for ci in range(2):
            hp = pad1(h1[ci])                                  # (H2+2, W2+2)
            for dy in range(3):
                for dx in range(3):
                    tap = hp[dy:dy + H2, dx:dx + W2]
                    for co in range(4):
                        prod = tap * w2_ref[(co * 2 + ci) * 9 + dy * 3 + dx]
                        acc2[co] = prod if acc2[co] is None else acc2[co] + prod
        out_ch = [jnp.maximum(pool_sum(acc2[co], L2, R2) + b2_ref[co], 0.0)
                  for co in range(4)]                          # 4 x (H/4, W/4)

        # One coalesced store of all four channels for this image.
        o_ref[n] = jnp.stack(out_ch, axis=0)                   # (4, H/4, W/4)


# -----------------------------------------------------------------------------
# Wrapper
# -----------------------------------------------------------------------------
def _pair_sum_matrix(n):
    """(n//2, n) 0/1 matrix: M[a, i] = 1 iff i in {2a, 2a+1} (row-pair summer)."""
    a = jnp.arange(n // 2, dtype=jnp.int32)[:, None]
    i = jnp.arange(n, dtype=jnp.int32)[None, :]
    return ((i == 2 * a) | (i == 2 * a + 1)).astype(jnp.float32)


def _pick_block_b(B, H, W, budget_bytes=2 * 1024 * 1024):
    """Largest divisor of B whose per-step input block stays under ~2 MiB."""
    per_img = H * W * 4
    bb = max(1, min(B, budget_bytes // max(per_img, 1)))
    while B % bb:
        bb -= 1
    return bb


def downsample_disparity(disparity, w1, b1, w2, b2, *, block_b=None):
    """disparity: (B, 1, H, W) NCHW; w1: (2,1,3,3); b1: (2,); w2: (4,2,3,3); b2: (4,).
    Returns (B, 4, H//4, W//4) f32, matching the PyTorch module's forward()."""
    B, C, H, W = disparity.shape
    assert C == 1, "DownsampleDisparity expects a single-channel disparity map"
    # PyTorch AvgPool2d(2,2) floor-truncates odd sizes; this fused kernel
    # requires H, W divisible by 4 (two 2x pools) — assert instead of silently
    # differing from the PyTorch result.
    assert H % 4 == 0 and W % 4 == 0, "H and W must be multiples of 4"
    H4, W4 = H // 4, W // 4

    if block_b is None:
        block_b = _pick_block_b(B, H, W)
    assert B % block_b == 0
    grid_b = B // block_b

    # Constant pool matrices, built once (kept resident in VMEM across the grid).
    L1 = _pair_sum_matrix(H)                  # (H/2, H)
    R1 = _pair_sum_matrix(W).T                # (W, W/2)
    L2 = _pair_sum_matrix(H // 2)             # (H/4, H/2)
    R2 = _pair_sum_matrix(W // 2).T           # (W/2, W/4)

    # Fold the 2x2-average 1/4 factor into the conv weights (scalar work, done once).
    w1s = (w1.reshape(-1) * 0.25).astype(jnp.float32)          # (18,)
    w2s = (w2.reshape(-1) * 0.25).astype(jnp.float32)          # (72,)
    b1f = b1.reshape(-1).astype(jnp.float32)                   # (2,)
    b2f = b2.reshape(-1).astype(jnp.float32)                   # (4,)

    const2d = lambda shape: pl.BlockSpec(shape, lambda b: (0, 0))

    return pl.pallas_call(
        _downsample_disparity_kernel,
        out_shape=jax.ShapeDtypeStruct((B, 4, H4, W4), jnp.float32),
        grid=(grid_b,),
        in_specs=[
            pl.BlockSpec((block_b, 1, H, W), lambda b: (b, 0, 0, 0)),
            const2d((H // 2, H)),                                # L1 (resident)
            const2d((W, W // 2)),                                # R1 (resident)
            const2d((H // 4, H // 2)),                           # L2 (resident)
            const2d((W // 2, W // 4)),                           # R2 (resident)
            pl.BlockSpec(memory_space=pltpu.MemorySpace.SMEM),   # w1 (18,) scalars
            pl.BlockSpec(memory_space=pltpu.MemorySpace.SMEM),   # b1 (2,)
            pl.BlockSpec(memory_space=pltpu.MemorySpace.SMEM),   # w2 (72,)
            pl.BlockSpec(memory_space=pltpu.MemorySpace.SMEM),   # b2 (4,)
        ],
        out_specs=pl.BlockSpec((block_b, 4, H4, W4), lambda b: (b, 0, 0, 0)),
        compiler_params=pltpu.CompilerParams(
            dimension_semantics=("parallel",),        # megacore / v7x 2-TC sharding
            vmem_limit_bytes=32 * 1024 * 1024,
        ),
    )(
        disparity.astype(jnp.float32),
        L1, R1, L2, R2,
        w1s, b1f, w2s, b2f,
    )


# -----------------------------------------------------------------------------
# Plain-JAX reference (numerical check only)
# -----------------------------------------------------------------------------
def _reference(x, w1, b1, w2, b2):
    def conv3x3(x, w, b):
        B, Cin, H, W = x.shape
        Cout = w.shape[0]
        xp = jnp.pad(x, ((0, 0), (0, 0), (1, 1), (1, 1)))
        taps = jnp.stack(
            [xp[:, :, dy:dy + H, dx:dx + W] for dy in range(3) for dx in range(3)],
            axis=2)                                            # (B, Cin, 9, H, W)
        y = jnp.einsum("bckhw,ock->bohw", taps, w.reshape(Cout, Cin, 9),
                       precision=jax.lax.Precision.HIGHEST)
        return y + b[None, :, None, None]

    def pool_relu(x):
        B, C, H, W = x.shape
        p = x.reshape(B, C, H // 2, 2, W // 2, 2).mean(axis=(3, 5))
        return jax.nn.relu(p)

    return pool_relu(conv3x3(pool_relu(conv3x3(x, w1, b1)), w2, b2))


# -----------------------------------------------------------------------------
if __name__ == "__main__":
    key = jax.random.PRNGKey(0)
    kx, k1, k2, k3, k4 = jax.random.split(key, 5)

    B, H, W = 2, 16, 16
    disparity = jax.random.normal(kx, (B, 1, H, W), jnp.float32)      # NCHW, 1 channel
    w1 = jax.random.normal(k1, (2, 1, 3, 3), jnp.float32) * 0.15      # Conv2d(1, 2) weight
    b1 = jax.random.normal(k2, (2,), jnp.float32) * 0.05
    w2 = jax.random.normal(k3, (4, 2, 3, 3), jnp.float32) * 0.15      # Conv2d(2, 4) weight
    b2 = jax.random.normal(k4, (4,), jnp.float32) * 0.05
    # Note: conv_final / relu_final exist in the PyTorch __init__ but are unused
    # in forward(), so they have no parameters here.

    out = downsample_disparity(disparity, w1, b1, w2, b2)
    jax.block_until_ready(out)

    assert out.shape == (B, 4, H // 4, W // 4)

    ref = _reference(disparity, w1, b1, w2, b2)
    err = float(jnp.max(jnp.abs(out - ref)))
    # Residual error comes only from the bf16 rounding of the pool-sum matmul
    # operands on the MXU (~1e-3 relative); everything else is exact f32.
    assert err < 1e-2, f"max abs error vs reference: {err}"

    print("KERNEL_OK")
</pallas_src>

<mosaic_0001>
module attributes {stable_mosaic.version = 11 : i64} {
  func.func @_downsample_disparity_kernel(%arg0: i32, %arg1: memref<2x1x16x16xf32, #tpu.memory_space<vmem>>, %arg2: memref<8x16xf32, #tpu.memory_space<vmem>>, %arg3: memref<16x8xf32, #tpu.memory_space<vmem>>, %arg4: memref<4x8xf32, #tpu.memory_space<vmem>>, %arg5: memref<8x4xf32, #tpu.memory_space<vmem>>, %arg6: memref<18xf32, #tpu.memory_space<smem>>, %arg7: memref<2xf32, #tpu.memory_space<smem>>, %arg8: memref<72xf32, #tpu.memory_space<smem>>, %arg9: memref<4xf32, #tpu.memory_space<smem>>, %arg10: memref<2x4x4x4xf32, #tpu.memory_space<vmem>>) attributes {dimension_semantics = [#tpu.dimension_semantics<parallel>], iteration_bounds = array<i64: 1>, scalar_prefetch = 0 : i64, scratch_operands = 0 : i64, tpu.core_type = #tpu.core_type<tc>, window_params = [{transform_indices = @transform_0, window_bounds = array<i64: 2, 1, 16, 16>}, {pipeline_mode = #tpu.pipeline_mode<synchronous>, transform_indices = @transform_1, window_bounds = array<i64: 8, 16>}, {pipeline_mode = #tpu.pipeline_mode<synchronous>, transform_indices = @transform_2, window_bounds = array<i64: 16, 8>}, {pipeline_mode = #tpu.pipeline_mode<synchronous>, transform_indices = @transform_3, window_bounds = array<i64: 4, 8>}, {pipeline_mode = #tpu.pipeline_mode<synchronous>, transform_indices = @transform_4, window_bounds = array<i64: 8, 4>}, {transform_indices = @transform_5, window_bounds = array<i64: 18>}, {transform_indices = @transform_6, window_bounds = array<i64: 2>}, {transform_indices = @transform_7, window_bounds = array<i64: 72>}, {transform_indices = @transform_8, window_bounds = array<i64: 4>}, {transform_indices = @transform_9, window_bounds = array<i64: 2, 4, 4, 4>}]} {
    %c0 = arith.constant 0 : index
    %c0_0 = arith.constant 0 : index
    %0 = vector.load %arg2[%c0, %c0_0] : memref<8x16xf32, #tpu.memory_space<vmem>>, vector<8x16xf32>
    %c0_1 = arith.constant 0 : index
    %c0_2 = arith.constant 0 : index
    %1 = vector.load %arg3[%c0_1, %c0_2] : memref<16x8xf32, #tpu.memory_space<vmem>>, vector<16x8xf32>
    %c0_3 = arith.constant 0 : index
    %c0_4 = arith.constant 0 : index
    %2 = vector.load %arg4[%c0_3, %c0_4] : memref<4x8xf32, #tpu.memory_space<vmem>>, vector<4x8xf32>
    %c0_5 = arith.constant 0 : index
    %c0_6 = arith.constant 0 : index
    %3 = vector.load %arg5[%c0_5, %c0_6] : memref<8x4xf32, #tpu.memory_space<vmem>>, vector<8x4xf32>
    %c0_7 = arith.constant 0 : index
    %c0_8 = arith.constant 0 : index
    %c0_9 = arith.constant 0 : index
    %c0_10 = arith.constant 0 : index
    %4 = vector.load %arg1[%c0_7, %c0_8, %c0_9, %c0_10] : memref<2x1x16x16xf32, #tpu.memory_space<vmem>>, vector<1x1x16x16xf32>
    %5 = vector.shape_cast %4 : vector<1x1x16x16xf32> to vector<16x16xf32>
    %cst = arith.constant 0.000000e+00 : f32
    %6 = vector.broadcast %cst : f32 to vector<16x1xf32>
    %7 = tpu.concatenate %6, %5, %6 in 1 : vector<16x1xf32>, vector<16x16xf32>, vector<16x1xf32> -> vector<16x18xf32>
    %cst_11 = arith.constant 0.000000e+00 : f32
    %8 = vector.broadcast %cst_11 : f32 to vector<1x18xf32>
    %9 = tpu.concatenate %8, %7, %8 in 0 : vector<1x18xf32>, vector<16x18xf32>, vector<1x18xf32> -> vector<18x18xf32>
    %10 = vector.extract_strided_slice %9 {offsets = [0, 0], sizes = [16, 16], strides = [1, 1]} : vector<18x18xf32> to vector<16x16xf32>
    %c0_12 = arith.constant 0 : index
    %11 = memref.load %arg6[%c0_12] : memref<18xf32, #tpu.memory_space<smem>>
    %12 = vector.broadcast %11 : f32 to vector<16x16xf32>
    %13 = arith.mulf %10, %12 : vector<16x16xf32>
    %c9 = arith.constant 9 : index
    %14 = memref.load %arg6[%c9] : memref<18xf32, #tpu.memory_space<smem>>
    %15 = vector.broadcast %14 : f32 to vector<16x16xf32>
    %16 = arith.mulf %10, %15 : vector<16x16xf32>
    %17 = vector.extract_strided_slice %9 {offsets = [0, 1], sizes = [16, 16], strides = [1, 1]} : vector<18x18xf32> to vector<16x16xf32>
    %c1 = arith.constant 1 : index
    %18 = memref.load %arg6[%c1] : memref<18xf32, #tpu.memory_space<smem>>
    %19 = vector.broadcast %18 : f32 to vector<16x16xf32>
    %20 = arith.mulf %17, %19 : vector<16x16xf32>
    %21 = arith.addf %13, %20 : vector<16x16xf32>
    %c10 = arith.constant 10 : index
    %22 = memref.load %arg6[%c10] : memref<18xf32, #tpu.memory_space<smem>>
    %23 = vector.broadcast %22 : f32 to vector<16x16xf32>
    %24 = arith.mulf %17, %23 : vector<16x16xf32>
    %25 = arith.addf %16, %24 : vector<16x16xf32>
    %26 = vector.extract_strided_slice %9 {offsets = [0, 2], sizes = [16, 16], strides = [1, 1]} : vector<18x18xf32> to vector<16x16xf32>
    %c2 = arith.constant 2 : index
    %27 = memref.load %arg6[%c2] : memref<18xf32, #tpu.memory_space<smem>>
    %28 = vector.broadcast %27 : f32 to vector<16x16xf32>
    %29 = arith.mulf %26, %28 : vector<16x16xf32>
    %30 = arith.addf %21, %29 : vector<16x16xf32>
    %c11 = arith.constant 11 : index
    %31 = memref.load %arg6[%c11] : memref<18xf32, #tpu.memory_space<smem>>
    %32 = vector.broadcast %31 : f32 to vector<16x16xf32>
    %33 = arith.mulf %26, %32 : vector<16x16xf32>
    %34 = arith.addf %25, %33 : vector<16x16xf32>
    %35 = vector.extract_strided_slice %9 {offsets = [1, 0], sizes = [16, 16], strides = [1, 1]} : vector<18x18xf32> to vector<16x16xf32>
    %c3 = arith.constant 3 : index
    %36 = memref.load %arg6[%c3] : memref<18xf32, #tpu.memory_space<smem>>
    %37 = vector.broadcast %36 : f32 to vector<16x16xf32>
    %38 = arith.mulf %35, %37 : vector<16x16xf32>
    %39 = arith.addf %30, %38 : vector<16x16xf32>
    %c12 = arith.constant 12 : index
    %40 = memref.load %arg6[%c12] : memref<18xf32, #tpu.memory_space<smem>>
    %41 = vector.broadcast %40 : f32 to vector<16x16xf32>
    %42 = arith.mulf %35, %41 : vector<16x16xf32>
    %43 = arith.addf %34, %42 : vector<16x16xf32>
    %44 = vector.extract_strided_slice %9 {offsets = [1, 1], sizes = [16, 16], strides = [1, 1]} : vector<18x18xf32> to vector<16x16xf32>
    %c4 = arith.constant 4 : index
    %45 = memref.load %arg6[%c4] : memref<18xf32, #tpu.memory_space<smem>>
    %46 = vector.broadcast %45 : f32 to vector<16x16xf32>
    %47 = arith.mulf %44, %46 : vector<16x16xf32>
    %48 = arith.addf %39, %47 : vector<16x16xf32>
    %c13 = arith.constant 13 : index
    %49 = memref.load %arg6[%c13] : memref<18xf32, #tpu.memory_space<smem>>
    %50 = vector.broadcast %49 : f32 to vector<16x16xf32>
    %51 = arith.mulf %44, %50 : vector<16x16xf32>
    %52 = arith.addf %43, %51 : vector<16x16xf32>
    %53 = vector.extract_strided_slice %9 {offsets = [1, 2], sizes = [16, 16], strides = [1, 1]} : vector<18x18xf32> to vector<16x16xf32>
    %c5 = arith.constant 5 : index
    %54 = memref.load %arg6[%c5] : memref<18xf32, #tpu.memory_space<smem>>
    %55 = vector.broadcast %54 : f32 to vector<16x16xf32>
    %56 = arith.mulf %53, %55 : vector<16x16xf32>
    %57 = arith.addf %48, %56 : vector<16x16xf32>
    %c14 = arith.constant 14 : index
    %58 = memref.load %arg6[%c14] : memref<18xf32, #tpu.memory_space<smem>>
    %59 = vector.broadcast %58 : f32 to vector<16x16xf32>
    %60 = arith.mulf %53, %59 : vector<16x16xf32>
    %61 = arith.addf %52, %60 : vector<16x16xf32>
    %62 = vector.extract_strided_slice %9 {offsets = [2, 0], sizes = [16, 16], strides = [1, 1]} : vector<18x18xf32> to vector<16x16xf32>
    %c6 = arith.constant 6 : index
    %63 = memref.load %arg6[%c6] : memref<18xf32, #tpu.memory_space<smem>>
    %64 = vector.broadcast %63 : f32 to vector<16x16xf32>
    %65 = arith.mulf %62, %64 : vector<16x16xf32>
    %66 = arith.addf %57, %65 : vector<16x16xf32>
    %c15 = arith.constant 15 : index
    %67 = memref.load %arg6[%c15] : memref<18xf32, #tpu.memory_space<smem>>
    %68 = vector.broadcast %67 : f32 to vector<16x16xf32>
    %69 = arith.mulf %62, %68 : vector<16x16xf32>
    %70 = arith.addf %61, %69 : vector<16x16xf32>
    %71 = vector.extract_strided_slice %9 {offsets = [2, 1], sizes = [16, 16], strides = [1, 1]} : vector<18x18xf32> to vector<16x16xf32>
    %c7 = arith.constant 7 : index
    %72 = memref.load %arg6[%c7] : memref<18xf32, #tpu.memory_space<smem>>
    %73 = vector.broadcast %72 : f32 to vector<16x16xf32>
    %74 = arith.mulf %71, %73 : vector<16x16xf32>
    %75 = arith.addf %66, %74 : vector<16x16xf32>
    %c16 = arith.constant 16 : index
    %76 = memref.load %arg6[%c16] : memref<18xf32, #tpu.memory_space<smem>>
    %77 = vector.broadcast %76 : f32 to vector<16x16xf32>
    %78 = arith.mulf %71, %77 : vector<16x16xf32>
    %79 = arith.addf %70, %78 : vector<16x16xf32>
    %80 = vector.extract_strided_slice %9 {offsets = [2, 2], sizes = [16, 16], strides = [1, 1]} : vector<18x18xf32> to vector<16x16xf32>
    %c8 = arith.constant 8 : index
    %81 = memref.load %arg6[%c8] : memref<18xf32, #tpu.memory_space<smem>>
    %82 = vector.broadcast %81 : f32 to vector<16x16xf32>
    %83 = arith.mulf %80, %82 : vector<16x16xf32>
    %84 = arith.addf %75, %83 : vector<16x16xf32>
    %c17 = arith.constant 17 : index
    %85 = memref.load %arg6[%c17] : memref<18xf32, #tpu.memory_space<smem>>
    %86 = vector.broadcast %85 : f32 to vector<16x16xf32>
    %87 = arith.mulf %80, %86 : vector<16x16xf32>
    %88 = arith.addf %79, %87 : vector<16x16xf32>
    %cst_13 = arith.constant dense<0.000000e+00> : vector<8x16xf32>
    %89 = tpu.matmul %0, %84, %cst_13 {dimension_numbers = #tpu.dot_dimension_numbers<[1], [0], [0], [1], [0, 0, 1, 1], [], []>} : vector<8x16xf32>, vector<16x16xf32>, vector<8x16xf32> -> vector<8x16xf32>
    %cst_14 = arith.constant dense<0.000000e+00> : vector<8x8xf32>
    %90 = tpu.matmul %89, %1, %cst_14 {dimension_numbers = #tpu.dot_dimension_numbers<[1], [0], [0], [1], [0, 0, 1, 1], [], []>} : vector<8x16xf32>, vector<16x8xf32>, vector<8x8xf32> -> vector<8x8xf32>
    %c0_15 = arith.constant 0 : index
    %91 = memref.load %arg7[%c0_15] : memref<2xf32, #tpu.memory_space<smem>>
    %92 = vector.broadcast %91 : f32 to vector<8x8xf32>
    %93 = arith.addf %90, %92 : vector<8x8xf32>
    %cst_16 = arith.constant 0.000000e+00 : f32
    %94 = vector.broadcast %cst_16 : f32 to vector<8x8xf32>
    %95 = arith.maximumf %93, %94 : vector<8x8xf32>
    %cst_17 = arith.constant dense<0.000000e+00> : vector<8x16xf32>
    %96 = tpu.matmul %0, %88, %cst_17 {dimension_numbers = #tpu.dot_dimension_numbers<[1], [0], [0], [1], [0, 0, 1, 1], [], []>} : vector<8x16xf32>, vector<16x16xf32>, vector<8x16xf32> -> vector<8x16xf32>
    %cst_18 = arith.constant dense<0.000000e+00> : vector<8x8xf32>
    %97 = tpu.matmul %96, %1, %cst_18 {dimension_numbers = #tpu.dot_dimension_numbers<[1], [0], [0], [1], [0, 0, 1, 1], [], []>} : vector<8x16xf32>, vector<16x8xf32>, vector<8x8xf32> -> vector<8x8xf32>
    %c1_19 = arith.constant 1 : index
    %98 = memref.load %arg7[%c1_19] : memref<2xf32, #tpu.memory_space<smem>>
    %99 = vector.broadcast %98 : f32 to vector<8x8xf32>
    %100 = arith.addf %97, %99 : vector<8x8xf32>
    %cst_20 = arith.constant 0.000000e+00 : f32
    %101 = vector.broadcast %cst_20 : f32 to vector<8x8xf32>
    %102 = arith.maximumf %100, %101 : vector<8x8xf32>
    %cst_21 = arith.constant 0.000000e+00 : f32
    %103 = vector.broadcast %cst_21 : f32 to vector<8x1xf32>
    %104 = tpu.concatenate %103, %95, %103 in 1 : vector<8x1xf32>, vector<8x8xf32>, vector<8x1xf32> -> vector<8x10xf32>
    %cst_22 = arith.constant 0.000000e+00 : f32
    %105 = vector.broadcast %cst_22 : f32 to vector<1x10xf32>
    %106 = tpu.concatenate %105, %104, %105 in 0 : vector<1x10xf32>, vector<8x10xf32>, vector<1x10xf32> -> vector<10x10xf32>
    %107 = vector.extract_strided_slice %106 {offsets = [0, 0], sizes = [8, 8], strides = [1, 1]} : vector<10x10xf32> to vector<8x8xf32>
    %c0_23 = arith.constant 0 : index
    %108 = memref.load %arg8[%c0_23] : memref<72xf32, #tpu.memory_space<smem>>
    %109 = vector.broadcast %108 : f32 to vector<8x8xf32>
    %110 = arith.mulf %107, %109 : vector<8x8xf32>
    %c18 = arith.constant 18 : index
    %111 = memref.load %arg8[%c18] : memref<72xf32, #tpu.memory_space<smem>>
    %112 = vector.broadcast %111 : f32 to vector<8x8xf32>
    %113 = arith.mulf %107, %112 : vector<8x8xf32>
    %c36 = arith.constant 36 : index
    %114 = memref.load %arg8[%c36] : memref<72xf32, #tpu.memory_space<smem>>
    %115 = vector.broadcast %114 : f32 to vector<8x8xf32>
    %116 = arith.mulf %107, %115 : vector<8x8xf32>
    %c54 = arith.constant 54 : index
    %117 = memref.load %arg8[%c54] : memref<72xf32, #tpu.memory_space<smem>>
    %118 = vector.broadcast %117 : f32 to vector<8x8xf32>
    %119 = arith.mulf %107, %118 : vector<8x8xf32>
    %120 = vector.extract_strided_slice %106 {offsets = [0, 1], sizes = [8, 8], strides = [1, 1]} : vector<10x10xf32> to vector<8x8xf32>
    %c1_24 = arith.constant 1 : index
    %121 = memref.load %arg8[%c1_24] : memref<72xf32, #tpu.memory_space<smem>>
    %122 = vector.broadcast %121 : f32 to vector<8x8xf32>
    %123 = arith.mulf %120, %122 : vector<8x8xf32>
    %124 = arith.addf %110, %123 : vector<8x8xf32>
    %c19 = arith.constant 19 : index
    %125 = memref.load %arg8[%c19] : memref<72xf32, #tpu.memory_space<smem>>
    %126 = vector.broadcast %125 : f32 to vector<8x8xf32>
    %127 = arith.mulf %120, %126 : vector<8x8xf32>
    %128 = arith.addf %113, %127 : vector<8x8xf32>
    %c37 = arith.constant 37 : index
    %129 = memref.load %arg8[%c37] : memref<72xf32, #tpu.memory_space<smem>>
    %130 = vector.broadcast %129 : f32 to vector<8x8xf32>
    %131 = arith.mulf %120, %130 : vector<8x8xf32>
    %132 = arith.addf %116, %131 : vector<8x8xf32>
    %c55 = arith.constant 55 : index
    %133 = memref.load %arg8[%c55] : memref<72xf32, #tpu.memory_space<smem>>
    %134 = vector.broadcast %133 : f32 to vector<8x8xf32>
    %135 = arith.mulf %120, %134 : vector<8x8xf32>
    %136 = arith.addf %119, %135 : vector<8x8xf32>
    %137 = vector.extract_strided_slice %106 {offsets = [0, 2], sizes = [8, 8], strides = [1, 1]} : vector<10x10xf32> to vector<8x8xf32>
    %c2_25 = arith.constant 2 : index
    %138 = memref.load %arg8[%c2_25] : memref<72xf32, #tpu.memory_space<smem>>
    %139 = vector.broadcast %138 : f32 to vector<8x8xf32>
    %140 = arith.mulf %137, %139 : vector<8x8xf32>
    %141 = arith.addf %124, %140 : vector<8x8xf32>
    %c20 = arith.constant 20 : index
    %142 = memref.load %arg8[%c20] : memref<72xf32, #tpu.memory_space<smem>>
    %143 = vector.broadcast %142 : f32 to vector<8x8xf32>
    %144 = arith.mulf %137, %143 : vector<8x8xf32>
    %145 = arith.addf %128, %144 : vector<8x8xf32>
    %c38 = arith.constant 38 : index
    %146 = memref.load %arg8[%c38] : memref<72xf32, #tpu.memory_space<smem>>
    %147 = vector.broadcast %146 : f32 to vector<8x8xf32>
    %148 = arith.mulf %137, %147 : vector<8x8xf32>
    %149 = arith.addf %132, %148 : vector<8x8xf32>
    %c56 = arith.constant 56 : index
    %150 = memref.load %arg8[%c56] : memref<72xf32, #tpu.memory_space<smem>>
    %151 = vector.broadcast %150 : f32 to vector<8x8xf32>
    %152 = arith.mulf %137, %151 : vector<8x8xf32>
    %153 = arith.addf %136, %152 : vector<8x8xf32>
    %154 = vector.extract_strided_slice %106 {offsets = [1, 0], sizes = [8, 8], strides = [1, 1]} : vector<10x10xf32> to vector<8x8xf32>
    %c3_26 = arith.constant 3 : index
    %155 = memref.load %arg8[%c3_26] : memref<72xf32, #tpu.memory_space<smem>>
    %156 = vector.broadcast %155 : f32 to vector<8x8xf32>
    %157 = arith.mulf %154, %156 : vector<8x8xf32>
    %158 = arith.addf %141, %157 : vector<8x8xf32>
    %c21 = arith.constant 21 : index
    %159 = memref.load %arg8[%c21] : memref<72xf32, #tpu.memory_space<smem>>
    %160 = vector.broadcast %159 : f32 to vector<8x8xf32>
    %161 = arith.mulf %154, %160 : vector<8x8xf32>
    %162 = arith.addf %145, %161 : vector<8x8xf32>
    %c39 = arith.constant 39 : index
    %163 = memref.load %arg8[%c39] : memref<72xf32, #tpu.memory_space<smem>>
    %164 = vector.broadcast %163 : f32 to vector<8x8xf32>
    %165 = arith.mulf %154, %164 : vector<8x8xf32>
    %166 = arith.addf %149, %165 : vector<8x8xf32>
    %c57 = arith.constant 57 : index
    %167 = memref.load %arg8[%c57] : memref<72xf32, #tpu.memory_space<smem>>
    %168 = vector.broadcast %167 : f32 to vector<8x8xf32>
    %169 = arith.mulf %154, %168 : vector<8x8xf32>
    %170 = arith.addf %153, %169 : vector<8x8xf32>
    %171 = vector.extract_strided_slice %106 {offsets = [1, 1], sizes = [8, 8], strides = [1, 1]} : vector<10x10xf32> to vector<8x8xf32>
    %c4_27 = arith.constant 4 : index
    %172 = memref.load %arg8[%c4_27] : memref<72xf32, #tpu.memory_space<smem>>
    %173 = vector.broadcast %172 : f32 to vector<8x8xf32>
    %174 = arith.mulf %171, %173 : vector<8x8xf32>
    %175 = arith.addf %158, %174 : vector<8x8xf32>
    %c22 = arith.constant 22 : index
    %176 = memref.load %arg8[%c22] : memref<72xf32, #tpu.memory_space<smem>>
    %177 = vector.broadcast %176 : f32 to vector<8x8xf32>
    %178 = arith.mulf %171, %177 : vector<8x8xf32>
    %179 = arith.addf %162, %178 : vector<8x8xf32>
    %c40 = arith.constant 40 : index
    %180 = memref.load %arg8[%c40] : memref<72xf32, #tpu.memory_space<smem>>
    %181 = vector.broadcast %180 : f32 to vector<8x8xf32>
    %182 = arith.mulf %171, %181 : vector<8x8xf32>
    %183 = arith.addf %166, %182 : vector<8x8xf32>
    %c58 = arith.constant 58 : index
    %184 = memref.load %arg8[%c58] : memref<72xf32, #tpu.memory_space<smem>>
    %185 = vector.broadcast %184 : f32 to vector<8x8xf32>
    %186 = arith.mulf %171, %185 : vector<8x8xf32>
    %187 = arith.addf %170, %186 : vector<8x8xf32>
    %188 = vector.extract_strided_slice %106 {offsets = [1, 2], sizes = [8, 8], strides = [1, 1]} : vector<10x10xf32> to vector<8x8xf32>
    %c5_28 = arith.constant 5 : index
    %189 = memref.load %arg8[%c5_28] : memref<72xf32, #tpu.memory_space<smem>>
    %190 = vector.broadcast %189 : f32 to vector<8x8xf32>
    %191 = arith.mulf %188, %190 : vector<8x8xf32>
    %192 = arith.addf %175, %191 : vector<8x8xf32>
    %c23 = arith.constant 23 : index
    %193 = memref.load %arg8[%c23] : memref<72xf32, #tpu.memory_space<smem>>
    %194 = vector.broadcast %193 : f32 to vector<8x8xf32>
    %195 = arith.mulf %188, %194 : vector<8x8xf32>
    %196 = arith.addf %179, %195 : vector<8x8xf32>
    %c41 = arith.constant 41 : index
    %197 = memref.load %arg8[%c41] : memref<72xf32, #tpu.memory_space<smem>>
    %198 = vector.broadcast %197 : f32 to vector<8x8xf32>
    %199 = arith.mulf %188, %198 : vector<8x8xf32>
    %200 = arith.addf %183, %199 : vector<8x8xf32>
    %c59 = arith.constant 59 : index
    %201 = memref.load %arg8[%c59] : memref<72xf32, #tpu.memory_space<smem>>
    %202 = vector.broadcast %201 : f32 to vector<8x8xf32>
    %203 = arith.mulf %188, %202 : vector<8x8xf32>
    %204 = arith.addf %187, %203 : vector<8x8xf32>
    %205 = vector.extract_strided_slice %106 {offsets = [2, 0], sizes = [8, 8], strides = [1, 1]} : vector<10x10xf32> to vector<8x8xf32>
    %c6_29 = arith.constant 6 : index
    %206 = memref.load %arg8[%c6_29] : memref<72xf32, #tpu.memory_space<smem>>
    %207 = vector.broadcast %206 : f32 to vector<8x8xf32>
    %208 = arith.mulf %205, %207 : vector<8x8xf32>
    %209 = arith.addf %192, %208 : vector<8x8xf32>
    %c24 = arith.constant 24 : index
    %210 = memref.load %arg8[%c24] : memref<72xf32, #tpu.memory_space<smem>>
    %211 = vector.broadcast %210 : f32 to vector<8x8xf32>
    %212 = arith.mulf %205, %211 : vector<8x8xf32>
    %213 = arith.addf %196, %212 : vector<8x8xf32>
    %c42 = arith.constant 42 : index
    %214 = memref.load %arg8[%c42] : memref<72xf32, #tpu.memory_space<smem>>
    %215 = vector.broadcast %214 : f32 to vector<8x8xf32>
    %216 = arith.mulf %205, %215 : vector<8x8xf32>
    %217 = arith.addf %200, %216 : vector<8x8xf32>
    %c60 = arith.constant 60 : index
    %218 = memref.load %arg8[%c60] : memref<72xf32, #tpu.memory_space<smem>>
    %219 = vector.broadcast %218 : f32 to vector<8x8xf32>
    %220 = arith.mulf %205, %219 : vector<8x8xf32>
    %221 = arith.addf %204, %220 : vector<8x8xf32>
    %222 = vector.extract_strided_slice %106 {offsets = [2, 1], sizes = [8, 8], strides = [1, 1]} : vector<10x10xf32> to vector<8x8xf32>
    %c7_30 = arith.constant 7 : index
    %223 = memref.load %arg8[%c7_30] : memref<72xf32, #tpu.memory_space<smem>>
    %224 = vector.broadcast %223 : f32 to vector<8x8xf32>
    %225 = arith.mulf %222, %224 : vector<8x8xf32>
    %226 = arith.addf %209, %225 : vector<8x8xf32>
    %c25 = arith.constant 25 : index
    %227 = memref.load %arg8[%c25] : memref<72xf32, #tpu.memory_space<smem>>
    %228 = vector.broadcast %227 : f32 to vector<8x8xf32>
    %229 = arith.mulf %222, %228 : vector<8x8xf32>
    %230 = arith.addf %213, %229 : vector<8x8xf32>
    %c43 = arith.constant 43 : index
    %231 = memref.load %arg8[%c43] : memref<72xf32, #tpu.memory_space<smem>>
    %232 = vector.broadcast %231 : f32 to vector<8x8xf32>
    %233 = arith.mulf %222, %232 : vector<8x8xf32>
    %234 = arith.addf %217, %233 : vector<8x8xf32>
    %c61 = arith.constant 61 : index
    %235 = memref.load %arg8[%c61] : memref<72xf32, #tpu.memory_space<smem>>
    %236 = vector.broadcast %235 : f32 to vector<8x8xf32>
    %237 = arith.mulf %222, %236 : vector<8x8xf32>
    %238 = arith.addf %221, %237 : vector<8x8xf32>
    %239 = vector.extract_strided_slice %106 {offsets = [2, 2], sizes = [8, 8], strides = [1, 1]} : vector<10x10xf32> to vector<8x8xf32>
    %c8_31 = arith.constant 8 : index
    %240 = memref.load %arg8[%c8_31] : memref<72xf32, #tpu.memory_space<smem>>
    %241 = vector.broadcast %240 : f32 to vector<8x8xf32>
    %242 = arith.mulf %239, %241 : vector<8x8xf32>
    %243 = arith.addf %226, %242 : vector<8x8xf32>
    %c26 = arith.constant 26 : index
    %244 = memref.load %arg8[%c26] : memref<72xf32, #tpu.memory_space<smem>>
    %245 = vector.broadcast %244 : f32 to vector<8x8xf32>
    %246 = arith.mulf %239, %245 : vector<8x8xf32>
    %247 = arith.addf %230, %246 : vector<8x8xf32>
    %c44 = arith.constant 44 : index
    %248 = memref.load %arg8[%c44] : memref<72xf32, #tpu.memory_space<smem>>
    %249 = vector.broadcast %248 : f32 to vector<8x8xf32>
    %250 = arith.mulf %239, %249 : vector<8x8xf32>
    %251 = arith.addf %234, %250 : vector<8x8xf32>
    %c62 = arith.constant 62 : index
    %252 = memref.load %arg8[%c62] : memref<72xf32, #tpu.memory_space<smem>>
    %253 = vector.broadcast %252 : f32 to vector<8x8xf32>
    %254 = arith.mulf %239, %253 : vector<8x8xf32>
    %255 = arith.addf %238, %254 : vector<8x8xf32>
    %cst_32 = arith.constant 0.000000e+00 : f32
    %256 = vector.broadcast %cst_32 : f32 to vector<8x1xf32>
    %257 = tpu.concatenate %256, %102, %256 in 1 : vector<8x1xf32>, vector<8x8xf32>, vector<8x1xf32> -> vector<8x10xf32>
    %cst_33 = arith.constant 0.000000e+00 : f32
    %258 = vector.broadcast %cst_33 : f32 to vector<1x10xf32>
    %259 = tpu.concatenate %258, %257, %258 in 0 : vector<1x10xf32>, vector<8x10xf32>, vector<1x10xf32> -> vector<10x10xf32>
    %260 = vector.extract_strided_slice %259 {offsets = [0, 0], sizes = [8, 8], strides = [1, 1]} : vector<10x10xf32> to vector<8x8xf32>
    %c9_34 = arith.constant 9 : index
    %261 = memref.load %arg8[%c9_34] : memref<72xf32, #tpu.memory_space<smem>>
    %262 = vector.broadcast %261 : f32 to vector<8x8xf32>
    %263 = arith.mulf %260, %262 : vector<8x8xf32>
    %264 = arith.addf %243, %263 : vector<8x8xf32>
    %c27 = arith.constant 27 : index
    %265 = memref.load %arg8[%c27] : memref<72xf32, #tpu.memory_space<smem>>
    %266 = vector.broadcast %265 : f32 to vector<8x8xf32>
    %267 = arith.mulf %260, %266 : vector<8x8xf32>
    %268 = arith.addf %247, %267 : vector<8x8xf32>
    %c45 = arith.constant 45 : index
    %269 = memref.load %arg8[%c45] : memref<72xf32, #tpu.memory_space<smem>>
    %270 = vector.broadcast %269 : f32 to vector<8x8xf32>
    %271 = arith.mulf %260, %270 : vector<8x8xf32>
    %272 = arith.addf %251, %271 : vector<8x8xf32>
    %c63 = arith.constant 63 : index
    %273 = memref.load %arg8[%c63] : memref<72xf32, #tpu.memory_space<smem>>
    %274 = vector.broadcast %273 : f32 to vector<8x8xf32>
    %275 = arith.mulf %260, %274 : vector<8x8xf32>
    %276 = arith.addf %255, %275 : vector<8x8xf32>
    %277 = vector.extract_strided_slice %259 {offsets = [0, 1], sizes = [8, 8], strides = [1, 1]} : vector<10x10xf32> to vector<8x8xf32>
    %c10_35 = arith.constant 10 : index
    %278 = memref.load %arg8[%c10_35] : memref<72xf32, #tpu.memory_space<smem>>
    %279 = vector.broadcast %278 : f32 to vector<8x8xf32>
    %280 = arith.mulf %277, %279 : vector<8x8xf32>
    %281 = arith.addf %264, %280 : vector<8x8xf32>
    %c28 = arith.constant 28 : index
    %282 = memref.load %arg8[%c28] : memref<72xf32, #tpu.memory_space<smem>>
    %283 = vector.broadcast %282 : f32 to vector<8x8xf32>
    %284 = arith.mulf %277, %283 : vector<8x8xf32>
    %285 = arith.addf %268, %284 : vector<8x8xf32>
    %c46 = arith.constant 46 : index
    %286 = memref.load %arg8[%c46] : memref<72xf32, #tpu.memory_space<smem>>
    %287 = vector.broadcast %286 : f32 to vector<8x8xf32>
    %288 = arith.mulf %277, %287 : vector<8x8xf32>
    %289 = arith.addf %272, %288 : vector<8x8xf32>
    %c64 = arith.constant 64 : index
    %290 = memref.load %arg8[%c64] : memref<72xf32, #tpu.memory_space<smem>>
    %291 = vector.broadcast %290 : f32 to vector<8x8xf32>
    %292 = arith.mulf %277, %291 : vector<8x8xf32>
    %293 = arith.addf %276, %292 : vector<8x8xf32>
    %294 = vector.extract_strided_slice %259 {offsets = [0, 2], sizes = [8, 8], strides = [1, 1]} : vector<10x10xf32> to vector<8x8xf32>
    %c11_36 = arith.constant 11 : index
    %295 = memref.load %arg8[%c11_36] : memref<72xf32, #tpu.memory_space<smem>>
    %296 = vector.broadcast %295 : f32 to vector<8x8xf32>
    %297 = arith.mulf %294, %296 : vector<8x8xf32>
    %298 = arith.addf %281, %297 : vector<8x8xf32>
    %c29 = arith.constant 29 : index
    %299 = memref.load %arg8[%c29] : memref<72xf32, #tpu.memory_space<smem>>
    %300 = vector.broadcast %299 : f32 to vector<8x8xf32>
    %301 = arith.mulf %294, %300 : vector<8x8xf32>
    %302 = arith.addf %285, %301 : vector<8x8xf32>
    %c47 = arith.constant 47 : index
    %303 = memref.load %arg8[%c47] : memref<72xf32, #tpu.memory_space<smem>>
    %304 = vector.broadcast %303 : f32 to vector<8x8xf32>
    %305 = arith.mulf %294, %304 : vector<8x8xf32>
    %306 = arith.addf %289, %305 : vector<8x8xf32>
    %c65 = arith.constant 65 : index
    %307 = memref.load %arg8[%c65] : memref<72xf32, #tpu.memory_space<smem>>
    %308 = vector.broadcast %307 : f32 to vector<8x8xf32>
    %309 = arith.mulf %294, %308 : vector<8x8xf32>
    %310 = arith.addf %293, %309 : vector<8x8xf32>
    %311 = vector.extract_strided_slice %259 {offsets = [1, 0], sizes = [8, 8], strides = [1, 1]} : vector<10x10xf32> to vector<8x8xf32>
    %c12_37 = arith.constant 12 : index
    %312 = memref.load %arg8[%c12_37] : memref<72xf32, #tpu.memory_space<smem>>
    %313 = vector.broadcast %312 : f32 to vector<8x8xf32>
    %314 = arith.mulf %311, %313 : vector<8x8xf32>
    %315 = arith.addf %298, %314 : vector<8x8xf32>
    %c30 = arith.constant 30 : index
    %316 = memref.load %arg8[%c30] : memref<72xf32, #tpu.memory_space<smem>>
    %317 = vector.broadcast %316 : f32 to vector<8x8xf32>
    %318 = arith.mulf %311, %317 : vector<8x8xf32>
    %319 = arith.addf %302, %318 : vector<8x8xf32>
    %c48 = arith.constant 48 : index
    %320 = memref.load %arg8[%c48] : memref<72xf32, #tpu.memory_space<smem>>
    %321 = vector.broadcast %320 : f32 to vector<8x8xf32>
    %322 = arith.mulf %311, %321 : vector<8x8xf32>
    %323 = arith.addf %306, %322 : vector<8x8xf32>
    %c66 = arith.constant 66 : index
    %324 = memref.load %arg8[%c66] : memref<72xf32, #tpu.memory_space<smem>>
    %325 = vector.broadcast %324 : f32 to vector<8x8xf32>
    %326 = arith.mulf %311, %325 : vector<8x8xf32>
    %327 = arith.addf %310, %326 : vector<8x8xf32>
    %328 = vector.extract_strided_slice %259 {offsets = [1, 1], sizes = [8, 8], strides = [1, 1]} : vector<10x10xf32> to vector<8x8xf32>
    %c13_38 = arith.constant 13 : index
    %329 = memref.load %arg8[%c13_38] : memref<72xf32, #tpu.memory_space<smem>>
    %330 = vector.broadcast %329 : f32 to vector<8x8xf32>
    %331 = arith.mulf %328, %330 : vector<8x8xf32>
    %332 = arith.addf %315, %331 : vector<8x8xf32>
    %c31 = arith.constant 31 : index
    %333 = memref.load %arg8[%c31] : memref<72xf32, #tpu.memory_space<smem>>
    %334 = vector.broadcast %333 : f32 to vector<8x8xf32>
    %335 = arith.mulf %328, %334 : vector<8x8xf32>
    %336 = arith.addf %319, %335 : vector<8x8xf32>
    %c49 = arith.constant 49 : index
    %337 = memref.load %arg8[%c49] : memref<72xf32, #tpu.memory_space<smem>>
    %338 = vector.broadcast %337 : f32 to vector<8x8xf32>
    %339 = arith.mulf %328, %338 : vector<8x8xf32>
    %340 = arith.addf %323, %339 : vector<8x8xf32>
    %c67 = arith.constant 67 : index
    %341 = memref.load %arg8[%c67] : memref<72xf32, #tpu.memory_space<smem>>
    %342 = vector.broadcast %341 : f32 to vector<8x8xf32>
    %343 = arith.mulf %328, %342 : vector<8x8xf32>
    %344 = arith.addf %327, %343 : vector<8x8xf32>
    %345 = vector.extract_strided_slice %259 {offsets = [1, 2], sizes = [8, 8], strides = [1, 1]} : vector<10x10xf32> to vector<8x8xf32>
    %c14_39 = arith.constant 14 : index
    %346 = memref.load %arg8[%c14_39] : memref<72xf32, #tpu.memory_space<smem>>
    %347 = vector.broadcast %346 : f32 to vector<8x8xf32>
    %348 = arith.mulf %345, %347 : vector<8x8xf32>
    %349 = arith.addf %332, %348 : vector<8x8xf32>
    %c32 = arith.constant 32 : index
    %350 = memref.load %arg8[%c32] : memref<72xf32, #tpu.memory_space<smem>>
    %351 = vector.broadcast %350 : f32 to vector<8x8xf32>
    %352 = arith.mulf %345, %351 : vector<8x8xf32>
    %353 = arith.addf %336, %352 : vector<8x8xf32>
    %c50 = arith.constant 50 : index
    %354 = memref.load %arg8[%c50] : memref<72xf32, #tpu.memory_space<smem>>
    %355 = vector.broadcast %354 : f32 to vector<8x8xf32>
    %356 = arith.mulf %345, %355 : vector<8x8xf32>
    %357 = arith.addf %340, %356 : vector<8x8xf32>
    %c68 = arith.constant 68 : index
    %358 = memref.load %arg8[%c68] : memref<72xf32, #tpu.memory_space<smem>>
    %359 = vector.broadcast %358 : f32 to vector<8x8xf32>
    %360 = arith.mulf %345, %359 : vector<8x8xf32>
    %361 = arith.addf %344, %360 : vector<8x8xf32>
    %362 = vector.extract_strided_slice %259 {offsets = [2, 0], sizes = [8, 8], strides = [1, 1]} : vector<10x10xf32> to vector<8x8xf32>
    %c15_40 = arith.constant 15 : index
    %363 = memref.load %arg8[%c15_40] : memref<72xf32, #tpu.memory_space<smem>>
    %364 = vector.broadcast %363 : f32 to vector<8x8xf32>
    %365 = arith.mulf %362, %364 : vector<8x8xf32>
    %366 = arith.addf %349, %365 : vector<8x8xf32>
    %c33 = arith.constant 33 : index
    %367 = memref.load %arg8[%c33] : memref<72xf32, #tpu.memory_space<smem>>
    %368 = vector.broadcast %367 : f32 to vector<8x8xf32>
    %369 = arith.mulf %362, %368 : vector<8x8xf32>
    %370 = arith.addf %353, %369 : vector<8x8xf32>
    %c51 = arith.constant 51 : index
    %371 = memref.load %arg8[%c51] : memref<72xf32, #tpu.memory_space<smem>>
    %372 = vector.broadcast %371 : f32 to vector<8x8xf32>
    %373 = arith.mulf %362, %372 : vector<8x8xf32>
    %374 = arith.addf %357, %373 : vector<8x8xf32>
    %c69 = arith.constant 69 : index
    %375 = memref.load %arg8[%c69] : memref<72xf32, #tpu.memory_space<smem>>
    %376 = vector.broadcast %375 : f32 to vector<8x8xf32>
    %377 = arith.mulf %362, %376 : vector<8x8xf32>
    %378 = arith.addf %361, %377 : vector<8x8xf32>
    %379 = vector.extract_strided_slice %259 {offsets = [2, 1], sizes = [8, 8], strides = [1, 1]} : vector<10x10xf32> to vector<8x8xf32>
    %c16_41 = arith.constant 16 : index
    %380 = memref.load %arg8[%c16_41] : memref<72xf32, #tpu.memory_space<smem>>
    %381 = vector.broadcast %380 : f32 to vector<8x8xf32>
    %382 = arith.mulf %379, %381 : vector<8x8xf32>
    %383 = arith.addf %366, %382 : vector<8x8xf32>
    %c34 = arith.constant 34 : index
    %384 = memref.load %arg8[%c34] : memref<72xf32, #tpu.memory_space<smem>>
    %385 = vector.broadcast %384 : f32 to vector<8x8xf32>
    %386 = arith.mulf %379, %385 : vector<8x8xf32>
    %387 = arith.addf %370, %386 : vector<8x8xf32>
    %c52 = arith.constant 52 : index
    %388 = memref.load %arg8[%c52] : memref<72xf32, #tpu.memory_space<smem>>
    %389 = vector.broadcast %388 : f32 to vector<8x8xf32>
    %390 = arith.mulf %379, %389 : vector<8x8xf32>
    %391 = arith.addf %374, %390 : vector<8x8xf32>
    %c70 = arith.constant 70 : index
    %392 = memref.load %arg8[%c70] : memref<72xf32, #tpu.memory_space<smem>>
    %393 = vector.broadcast %392 : f32 to vector<8x8xf32>
    %394 = arith.mulf %379, %393 : vector<8x8xf32>
    %395 = arith.addf %378, %394 : vector<8x8xf32>
    %396 = vector.extract_strided_slice %259 {offsets = [2, 2], sizes = [8, 8], strides = [1, 1]} : vector<10x10xf32> to vector<8x8xf32>
    %c17_42 = arith.constant 17 : index
    %397 = memref.load %arg8[%c17_42] : memref<72xf32, #tpu.memory_space<smem>>
    %398 = vector.broadcast %397 : f32 to vector<8x8xf32>
    %399 = arith.mulf %396, %398 : vector<8x8xf32>
    %400 = arith.addf %383, %399 : vector<8x8xf32>
    %c35 = arith.constant 35 : index
    %401 = memref.load %arg8[%c35] : memref<72xf32, #tpu.memory_space<smem>>
    %402 = vector.broadcast %401 : f32 to vector<8x8xf32>
    %403 = arith.mulf %396, %402 : vector<8x8xf32>
    %404 = arith.addf %387, %403 : vector<8x8xf32>
    %c53 = arith.constant 53 : index
    %405 = memref.load %arg8[%c53] : memref<72xf32, #tpu.memory_space<smem>>
    %406 = vector.broadcast %405 : f32 to vector<8x8xf32>
    %407 = arith.mulf %396, %406 : vector<8x8xf32>
    %408 = arith.addf %391, %407 : vector<8x8xf32>
    %c71 = arith.constant 71 : index
    %409 = memref.load %arg8[%c71] : memref<72xf32, #tpu.memory_space<smem>>
    %410 = vector.broadcast %409 : f32 to vector<8x8xf32>
    %411 = arith.mulf %396, %410 : vector<8x8xf32>
    %412 = arith.addf %395, %411 : vector<8x8xf32>
    %cst_43 = arith.constant dense<0.000000e+00> : vector<4x8xf32>
    %413 = tpu.matmul %2, %400, %cst_43 {dimension_numbers = #tpu.dot_dimension_numbers<[1], [0], [0], [1], [0, 0, 1, 1], [], []>} : vector<4x8xf32>, vector<8x8xf32>, vector<4x8xf32> -> vector<4x8xf32>
    %cst_44 = arith.constant dense<0.000000e+00> : vector<4x4xf32>
    %414 = tpu.matmul %413, %3, %cst_44 {dimension_numbers = #tpu.dot_dimension_numbers<[1], [0], [0], [1], [0, 0, 1, 1], [], []>} : vector<4x8xf32>, vector<8x4xf32>, vector<4x4xf32> -> vector<4x4xf32>
    %c0_45 = arith.constant 0 : index
    %415 = memref.load %arg9[%c0_45] : memref<4xf32, #tpu.memory_space<smem>>
    %416 = vector.broadcast %415 : f32 to vector<4x4xf32>
    %417 = arith.addf %414, %416 : vector<4x4xf32>
    %cst_46 = arith.constant 0.000000e+00 : f32
    %418 = vector.broadcast %cst_46 : f32 to vector<4x4xf32>
    %419 = arith.maximumf %417, %418 : vector<4x4xf32>
    %cst_47 = arith.constant dense<0.000000e+00> : vector<4x8xf32>
    %420 = tpu.matmul %2, %404, %cst_47 {dimension_numbers = #tpu.dot_dimension_numbers<[1], [0], [0], [1], [0, 0, 1, 1], [], []>} : vector<4x8xf32>, vector<8x8xf32>, vector<4x8xf32> -> vector<4x8xf32>
    %cst_48 = arith.constant dense<0.000000e+00> : vector<4x4xf32>
    %421 = tpu.matmul %420, %3, %cst_48 {dimension_numbers = #tpu.dot_dimension_numbers<[1], [0], [0], [1], [0, 0, 1, 1], [], []>} : vector<4x8xf32>, vector<8x4xf32>, vector<4x4xf32> -> vector<4x4xf32>
    %c1_49 = arith.constant 1 : index
    %422 = memref.load %arg9[%c1_49] : memref<4xf32, #tpu.memory_space<smem>>
    %423 = vector.broadcast %422 : f32 to vector<4x4xf32>
    %424 = arith.addf %421, %423 : vector<4x4xf32>
    %cst_50 = arith.constant 0.000000e+00 : f32
    %425 = vector.broadcast %cst_50 : f32 to vector<4x4xf32>
    %426 = arith.maximumf %424, %425 : vector<4x4xf32>
    %cst_51 = arith.constant dense<0.000000e+00> : vector<4x8xf32>
    %427 = tpu.matmul %2, %408, %cst_51 {dimension_numbers = #tpu.dot_dimension_numbers<[1], [0], [0], [1], [0, 0, 1, 1], [], []>} : vector<4x8xf32>, vector<8x8xf32>, vector<4x8xf32> -> vector<4x8xf32>
    %cst_52 = arith.constant dense<0.000000e+00> : vector<4x4xf32>
    %428 = tpu.matmul %427, %3, %cst_52 {dimension_numbers = #tpu.dot_dimension_numbers<[1], [0], [0], [1], [0, 0, 1, 1], [], []>} : vector<4x8xf32>, vector<8x4xf32>, vector<4x4xf32> -> vector<4x4xf32>
    %c2_53 = arith.constant 2 : index
    %429 = memref.load %arg9[%c2_53] : memref<4xf32, #tpu.memory_space<smem>>
    %430 = vector.broadcast %429 : f32 to vector<4x4xf32>
    %431 = arith.addf %428, %430 : vector<4x4xf32>
    %cst_54 = arith.constant 0.000000e+00 : f32
    %432 = vector.broadcast %cst_54 : f32 to vector<4x4xf32>
    %433 = arith.maximumf %431, %432 : vector<4x4xf32>
    %cst_55 = arith.constant dense<0.000000e+00> : vector<4x8xf32>
    %434 = tpu.matmul %2, %412, %cst_55 {dimension_numbers = #tpu.dot_dimension_numbers<[1], [0], [0], [1], [0, 0, 1, 1], [], []>} : vector<4x8xf32>, vector<8x8xf32>, vector<4x8xf32> -> vector<4x8xf32>
    %cst_56 = arith.constant dense<0.000000e+00> : vector<4x4xf32>
    %435 = tpu.matmul %434, %3, %cst_56 {dimension_numbers = #tpu.dot_dimension_numbers<[1], [0], [0], [1], [0, 0, 1, 1], [], []>} : vector<4x8xf32>, vector<8x4xf32>, vector<4x4xf32> -> vector<4x4xf32>
    %c3_57 = arith.constant 3 : index
    %436 = memref.load %arg9[%c3_57] : memref<4xf32, #tpu.memory_space<smem>>
    %437 = vector.broadcast %436 : f32 to vector<4x4xf32>
    %438 = arith.addf %435, %437 : vector<4x4xf32>
    %cst_58 = arith.constant 0.000000e+00 : f32
    %439 = vector.broadcast %cst_58 : f32 to vector<4x4xf32>
    %440 = arith.maximumf %438, %439 : vector<4x4xf32>
    %441 = vector.shape_cast %419 : vector<4x4xf32> to vector<1x4x4xf32>
    %442 = vector.shape_cast %426 : vector<4x4xf32> to vector<1x4x4xf32>
    %443 = vector.shape_cast %433 : vector<4x4xf32> to vector<1x4x4xf32>
    %444 = vector.shape_cast %440 : vector<4x4xf32> to vector<1x4x4xf32>
    %445 = tpu.concatenate %441, %442, %443, %444 in 0 : vector<1x4x4xf32>, vector<1x4x4xf32>, vector<1x4x4xf32>, vector<1x4x4xf32> -> vector<4x4x4xf32>
    %c0_59 = arith.constant 0 : index
    %c0_60 = arith.constant 0 : index
    %c0_61 = arith.constant 0 : index
    %c0_62 = arith.constant 0 : index
    %446 = vector.load %arg10[%c0_59, %c0_60, %c0_61, %c0_62] : memref<2x4x4x4xf32, #tpu.memory_space<vmem>>, vector<1x4x4x4xf32>
    %447 = vector.shape_cast %446 : vector<1x4x4x4xf32> to vector<4x4x4xf32>
    %448 = vector.shape_cast %445 : vector<4x4x4xf32> to vector<1x4x4x4xf32>
    tpu.vector_store %arg10[%c0_59, %c0_60, %c0_61, %c0_62], %448 {strides = array<i32>} : memref<2x4x4x4xf32, #tpu.memory_space<vmem>>, vector<1x4x4x4xf32>,
    %c1_63 = arith.constant 1 : index
    %c0_64 = arith.constant 0 : index
    %c0_65 = arith.constant 0 : index
    %c0_66 = arith.constant 0 : index
    %449 = vector.load %arg1[%c1_63, %c0_64, %c0_65, %c0_66] : memref<2x1x16x16xf32, #tpu.memory_space<vmem>>, vector<1x1x16x16xf32>
    %450 = vector.shape_cast %449 : vector<1x1x16x16xf32> to vector<16x16xf32>
    %cst_67 = arith.constant 0.000000e+00 : f32
    %451 = vector.broadcast %cst_67 : f32 to vector<16x1xf32>
    %452 = tpu.concatenate %451, %450, %451 in 1 : vector<16x1xf32>, vector<16x16xf32>, vector<16x1xf32> -> vector<16x18xf32>
    %cst_68 = arith.constant 0.000000e+00 : f32
    %453 = vector.broadcast %cst_68 : f32 to vector<1x18xf32>
    %454 = tpu.concatenate %453, %452, %453 in 0 : vector<1x18xf32>, vector<16x18xf32>, vector<1x18xf32> -> vector<18x18xf32>
    %455 = vector.extract_strided_slice %454 {offsets = [0, 0], sizes = [16, 16], strides = [1, 1]} : vector<18x18xf32> to vector<16x16xf32>
    %c0_69 = arith.constant 0 : index
    %456 = memref.load %arg6[%c0_69] : memref<18xf32, #tpu.memory_space<smem>>
    %457 = vector.broadcast %456 : f32 to vector<16x16xf32>
    %458 = arith.mulf %455, %457 : vector<16x16xf32>
    %c9_70 = arith.constant 9 : index
    %459 = memref.load %arg6[%c9_70] : memref<18xf32, #tpu.memory_space<smem>>
    %460 = vector.broadcast %459 : f32 to vector<16x16xf32>
    %461 = arith.mulf %455, %460 : vector<16x16xf32>
    %462 = vector.extract_strided_slice %454 {offsets = [0, 1], sizes = [16, 16], strides = [1, 1]} : vector<18x18xf32> to vector<16x16xf32>
    %c1_71 = arith.constant 1 : index
    %463 = memref.load %arg6[%c1_71] : memref<18xf32, #tpu.memory_space<smem>>
    %464 = vector.broadcast %463 : f32 to vector<16x16xf32>
    %465 = arith.mulf %462, %464 : vector<16x16xf32>
    %466 = arith.addf %458, %465 : vector<16x16xf32>
    %c10_72 = arith.constant 10 : index
    %467 = memref.load %arg6[%c10_72] : memref<18xf32, #tpu.memory_space<smem>>
    %468 = vector.broadcast %467 : f32 to vector<16x16xf32>
    %469 = arith.mulf %462, %468 : vector<16x16xf32>
    %470 = arith.addf %461, %469 : vector<16x16xf32>
    %471 = vector.extract_strided_slice %454 {offsets = [0, 2], sizes = [16, 16], strides = [1, 1]} : vector<18x18xf32> to vector<16x16xf32>
    %c2_73 = arith.constant 2 : index
    %472 = memref.load %arg6[%c2_73] : memref<18xf32, #tpu.memory_space<smem>>
    %473 = vector.broadcast %472 : f32 to vector<16x16xf32>
    %474 = arith.mulf %471, %473 : vector<16x16xf32>
    %475 = arith.addf %466, %474 : vector<16x16xf32>
    %c11_74 = arith.constant 11 : index
    %476 = memref.load %arg6[%c11_74] : memref<18xf32, #tpu.memory_space<smem>>
    %477 = vector.broadcast %476 : f32 to vector<16x16xf32>
    %478 = arith.mulf %471, %477 : vector<16x16xf32>
    %479 = arith.addf %470, %478 : vector<16x16xf32>
    %480 = vector.extract_strided_slice %454 {offsets = [1, 0], sizes = [16, 16], strides = [1, 1]} : vector<18x18xf32> to vector<16x16xf32>
    %c3_75 = arith.constant 3 : index
    %481 = memref.load %arg6[%c3_75] : memref<18xf32, #tpu.memory_space<smem>>
    %482 = vector.broadcast %481 : f32 to vector<16x16xf32>
    %483 = arith.mulf %480, %482 : vector<16x16xf32>
    %484 = arith.addf %475, %483 : vector<16x16xf32>
    %c12_76 = arith.constant 12 : index
    %485 = memref.load %arg6[%c12_76] : memref<18xf32, #tpu.memory_space<smem>>
    %486 = vector.broadcast %485 : f32 to vector<16x16xf32>
    %487 = arith.mulf %480, %486 : vector<16x16xf32>
    %488 = arith.addf %479, %487 : vector<16x16xf32>
    %489 = vector.extract_strided_slice %454 {offsets = [1, 1], sizes = [16, 16], strides = [1, 1]} : vector<18x18xf32> to vector<16x16xf32>
    %c4_77 = arith.constant 4 : index
    %490 = memref.load %arg6[%c4_77] : memref<18xf32, #tpu.memory_space<smem>>
    %491 = vector.broadcast %490 : f32 to vector<16x16xf32>
    %492 = arith.mulf %489, %491 : vector<16x16xf32>
    %493 = arith.addf %484, %492 : vector<16x16xf32>
    %c13_78 = arith.constant 13 : index
    %494 = memref.load %arg6[%c13_78] : memref<18xf32, #tpu.memory_space<smem>>
    %495 = vector.broadcast %494 : f32 to vector<16x16xf32>
    %496 = arith.mulf %489, %495 : vector<16x16xf32>
    %497 = arith.addf %488, %496 : vector<16x16xf32>
    %498 = vector.extract_strided_slice %454 {offsets = [1, 2], sizes = [16, 16], strides = [1, 1]} : vector<18x18xf32> to vector<16x16xf32>
    %c5_79 = arith.constant 5 : index
    %499 = memref.load %arg6[%c5_79] : memref<18xf32, #tpu.memory_space<smem>>
    %500 = vector.broadcast %499 : f32 to vector<16x16xf32>
    %501 = arith.mulf %498, %500 : vector<16x16xf32>
    %502 = arith.addf %493, %501 : vector<16x16xf32>
    %c14_80 = arith.constant 14 : index
    %503 = memref.load %arg6[%c14_80] : memref<18xf32, #tpu.memory_space<smem>>
    %504 = vector.broadcast %503 : f32 to vector<16x16xf32>
    %505 = arith.mulf %498, %504 : vector<16x16xf32>
    %506 = arith.addf %497, %505 : vector<16x16xf32>
    %507 = vector.extract_strided_slice %454 {offsets = [2, 0], sizes = [16, 16], strides = [1, 1]} : vector<18x18xf32> to vector<16x16xf32>
    %c6_81 = arith.constant 6 : index
    %508 = memref.load %arg6[%c6_81] : memref<18xf32, #tpu.memory_space<smem>>
    %509 = vector.broadcast %508 : f32 to vector<16x16xf32>
    %510 = arith.mulf %507, %509 : vector<16x16xf32>
    %511 = arith.addf %502, %510 : vector<16x16xf32>
    %c15_82 = arith.constant 15 : index
    %512 = memref.load %arg6[%c15_82] : memref<18xf32, #tpu.memory_space<smem>>
    %513 = vector.broadcast %512 : f32 to vector<16x16xf32>
    %514 = arith.mulf %507, %513 : vector<16x16xf32>
    %515 = arith.addf %506, %514 : vector<16x16xf32>
    %516 = vector.extract_strided_slice %454 {offsets = [2, 1], sizes = [16, 16], strides = [1, 1]} : vector<18x18xf32> to vector<16x16xf32>
    %c7_83 = arith.constant 7 : index
    %517 = memref.load %arg6[%c7_83] : memref<18xf32, #tpu.memory_space<smem>>
    %518 = vector.broadcast %517 : f32 to vector<16x16xf32>
    %519 = arith.mulf %516, %518 : vector<16x16xf32>
    %520 = arith.addf %511, %519 : vector<16x16xf32>
    %c16_84 = arith.constant 16 : index
    %521 = memref.load %arg6[%c16_84] : memref<18xf32, #tpu.memory_space<smem>>
    %522 = vector.broadcast %521 : f32 to vector<16x16xf32>
    %523 = arith.mulf %516, %522 : vector<16x16xf32>
    %524 = arith.addf %515, %523 : vector<16x16xf32>
    %525 = vector.extract_strided_slice %454 {offsets = [2, 2], sizes = [16, 16], strides = [1, 1]} : vector<18x18xf32> to vector<16x16xf32>
    %c8_85 = arith.constant 8 : index
    %526 = memref.load %arg6[%c8_85] : memref<18xf32, #tpu.memory_space<smem>>
    %527 = vector.broadcast %526 : f32 to vector<16x16xf32>
    %528 = arith.mulf %525, %527 : vector<16x16xf32>
    %529 = arith.addf %520, %528 : vector<16x16xf32>
    %c17_86 = arith.constant 17 : index
    %530 = memref.load %arg6[%c17_86] : memref<18xf32, #tpu.memory_space<smem>>
    %531 = vector.broadcast %530 : f32 to vector<16x16xf32>
    %532 = arith.mulf %525, %531 : vector<16x16xf32>
    %533 = arith.addf %524, %532 : vector<16x16xf32>
    %cst_87 = arith.constant dense<0.000000e+00> : vector<8x16xf32>
    %534 = tpu.matmul %0, %529, %cst_87 {dimension_numbers = #tpu.dot_dimension_numbers<[1], [0], [0], [1], [0, 0, 1, 1], [], []>} : vector<8x16xf32>, vector<16x16xf32>, vector<8x16xf32> -> vector<8x16xf32>
    %cst_88 = arith.constant dense<0.000000e+00> : vector<8x8xf32>
    %535 = tpu.matmul %534, %1, %cst_88 {dimension_numbers = #tpu.dot_dimension_numbers<[1], [0], [0], [1], [0, 0, 1, 1], [], []>} : vector<8x16xf32>, vector<16x8xf32>, vector<8x8xf32> -> vector<8x8xf32>
    %c0_89 = arith.constant 0 : index
    %536 = memref.load %arg7[%c0_89] : memref<2xf32, #tpu.memory_space<smem>>
    %537 = vector.broadcast %536 : f32 to vector<8x8xf32>
    %538 = arith.addf %535, %537 : vector<8x8xf32>
    %cst_90 = arith.constant 0.000000e+00 : f32
    %539 = vector.broadcast %cst_90 : f32 to vector<8x8xf32>
    %540 = arith.maximumf %538, %539 : vector<8x8xf32>
    %cst_91 = arith.constant dense<0.000000e+00> : vector<8x16xf32>
    %541 = tpu.matmul %0, %533, %cst_91 {dimension_numbers = #tpu.dot_dimension_numbers<[1], [0], [0], [1], [0, 0, 1, 1], [], []>} : vector<8x16xf32>, vector<16x16xf32>, vector<8x16xf32> -> vector<8x16xf32>
    %cst_92 = arith.constant dense<0.000000e+00> : vector<8x8xf32>
    %542 = tpu.matmul %541, %1, %cst_92 {dimension_numbers = #tpu.dot_dimension_numbers<[1], [0], [0], [1], [0, 0, 1, 1], [], []>} : vector<8x16xf32>, vector<16x8xf32>, vector<8x8xf32> -> vector<8x8xf32>
    %c1_93 = arith.constant 1 : index
    %543 = memref.load %arg7[%c1_93] : memref<2xf32, #tpu.memory_space<smem>>
    %544 = vector.broadcast %543 : f32 to vector<8x8xf32>
    %545 = arith.addf %542, %544 : vector<8x8xf32>
    %cst_94 = arith.constant 0.000000e+00 : f32
    %546 = vector.broadcast %cst_94 : f32 to vector<8x8xf32>
    %547 = arith.maximumf %545, %546 : vector<8x8xf32>
    %cst_95 = arith.constant 0.000000e+00 : f32
    %548 = vector.broadcast %cst_95 : f32 to vector<8x1xf32>
    %549 = tpu.concatenate %548, %540, %548 in 1 : vector<8x1xf32>, vector<8x8xf32>, vector<8x1xf32> -> vector<8x10xf32>
    %cst_96 = arith.constant 0.000000e+00 : f32
    %550 = vector.broadcast %cst_96 : f32 to vector<1x10xf32>
    %551 = tpu.concatenate %550, %549, %550 in 0 : vector<1x10xf32>, vector<8x10xf32>, vector<1x10xf32> -> vector<10x10xf32>
    %552 = vector.extract_strided_slice %551 {offsets = [0, 0], sizes = [8, 8], strides = [1, 1]} : vector<10x10xf32> to vector<8x8xf32>
    %c0_97 = arith.constant 0 : index
    %553 = memref.load %arg8[%c0_97] : memref<72xf32, #tpu.memory_space<smem>>
    %554 = vector.broadcast %553 : f32 to vector<8x8xf32>
    %555 = arith.mulf %552, %554 : vector<8x8xf32>
    %c18_98 = arith.constant 18 : index
    %556 = memref.load %arg8[%c18_98] : memref<72xf32, #tpu.memory_space<smem>>
    %557 = vector.broadcast %556 : f32 to vector<8x8xf32>
    %558 = arith.mulf %552, %557 : vector<8x8xf32>
    %c36_99 = arith.constant 36 : index
    %559 = memref.load %arg8[%c36_99] : memref<72xf32, #tpu.memory_space<smem>>
    %560 = vector.broadcast %559 : f32 to vector<8x8xf32>
    %561 = arith.mulf %552, %560 : vector<8x8xf32>
    %c54_100 = arith.constant 54 : index
    %562 = memref.load %arg8[%c54_100] : memref<72xf32, #tpu.memory_space<smem>>
    %563 = vector.broadcast %562 : f32 to vector<8x8xf32>
    %564 = arith.mulf %552, %563 : vector<8x8xf32>
    %565 = vector.extract_strided_slice %551 {offsets = [0, 1], sizes = [8, 8], strides = [1, 1]} : vector<10x10xf32> to vector<8x8xf32>
    %c1_101 = arith.constant 1 : index
    %566 = memref.load %arg8[%c1_101] : memref<72xf32, #tpu.memory_space<smem>>
    %567 = vector.broadcast %566 : f32 to vector<8x8xf32>
    %568 = arith.mulf %565, %567 : vector<8x8xf32>
    %569 = arith.addf %555, %568 : vector<8x8xf32>
    %c19_102 = arith.constant 19 : index
    %570 = memref.load %arg8[%c19_102] : memref<72xf32, #tpu.memory_space<smem>>
    %571 = vector.broadcast %570 : f32 to vector<8x8xf32>
    %572 = arith.mulf %565, %571 : vector<8x8xf32>
    %573 = arith.addf %558, %572 : vector<8x8xf32>
    %c37_103 = arith.constant 37 : index
    %574 = memref.load %arg8[%c37_103] : memref<72xf32, #tpu.memory_space<smem>>
    %575 = vector.broadcast %574 : f32 to vector<8x8xf32>
    %576 = arith.mulf %565, %575 : vector<8x8xf32>
    %577 = arith.addf %561, %576 : vector<8x8xf32>
    %c55_104 = arith.constant 55 : index
    %578 = memref.load %arg8[%c55_104] : memref<72xf32, #tpu.memory_space<smem>>
    %579 = vector.broadcast %578 : f32 to vector<8x8xf32>
    %580 = arith.mulf %565, %579 : vector<8x8xf32>
    %581 = arith.addf %564, %580 : vector<8x8xf32>
    %582 = vector.extract_strided_slice %551 {offsets = [0, 2], sizes = [8, 8], strides = [1, 1]} : vector<10x10xf32> to vector<8x8xf32>
    %c2_105 = arith.constant 2 : index
    %583 = memref.load %arg8[%c2_105] : memref<72xf32, #tpu.memory_space<smem>>
    %584 = vector.broadcast %583 : f32 to vector<8x8xf32>
    %585 = arith.mulf %582, %584 : vector<8x8xf32>
    %586 = arith.addf %569, %585 : vector<8x8xf32>
    %c20_106 = arith.constant 20 : index
    %587 = memref.load %arg8[%c20_106] : memref<72xf32, #tpu.memory_space<smem>>
    %588 = vector.broadcast %587 : f32 to vector<8x8xf32>
    %589 = arith.mulf %582, %588 : vector<8x8xf32>
    %590 = arith.addf %573, %589 : vector<8x8xf32>
    %c38_107 = arith.constant 38 : index
    %591 = memref.load %arg8[%c38_107] : memref<72xf32, #tpu.memory_space<smem>>
    %592 = vector.broadcast %591 : f32 to vector<8x8xf32>
    %593 = arith.mulf %582, %592 : vector<8x8xf32>
    %594 = arith.addf %577, %593 : vector<8x8xf32>
    %c56_108 = arith.constant 56 : index
    %595 = memref.load %arg8[%c56_108] : memref<72xf32, #tpu.memory_space<smem>>
    %596 = vector.broadcast %595 : f32 to vector<8x8xf32>
    %597 = arith.mulf %582, %596 : vector<8x8xf32>
    %598 = arith.addf %581, %597 : vector<8x8xf32>
    %599 = vector.extract_strided_slice %551 {offsets = [1, 0], sizes = [8, 8], strides = [1, 1]} : vector<10x10xf32> to vector<8x8xf32>
    %c3_109 = arith.constant 3 : index
    %600 = memref.load %arg8[%c3_109] : memref<72xf32, #tpu.memory_space<smem>>
    %601 = vector.broadcast %600 : f32 to vector<8x8xf32>
    %602 = arith.mulf %599, %601 : vector<8x8xf32>
    %603 = arith.addf %586, %602 : vector<8x8xf32>
    %c21_110 = arith.constant 21 : index
    %604 = memref.load %arg8[%c21_110] : memref<72xf32, #tpu.memory_space<smem>>
    %605 = vector.broadcast %604 : f32 to vector<8x8xf32>
    %606 = arith.mulf %599, %605 : vector<8x8xf32>
    %607 = arith.addf %590, %606 : vector<8x8xf32>
    %c39_111 = arith.constant 39 : index
    %608 = memref.load %arg8[%c39_111] : memref<72xf32, #tpu.memory_space<smem>>
    %609 = vector.broadcast %608 : f32 to vector<8x8xf32>
    %610 = arith.mulf %599, %609 : vector<8x8xf32>
    %611 = arith.addf %594, %610 : vector<8x8xf32>
    %c57_112 = arith.constant 57 : index
    %612 = memref.load %arg8[%c57_112] : memref<72xf32, #tpu.memory_space<smem>>
    %613 = vector.broadcast %612 : f32 to vector<8x8xf32>
    %614 = arith.mulf %599, %613 : vector<8x8xf32>
    %615 = arith.addf %598, %614 : vector<8x8xf32>
    %616 = vector.extract_strided_slice %551 {offsets = [1, 1], sizes = [8, 8], strides = [1, 1]} : vector<10x10xf32> to vector<8x8xf32>
    %c4_113 = arith.constant 4 : index
    %617 = memref.load %arg8[%c4_113] : memref<72xf32, #tpu.memory_space<smem>>
    %618 = vector.broadcast %617 : f32 to vector<8x8xf32>
    %619 = arith.mulf %616, %618 : vector<8x8xf32>
    %620 = arith.addf %603, %619 : vector<8x8xf32>
    %c22_114 = arith.constant 22 : index
    %621 = memref.load %arg8[%c22_114] : memref<72xf32, #tpu.memory_space<smem>>
    %622 = vector.broadcast %621 : f32 to vector<8x8xf32>
    %623 = arith.mulf %616, %622 : vector<8x8xf32>
    %624 = arith.addf %607, %623 : vector<8x8xf32>
    %c40_115 = arith.constant 40 : index
    %625 = memref.load %arg8[%c40_115] : memref<72xf32, #tpu.memory_space<smem>>
    %626 = vector.broadcast %625 : f32 to vector<8x8xf32>
    %627 = arith.mulf %616, %626 : vector<8x8xf32>
    %628 = arith.addf %611, %627 : vector<8x8xf32>
    %c58_116 = arith.constant 58 : index
    %629 = memref.load %arg8[%c58_116] : memref<72xf32, #tpu.memory_space<smem>>
    %630 = vector.broadcast %629 : f32 to vector<8x8xf32>
    %631 = arith.mulf %616, %630 : vector<8x8xf32>
    %632 = arith.addf %615, %631 : vector<8x8xf32>
    %633 = vector.extract_strided_slice %551 {offsets = [1, 2], sizes = [8, 8], strides = [1, 1]} : vector<10x10xf32> to vector<8x8xf32>
    %c5_117 = arith.constant 5 : index
    %634 = memref.load %arg8[%c5_117] : memref<72xf32, #tpu.memory_space<smem>>
    %635 = vector.broadcast %634 : f32 to vector<8x8xf32>
    %636 = arith.mulf %633, %635 : vector<8x8xf32>
    %637 = arith.addf %620, %636 : vector<8x8xf32>
    %c23_118 = arith.constant 23 : index
    %638 = memref.load %arg8[%c23_118] : memref<72xf32, #tpu.memory_space<smem>>
    %639 = vector.broadcast %638 : f32 to vector<8x8xf32>
    %640 = arith.mulf %633, %639 : vector<8x8xf32>
    %641 = arith.addf %624, %640 : vector<8x8xf32>
    %c41_119 = arith.constant 41 : index
    %642 = memref.load %arg8[%c41_119] : memref<72xf32, #tpu.memory_space<smem>>
    %643 = vector.broadcast %642 : f32 to vector<8x8xf32>
    %644 = arith.mulf %633, %643 : vector<8x8xf32>
    %645 = arith.addf %628, %644 : vector<8x8xf32>
    %c59_120 = arith.constant 59 : index
    %646 = memref.load %arg8[%c59_120] : memref<72xf32, #tpu.memory_space<smem>>
    %647 = vector.broadcast %646 : f32 to vector<8x8xf32>
    %648 = arith.mulf %633, %647 : vector<8x8xf32>
    %649 = arith.addf %632, %648 : vector<8x8xf32>
    %650 = vector.extract_strided_slice %551 {offsets = [2, 0], sizes = [8, 8], strides = [1, 1]} : vector<10x10xf32> to vector<8x8xf32>
    %c6_121 = arith.constant 6 : index
    %651 = memref.load %arg8[%c6_121] : memref<72xf32, #tpu.memory_space<smem>>
    %652 = vector.broadcast %651 : f32 to vector<8x8xf32>
    %653 = arith.mulf %650, %652 : vector<8x8xf32>
    %654 = arith.addf %637, %653 : vector<8x8xf32>
    %c24_122 = arith.constant 24 : index
    %655 = memref.load %arg8[%c24_122] : memref<72xf32, #tpu.memory_space<smem>>
    %656 = vector.broadcast %655 : f32 to vector<8x8xf32>
    %657 = arith.mulf %650, %656 : vector<8x8xf32>
    %658 = arith.addf %641, %657 : vector<8x8xf32>
    %c42_123 = arith.constant 42 : index
    %659 = memref.load %arg8[%c42_123] : memref<72xf32, #tpu.memory_space<smem>>
    %660 = vector.broadcast %659 : f32 to vector<8x8xf32>
    %661 = arith.mulf %650, %660 : vector<8x8xf32>
    %662 = arith.addf %645, %661 : vector<8x8xf32>
    %c60_124 = arith.constant 60 : index
    %663 = memref.load %arg8[%c60_124] : memref<72xf32, #tpu.memory_space<smem>>
    %664 = vector.broadcast %663 : f32 to vector<8x8xf32>
    %665 = arith.mulf %650, %664 : vector<8x8xf32>
    %666 = arith.addf %649, %665 : vector<8x8xf32>
    %667 = vector.extract_strided_slice %551 {offsets = [2, 1], sizes = [8, 8], strides = [1, 1]} : vector<10x10xf32> to vector<8x8xf32>
    %c7_125 = arith.constant 7 : index
    %668 = memref.load %arg8[%c7_125] : memref<72xf32, #tpu.memory_space<smem>>
    %669 = vector.broadcast %668 : f32 to vector<8x8xf32>
    %670 = arith.mulf %667, %669 : vector<8x8xf32>
    %671 = arith.addf %654, %670 : vector<8x8xf32>
    %c25_126 = arith.constant 25 : index
    %672 = memref.load %arg8[%c25_126] : memref<72xf32, #tpu.memory_space<smem>>
    %673 = vector.broadcast %672 : f32 to vector<8x8xf32>
    %674 = arith.mulf %667, %673 : vector<8x8xf32>
    %675 = arith.addf %658, %674 : vector<8x8xf32>
    %c43_127 = arith.constant 43 : index
    %676 = memref.load %arg8[%c43_127] : memref<72xf32, #tpu.memory_space<smem>>
    %677 = vector.broadcast %676 : f32 to vector<8x8xf32>
    %678 = arith.mulf %667, %677 : vector<8x8xf32>
    %679 = arith.addf %662, %678 : vector<8x8xf32>
    %c61_128 = arith.constant 61 : index
    %680 = memref.load %arg8[%c61_128] : memref<72xf32, #tpu.memory_space<smem>>
    %681 = vector.broadcast %680 : f32 to vector<8x8xf32>
    %682 = arith.mulf %667, %681 : vector<8x8xf32>
    %683 = arith.addf %666, %682 : vector<8x8xf32>
    %684 = vector.extract_strided_slice %551 {offsets = [2, 2], sizes = [8, 8], strides = [1, 1]} : vector<10x10xf32> to vector<8x8xf32>
    %c8_129 = arith.constant 8 : index
    %685 = memref.load %arg8[%c8_129] : memref<72xf32, #tpu.memory_space<smem>>
    %686 = vector.broadcast %685 : f32 to vector<8x8xf32>
    %687 = arith.mulf %684, %686 : vector<8x8xf32>
    %688 = arith.addf %671, %687 : vector<8x8xf32>
    %c26_130 = arith.constant 26 : index
    %689 = memref.load %arg8[%c26_130] : memref<72xf32, #tpu.memory_space<smem>>
    %690 = vector.broadcast %689 : f32 to vector<8x8xf32>
    %691 = arith.mulf %684, %690 : vector<8x8xf32>
    %692 = arith.addf %675, %691 : vector<8x8xf32>
    %c44_131 = arith.constant 44 : index
    %693 = memref.load %arg8[%c44_131] : memref<72xf32, #tpu.memory_space<smem>>
    %694 = vector.broadcast %693 : f32 to vector<8x8xf32>
    %695 = arith.mulf %684, %694 : vector<8x8xf32>
    %696 = arith.addf %679, %695 : vector<8x8xf32>
    %c62_132 = arith.constant 62 : index
    %697 = memref.load %arg8[%c62_132] : memref<72xf32, #tpu.memory_space<smem>>
    %698 = vector.broadcast %697 : f32 to vector<8x8xf32>
    %699 = arith.mulf %684, %698 : vector<8x8xf32>
    %700 = arith.addf %683, %699 : vector<8x8xf32>
    %cst_133 = arith.constant 0.000000e+00 : f32
    %701 = vector.broadcast %cst_133 : f32 to vector<8x1xf32>
    %702 = tpu.concatenate %701, %547, %701 in 1 : vector<8x1xf32>, vector<8x8xf32>, vector<8x1xf32> -> vector<8x10xf32>
    %cst_134 = arith.constant 0.000000e+00 : f32
    %703 = vector.broadcast %cst_134 : f32 to vector<1x10xf32>
    %704 = tpu.concatenate %703, %702, %703 in 0 : vector<1x10xf32>, vector<8x10xf32>, vector<1x10xf32> -> vector<10x10xf32>
    %705 = vector.extract_strided_slice %704 {offsets = [0, 0], sizes = [8, 8], strides = [1, 1]} : vector<10x10xf32> to vector<8x8xf32>
    %c9_135 = arith.constant 9 : index
    %706 = memref.load %arg8[%c9_135] : memref<72xf32, #tpu.memory_space<smem>>
    %707 = vector.broadcast %706 : f32 to vector<8x8xf32>
    %708 = arith.mulf %705, %707 : vector<8x8xf32>
    %709 = arith.addf %688, %708 : vector<8x8xf32>
    %c27_136 = arith.constant 27 : index
    %710 = memref.load %arg8[%c27_136] : memref<72xf32, #tpu.memory_space<smem>>
    %711 = vector.broadcast %710 : f32 to vector<8x8xf32>
    %712 = arith.mulf %705, %711 : vector<8x8xf32>
    %713 = arith.addf %692, %712 : vector<8x8xf32>
    %c45_137 = arith.constant 45 : index
    %714 = memref.load %arg8[%c45_137] : memref<72xf32, #tpu.memory_space<smem>>
    %715 = vector.broadcast %714 : f32 to vector<8x8xf32>
    %716 = arith.mulf %705, %715 : vector<8x8xf32>
    %717 = arith.addf %696, %716 : vector<8x8xf32>
    %c63_138 = arith.constant 63 : index
    %718 = memref.load %arg8[%c63_138] : memref<72xf32, #tpu.memory_space<smem>>
    %719 = vector.broadcast %718 : f32 to vector<8x8xf32>
    %720 = arith.mulf %705, %719 : vector<8x8xf32>
    %721 = arith.addf %700, %720 : vector<8x8xf32>
    %722 = vector.extract_strided_slice %704 {offsets = [0, 1], sizes = [8, 8], strides = [1, 1]} : vector<10x10xf32> to vector<8x8xf32>
    %c10_139 = arith.constant 10 : index
    %723 = memref.load %arg8[%c10_139] : memref<72xf32, #tpu.memory_space<smem>>
    %724 = vector.broadcast %723 : f32 to vector<8x8xf32>
    %725 = arith.mulf %722, %724 : vector<8x8xf32>
    %726 = arith.addf %709, %725 : vector<8x8xf32>
    %c28_140 = arith.constant 28 : index
    %727 = memref.load %arg8[%c28_140] : memref<72xf32, #tpu.memory_space<smem>>
    %728 = vector.broadcast %727 : f32 to vector<8x8xf32>
    %729 = arith.mulf %722, %728 : vector<8x8xf32>
    %730 = arith.addf %713, %729 : vector<8x8xf32>
    %c46_141 = arith.constant 46 : index
    %731 = memref.load %arg8[%c46_141] : memref<72xf32, #tpu.memory_space<smem>>
    %732 = vector.broadcast %731 : f32 to vector<8x8xf32>
    %733 = arith.mulf %722, %732 : vector<8x8xf32>
    %734 = arith.addf %717, %733 : vector<8x8xf32>
    %c64_142 = arith.constant 64 : index
    %735 = memref.load %arg8[%c64_142] : memref<72xf32, #tpu.memory_space<smem>>
    %736 = vector.broadcast %735 : f32 to vector<8x8xf32>
    %737 = arith.mulf %722, %736 : vector<8x8xf32>
    %738 = arith.addf %721, %737 : vector<8x8xf32>
    %739 = vector.extract_strided_slice %704 {offsets = [0, 2], sizes = [8, 8], strides = [1, 1]} : vector<10x10xf32> to vector<8x8xf32>
    %c11_143 = arith.constant 11 : index
    %740 = memref.load %arg8[%c11_143] : memref<72xf32, #tpu.memory_space<smem>>
    %741 = vector.broadcast %740 : f32 to vector<8x8xf32>
    %742 = arith.mulf %739, %741 : vector<8x8xf32>
    %743 = arith.addf %726, %742 : vector<8x8xf32>
    %c29_144 = arith.constant 29 : index
    %744 = memref.load %arg8[%c29_144] : memref<72xf32, #tpu.memory_space<smem>>
    %745 = vector.broadcast %744 : f32 to vector<8x8xf32>
    %746 = arith.mulf %739, %745 : vector<8x8xf32>
    %747 = arith.addf %730, %746 : vector<8x8xf32>
    %c47_145 = arith.constant 47 : index
    %748 = memref.load %arg8[%c47_145] : memref<72xf32, #tpu.memory_space<smem>>
    %749 = vector.broadcast %748 : f32 to vector<8x8xf32>
    %750 = arith.mulf %739, %749 : vector<8x8xf32>
    %751 = arith.addf %734, %750 : vector<8x8xf32>
    %c65_146 = arith.constant 65 : index
    %752 = memref.load %arg8[%c65_146] : memref<72xf32, #tpu.memory_space<smem>>
    %753 = vector.broadcast %752 : f32 to vector<8x8xf32>
    %754 = arith.mulf %739, %753 : vector<8x8xf32>
    %755 = arith.addf %738, %754 : vector<8x8xf32>
    %756 = vector.extract_strided_slice %704 {offsets = [1, 0], sizes = [8, 8], strides = [1, 1]} : vector<10x10xf32> to vector<8x8xf32>
    %c12_147 = arith.constant 12 : index
    %757 = memref.load %arg8[%c12_147] : memref<72xf32, #tpu.memory_space<smem>>
    %758 = vector.broadcast %757 : f32 to vector<8x8xf32>
    %759 = arith.mulf %756, %758 : vector<8x8xf32>
    %760 = arith.addf %743, %759 : vector<8x8xf32>
    %c30_148 = arith.constant 30 : index
    %761 = memref.load %arg8[%c30_148] : memref<72xf32, #tpu.memory_space<smem>>
    %762 = vector.broadcast %761 : f32 to vector<8x8xf32>
    %763 = arith.mulf %756, %762 : vector<8x8xf32>
    %764 = arith.addf %747, %763 : vector<8x8xf32>
    %c48_149 = arith.constant 48 : index
    %765 = memref.load %arg8[%c48_149] : memref<72xf32, #tpu.memory_space<smem>>
    %766 = vector.broadcast %765 : f32 to vector<8x8xf32>
    %767 = arith.mulf %756, %766 : vector<8x8xf32>
    %768 = arith.addf %751, %767 : vector<8x8xf32>
    %c66_150 = arith.constant 66 : index
    %769 = memref.load %arg8[%c66_150] : memref<72xf32, #tpu.memory_space<smem>>
    %770 = vector.broadcast %769 : f32 to vector<8x8xf32>
    %771 = arith.mulf %756, %770 : vector<8x8xf32>
    %772 = arith.addf %755, %771 : vector<8x8xf32>
    %773 = vector.extract_strided_slice %704 {offsets = [1, 1], sizes = [8, 8], strides = [1, 1]} : vector<10x10xf32> to vector<8x8xf32>
    %c13_151 = arith.constant 13 : index
    %774 = memref.load %arg8[%c13_151] : memref<72xf32, #tpu.memory_space<smem>>
    %775 = vector.broadcast %774 : f32 to vector<8x8xf32>
    %776 = arith.mulf %773, %775 : vector<8x8xf32>
    %777 = arith.addf %760, %776 : vector<8x8xf32>
    %c31_152 = arith.constant 31 : index
    %778 = memref.load %arg8[%c31_152] : memref<72xf32, #tpu.memory_space<smem>>
    %779 = vector.broadcast %778 : f32 to vector<8x8xf32>
    %780 = arith.mulf %773, %779 : vector<8x8xf32>
    %781 = arith.addf %764, %780 : vector<8x8xf32>
    %c49_153 = arith.constant 49 : index
    %782 = memref.load %arg8[%c49_153] : memref<72xf32, #tpu.memory_space<smem>>
    %783 = vector.broadcast %782 : f32 to vector<8x8xf32>
    %784 = arith.mulf %773, %783 : vector<8x8xf32>
    %785 = arith.addf %768, %784 : vector<8x8xf32>
    %c67_154 = arith.constant 67 : index
    %786 = memref.load %arg8[%c67_154] : memref<72xf32, #tpu.memory_space<smem>>
    %787 = vector.broadcast %786 : f32 to vector<8x8xf32>
    %788 = arith.mulf %773, %787 : vector<8x8xf32>
    %789 = arith.addf %772, %788 : vector<8x8xf32>
    %790 = vector.extract_strided_slice %704 {offsets = [1, 2], sizes = [8, 8], strides = [1, 1]} : vector<10x10xf32> to vector<8x8xf32>
    %c14_155 = arith.constant 14 : index
    %791 = memref.load %arg8[%c14_155] : memref<72xf32, #tpu.memory_space<smem>>
    %792 = vector.broadcast %791 : f32 to vector<8x8xf32>
    %793 = arith.mulf %790, %792 : vector<8x8xf32>
    %794 = arith.addf %777, %793 : vector<8x8xf32>
    %c32_156 = arith.constant 32 : index
    %795 = memref.load %arg8[%c32_156] : memref<72xf32, #tpu.memory_space<smem>>
    %796 = vector.broadcast %795 : f32 to vector<8x8xf32>
    %797 = arith.mulf %790, %796 : vector<8x8xf32>
    %798 = arith.addf %781, %797 : vector<8x8xf32>
    %c50_157 = arith.constant 50 : index
    %799 = memref.load %arg8[%c50_157] : memref<72xf32, #tpu.memory_space<smem>>
    %800 = vector.broadcast %799 : f32 to vector<8x8xf32>
    %801 = arith.mulf %790, %800 : vector<8x8xf32>
    %802 = arith.addf %785, %801 : vector<8x8xf32>
    %c68_158 = arith.constant 68 : index
    %803 = memref.load %arg8[%c68_158] : memref<72xf32, #tpu.memory_space<smem>>
    %804 = vector.broadcast %803 : f32 to vector<8x8xf32>
    %805 = arith.mulf %790, %804 : vector<8x8xf32>
    %806 = arith.addf %789, %805 : vector<8x8xf32>
    %807 = vector.extract_strided_slice %704 {offsets = [2, 0], sizes = [8, 8], strides = [1, 1]} : vector<10x10xf32> to vector<8x8xf32>
    %c15_159 = arith.constant 15 : index
    %808 = memref.load %arg8[%c15_159] : memref<72xf32, #tpu.memory_space<smem>>
    %809 = vector.broadcast %808 : f32 to vector<8x8xf32>
    %810 = arith.mulf %807, %809 : vector<8x8xf32>
    %811 = arith.addf %794, %810 : vector<8x8xf32>
    %c33_160 = arith.constant 33 : index
    %812 = memref.load %arg8[%c33_160] : memref<72xf32, #tpu.memory_space<smem>>
    %813 = vector.broadcast %812 : f32 to vector<8x8xf32>
    %814 = arith.mulf %807, %813 : vector<8x8xf32>
    %815 = arith.addf %798, %814 : vector<8x8xf32>
    %c51_161 = arith.constant 51 : index
    %816 = memref.load %arg8[%c51_161] : memref<72xf32, #tpu.memory_space<smem>>
    %817 = vector.broadcast %816 : f32 to vector<8x8xf32>
    %818 = arith.mulf %807, %817 : vector<8x8xf32>
    %819 = arith.addf %802, %818 : vector<8x8xf32>
    %c69_162 = arith.constant 69 : index
    %820 = memref.load %arg8[%c69_162] : memref<72xf32, #tpu.memory_space<smem>>
    %821 = vector.broadcast %820 : f32 to vector<8x8xf32>
    %822 = arith.mulf %807, %821 : vector<8x8xf32>
    %823 = arith.addf %806, %822 : vector<8x8xf32>
    %824 = vector.extract_strided_slice %704 {offsets = [2, 1], sizes = [8, 8], strides = [1, 1]} : vector<10x10xf32> to vector<8x8xf32>
    %c16_163 = arith.constant 16 : index
    %825 = memref.load %arg8[%c16_163] : memref<72xf32, #tpu.memory_space<smem>>
    %826 = vector.broadcast %825 : f32 to vector<8x8xf32>
    %827 = arith.mulf %824, %826 : vector<8x8xf32>
    %828 = arith.addf %811, %827 : vector<8x8xf32>
    %c34_164 = arith.constant 34 : index
    %829 = memref.load %arg8[%c34_164] : memref<72xf32, #tpu.memory_space<smem>>
    %830 = vector.broadcast %829 : f32 to vector<8x8xf32>
    %831 = arith.mulf %824, %830 : vector<8x8xf32>
    %832 = arith.addf %815, %831 : vector<8x8xf32>
    %c52_165 = arith.constant 52 : index
    %833 = memref.load %arg8[%c52_165] : memref<72xf32, #tpu.memory_space<smem>>
    %834 = vector.broadcast %833 : f32 to vector<8x8xf32>
    %835 = arith.mulf %824, %834 : vector<8x8xf32>
    %836 = arith.addf %819, %835 : vector<8x8xf32>
    %c70_166 = arith.constant 70 : index
    %837 = memref.load %arg8[%c70_166] : memref<72xf32, #tpu.memory_space<smem>>
    %838 = vector.broadcast %837 : f32 to vector<8x8xf32>
    %839 = arith.mulf %824, %838 : vector<8x8xf32>
    %840 = arith.addf %823, %839 : vector<8x8xf32>
    %841 = vector.extract_strided_slice %704 {offsets = [2, 2], sizes = [8, 8], strides = [1, 1]} : vector<10x10xf32> to vector<8x8xf32>
    %c17_167 = arith.constant 17 : index
    %842 = memref.load %arg8[%c17_167] : memref<72xf32, #tpu.memory_space<smem>>
    %843 = vector.broadcast %842 : f32 to vector<8x8xf32>
    %844 = arith.mulf %841, %843 : vector<8x8xf32>
    %845 = arith.addf %828, %844 : vector<8x8xf32>
    %c35_168 = arith.constant 35 : index
    %846 = memref.load %arg8[%c35_168] : memref<72xf32, #tpu.memory_space<smem>>
    %847 = vector.broadcast %846 : f32 to vector<8x8xf32>
    %848 = arith.mulf %841, %847 : vector<8x8xf32>
    %849 = arith.addf %832, %848 : vector<8x8xf32>
    %c53_169 = arith.constant 53 : index
    %850 = memref.load %arg8[%c53_169] : memref<72xf32, #tpu.memory_space<smem>>
    %851 = vector.broadcast %850 : f32 to vector<8x8xf32>
    %852 = arith.mulf %841, %851 : vector<8x8xf32>
    %853 = arith.addf %836, %852 : vector<8x8xf32>
    %c71_170 = arith.constant 71 : index
    %854 = memref.load %arg8[%c71_170] : memref<72xf32, #tpu.memory_space<smem>>
    %855 = vector.broadcast %854 : f32 to vector<8x8xf32>
    %856 = arith.mulf %841, %855 : vector<8x8xf32>
    %857 = arith.addf %840, %856 : vector<8x8xf32>
    %cst_171 = arith.constant dense<0.000000e+00> : vector<4x8xf32>
    %858 = tpu.matmul %2, %845, %cst_171 {dimension_numbers = #tpu.dot_dimension_numbers<[1], [0], [0], [1], [0, 0, 1, 1], [], []>} : vector<4x8xf32>, vector<8x8xf32>, vector<4x8xf32> -> vector<4x8xf32>
    %cst_172 = arith.constant dense<0.000000e+00> : vector<4x4xf32>
    %859 = tpu.matmul %858, %3, %cst_172 {dimension_numbers = #tpu.dot_dimension_numbers<[1], [0], [0], [1], [0, 0, 1, 1], [], []>} : vector<4x8xf32>, vector<8x4xf32>, vector<4x4xf32> -> vector<4x4xf32>
    %c0_173 = arith.constant 0 : index
    %860 = memref.load %arg9[%c0_173] : memref<4xf32, #tpu.memory_space<smem>>
    %861 = vector.broadcast %860 : f32 to vector<4x4xf32>
    %862 = arith.addf %859, %861 : vector<4x4xf32>
    %cst_174 = arith.constant 0.000000e+00 : f32
    %863 = vector.broadcast %cst_174 : f32 to vector<4x4xf32>
    %864 = arith.maximumf %862, %863 : vector<4x4xf32>
    %cst_175 = arith.constant dense<0.000000e+00> : vector<4x8xf32>
    %865 = tpu.matmul %2, %849, %cst_175 {dimension_numbers = #tpu.dot_dimension_numbers<[1], [0], [0], [1], [0, 0, 1, 1], [], []>} : vector<4x8xf32>, vector<8x8xf32>, vector<4x8xf32> -> vector<4x8xf32>
    %cst_176 = arith.constant dense<0.000000e+00> : vector<4x4xf32>
    %866 = tpu.matmul %865, %3, %cst_176 {dimension_numbers = #tpu.dot_dimension_numbers<[1], [0], [0], [1], [0, 0, 1, 1], [], []>} : vector<4x8xf32>, vector<8x4xf32>, vector<4x4xf32> -> vector<4x4xf32>
    %c1_177 = arith.constant 1 : index
    %867 = memref.load %arg9[%c1_177] : memref<4xf32, #tpu.memory_space<smem>>
    %868 = vector.broadcast %867 : f32 to vector<4x4xf32>
    %869 = arith.addf %866, %868 : vector<4x4xf32>
    %cst_178 = arith.constant 0.000000e+00 : f32
    %870 = vector.broadcast %cst_178 : f32 to vector<4x4xf32>
    %871 = arith.maximumf %869, %870 : vector<4x4xf32>
    %cst_179 = arith.constant dense<0.000000e+00> : vector<4x8xf32>
    %872 = tpu.matmul %2, %853, %cst_179 {dimension_numbers = #tpu.dot_dimension_numbers<[1], [0], [0], [1], [0, 0, 1, 1], [], []>} : vector<4x8xf32>, vector<8x8xf32>, vector<4x8xf32> -> vector<4x8xf32>
    %cst_180 = arith.constant dense<0.000000e+00> : vector<4x4xf32>
    %873 = tpu.matmul %872, %3, %cst_180 {dimension_numbers = #tpu.dot_dimension_numbers<[1], [0], [0], [1], [0, 0, 1, 1], [], []>} : vector<4x8xf32>, vector<8x4xf32>, vector<4x4xf32> -> vector<4x4xf32>
    %c2_181 = arith.constant 2 : index
    %874 = memref.load %arg9[%c2_181] : memref<4xf32, #tpu.memory_space<smem>>
    %875 = vector.broadcast %874 : f32 to vector<4x4xf32>
    %876 = arith.addf %873, %875 : vector<4x4xf32>
    %cst_182 = arith.constant 0.000000e+00 : f32
    %877 = vector.broadcast %cst_182 : f32 to vector<4x4xf32>
    %878 = arith.maximumf %876, %877 : vector<4x4xf32>
    %cst_183 = arith.constant dense<0.000000e+00> : vector<4x8xf32>
    %879 = tpu.matmul %2, %857, %cst_183 {dimension_numbers = #tpu.dot_dimension_numbers<[1], [0], [0], [1], [0, 0, 1, 1], [], []>} : vector<4x8xf32>, vector<8x8xf32>, vector<4x8xf32> -> vector<4x8xf32>
    %cst_184 = arith.constant dense<0.000000e+00> : vector<4x4xf32>
    %880 = tpu.matmul %879, %3, %cst_184 {dimension_numbers = #tpu.dot_dimension_numbers<[1], [0], [0], [1], [0, 0, 1, 1], [], []>} : vector<4x8xf32>, vector<8x4xf32>, vector<4x4xf32> -> vector<4x4xf32>
    %c3_185 = arith.constant 3 : index
    %881 = memref.load %arg9[%c3_185] : memref<4xf32, #tpu.memory_space<smem>>
    %882 = vector.broadcast %881 : f32 to vector<4x4xf32>
    %883 = arith.addf %880, %882 : vector<4x4xf32>
    %cst_186 = arith.constant 0.000000e+00 : f32
    %884 = vector.broadcast %cst_186 : f32 to vector<4x4xf32>
    %885 = arith.maximumf %883, %884 : vector<4x4xf32>
    %886 = vector.shape_cast %864 : vector<4x4xf32> to vector<1x4x4xf32>
    %887 = vector.shape_cast %871 : vector<4x4xf32> to vector<1x4x4xf32>
    %888 = vector.shape_cast %878 : vector<4x4xf32> to vector<1x4x4xf32>
    %889 = vector.shape_cast %885 : vector<4x4xf32> to vector<1x4x4xf32>
    %890 = tpu.concatenate %886, %887, %888, %889 in 0 : vector<1x4x4xf32>, vector<1x4x4xf32>, vector<1x4x4xf32>, vector<1x4x4xf32> -> vector<4x4x4xf32>
    %c1_187 = arith.constant 1 : index
    %c0_188 = arith.constant 0 : index
    %c0_189 = arith.constant 0 : index
    %c0_190 = arith.constant 0 : index
    %891 = vector.load %arg10[%c1_187, %c0_188, %c0_189, %c0_190] : memref<2x4x4x4xf32, #tpu.memory_space<vmem>>, vector<1x4x4x4xf32>
    %892 = vector.shape_cast %891 : vector<1x4x4x4xf32> to vector<4x4x4xf32>
    %893 = vector.shape_cast %890 : vector<4x4x4xf32> to vector<1x4x4x4xf32>
    tpu.vector_store %arg10[%c1_187, %c0_188, %c0_189, %c0_190], %893 {strides = array<i32>} : memref<2x4x4x4xf32, #tpu.memory_space<vmem>>, vector<1x4x4x4xf32>,
    return
  }
  func.func @transform_0(%arg0: i32) -> (i32, i32, i32, i32) {
    %c0_i32 = arith.constant 0 : i32
    %c0_i32_0 = arith.constant 0 : i32
    %c0_i32_1 = arith.constant 0 : i32
    %c0_i32_2 = arith.constant 0 : i32
    return %arg0, %c0_i32, %c0_i32_0, %c0_i32_1 : i32, i32, i32, i32
  }
  func.func @transform_1(%arg0: i32) -> (i32, i32) {
    %c0_i32 = arith.constant 0 : i32
    %c0_i32_0 = arith.constant 0 : i32
    %c0_i32_1 = arith.constant 0 : i32
    return %c0_i32, %c0_i32_0 : i32, i32
  }
  func.func @transform_2(%arg0: i32) -> (i32, i32) {
    %c0_i32 = arith.constant 0 : i32
    %c0_i32_0 = arith.constant 0 : i32
    %c0_i32_1 = arith.constant 0 : i32
    return %c0_i32, %c0_i32_0 : i32, i32
  }
  func.func @transform_3(%arg0: i32) -> (i32, i32) {
    %c0_i32 = arith.constant 0 : i32
    %c0_i32_0 = arith.constant 0 : i32
    %c0_i32_1 = arith.constant 0 : i32
    return %c0_i32, %c0_i32_0 : i32, i32
  }
  func.func @transform_4(%arg0: i32) -> (i32, i32) {
    %c0_i32 = arith.constant 0 : i32
    %c0_i32_0 = arith.constant 0 : i32
    %c0_i32_1 = arith.constant 0 : i32
    return %c0_i32, %c0_i32_0 : i32, i32
  }
  func.func @transform_5(%arg0: i32) -> i32 {
    %c0_i32 = arith.constant 0 : i32
    %c0_i32_0 = arith.constant 0 : i32
    return %c0_i32 : i32
  }
  func.func @transform_6(%arg0: i32) -> i32 {
    %c0_i32 = arith.constant 0 : i32
    %c0_i32_0 = arith.constant 0 : i32
    return %c0_i32 : i32
  }
  func.func @transform_7(%arg0: i32) -> i32 {
    %c0_i32 = arith.constant 0 : i32
    %c0_i32_0 = arith.constant 0 : i32
    return %c0_i32 : i32
  }
  func.func @transform_8(%arg0: i32) -> i32 {
    %c0_i32 = arith.constant 0 : i32
    %c0_i32_0 = arith.constant 0 : i32
    return %c0_i32 : i32
  }
  func.func @transform_9(%arg0: i32) -> (i32, i32, i32, i32) {
    %c0_i32 = arith.constant 0 : i32
    %c0_i32_0 = arith.constant 0 : i32
    %c0_i32_1 = arith.constant 0 : i32
    %c0_i32_2 = arith.constant 0 : i32
    return %arg0, %c0_i32, %c0_i32_0, %c0_i32_1 : i32, i32, i32, i32
  }
}

</mosaic_0001>

<llo_original>
// kernel: tpu_custom_call.1
$region0: #{tpu_custom_call.1}
  #allocation0 [shape = 'u32[]', space=smem, size = 0x4, offset = 0x4, fixed_abs, tag = 'smem constant byte address 0x4 - core index']
  #allocation1 [shape = 'u32[144,128]{1,0:T(1,128)}', space=vmem, size = 0x12000, scoped, tag = 'internal scratch']
  %s0 = inlined_call_operand.vmem [shape: f32[2,1,16,16], index: 0, kind: input, shape index: {}]
  %s1 = inlined_call_operand.hbm [shape: f32[8,16], index: 1, kind: input, shape index: {}]
  %s2 = inlined_call_operand.vmem [shape: f32[16,8], index: 2, kind: input, shape index: {}]
  %s3 = inlined_call_operand.hbm [shape: f32[4,8], index: 3, kind: input, shape index: {}]
  %s4 = inlined_call_operand.vmem [shape: f32[8,4], index: 4, kind: input, shape index: {}]
  %s5 = inlined_call_operand.vmem [shape: f32[18], index: 5, kind: input, shape index: {}]
  %s6 = inlined_call_operand.vmem [shape: f32[2], index: 6, kind: input, shape index: {}]
  %s7 = inlined_call_operand.vmem [shape: f32[72], index: 7, kind: input, shape index: {}]
  %s8 = inlined_call_operand.vmem [shape: f32[4], index: 8, kind: input, shape index: {}]
  %s9 = inlined_call_operand.hbm [shape: f32[2,4,4,4], index: 9, kind: output, shape index: {}]
  %s10 = sld [smem:[#allocation0]]
  $region70: #{tpu_custom_call.1} parent=0
    _
  %s12 = ssub.s32 1, %s10
  %s13 = scalar_select 0, %s12, %s10
  $region1: #{tpu_custom_call.1} parent=0
    #allocation2 [shape = 'u8[4096]{0}', space=vmem, size = 0x1000, scoped, tag = 'input window, operand 1, single buffered']
    #allocation3 [shape = 's32[1]{0}', space=sflag, size = 0x4, scoped, tag = 'scoped memory for tpu_custom_call.1']
    #allocation4 [shape = 's32[1]{0}', space=sflag, size = 0x4, scoped, tag = 'scoped memory for tpu_custom_call.1']
    #allocation5 [shape = 's32[1]{0}', space=sflag, size = 0x4, scoped, tag = 'scoped memory for tpu_custom_call.1']
    #allocation6 [shape = 'u8[2048]{0}', space=vmem, size = 0x800, scoped, tag = 'input window, operand 3, single buffered']
    #allocation7 [shape = 's32[1]{0}', space=sflag, size = 0x4, scoped, tag = 'scoped memory for tpu_custom_call.1']
    #allocation8 [shape = 'u8[512]{0}', space=smem, size = 0x200, scoped, tag = 'input window, operand 5, single buffered']
    #allocation9 [shape = 'u8[512]{0}', space=smem, size = 0x200, scoped, tag = 'input window, operand 6, single buffered']
    #allocation10 [shape = 's32[1]{0}', space=sflag, size = 0x4, scoped, tag = 'scoped memory for tpu_custom_call.1']
    #allocation11 [shape = 'u8[512]{0}', space=smem, size = 0x200, scoped, tag = 'input window, operand 7, single buffered']
    #allocation12 [shape = 'u8[512]{0}', space=smem, size = 0x200, scoped, tag = 'input window, operand 8, single buffered']
    #allocation13 [shape = 's32[1]{0}', space=sflag, size = 0x4, scoped, tag = 'scoped memory for tpu_custom_call.1']
    #allocation14 [shape = 'u8[16384]{0}', space=vmem, size = 0x4000, scoped, tag = 'output window, operand 0, single buffered']
    %14 = vsyncpa [#allocation3], 0
    %15 = vsyncpa [#allocation7], 0
    %16 = vsyncpa [#allocation5], 0
    %17 = vsyncpa [#allocation10], 0
    %18 = vsyncpa [#allocation13], 0
    %19 = vsyncpa [#allocation4], 0
    // Predicated region
    $region2: #{tpu_custom_call.1} parent=1 // pred_check
      _
    $region3: #{tpu_custom_call.1} parent=1 // pred_check_branch
      %21 = sbr.rel (0) target = $region5
    $region4: #{tpu_custom_call.1} parent=1 // pred_region
      _
    $region5: #{tpu_custom_call.1} parent=1 // pred_fallthru
      _
    // Predicated region
    $region6: #{tpu_custom_call.1} parent=1 // pred_check
      _
    $region7: #{tpu_custom_call.1} parent=1 // pred_check_branch
      %23 = sbr.rel (0) target = $region9
    $region8: #{tpu_custom_call.1} parent=1 // pred_region
      %s25 = ssub.s32 128, 128
      %26 = vsyncadd [#allocation3], %s25
      %s28 = sshll.u32 [#allocation2], 4
      %s29 = int_to_ptr.vmem [resolvable:$true] %s28
      %31 = dma.hbm_to_vmem [thread:$0]  %s1, 128, %s29, [#allocation3]
    $region9: #{tpu_custom_call.1} parent=1 // pred_fallthru
      _
    // Predicated region
    $region10: #{tpu_custom_call.1} parent=1 // pred_check
      _
    $region11: #{tpu_custom_call.1} parent=1 // pred_check_branch
      %33 = sbr.rel (0) target = $region13
    $region12: #{tpu_custom_call.1} parent=1 // pred_region
      _
    $region13: #{tpu_custom_call.1} parent=1 // pred_fallthru
      _
    // Predicated region
    $region14: #{tpu_custom_call.1} parent=1 // pred_check
      _
    $region15: #{tpu_custom_call.1} parent=1 // pred_check_branch
      %35 = sbr.rel (0) target = $region17
    $region16: #{tpu_custom_call.1} parent=1 // pred_region
      %s37 = ssub.s32 64, 64
      %38 = vsyncadd [#allocation7], %s37
      %s40 = sshll.u32 [#allocation6], 4
      %s41 = int_to_ptr.vmem [resolvable:$true] %s40
      %43 = dma.hbm_to_vmem [thread:$0]  %s3, 64, %s41, [#allocation7]
    $region17: #{tpu_custom_call.1} parent=1 // pred_fallthru
      _
    // Predicated region
    $region18: #{tpu_custom_call.1} parent=1 // pred_check
      _
    $region19: #{tpu_custom_call.1} parent=1 // pred_check_branch
      %45 = sbr.rel (0) target = $region21
    $region20: #{tpu_custom_call.1} parent=1 // pred_region
      _
    $region21: #{tpu_custom_call.1} parent=1 // pred_fallthru
      _
    // Predicated region
    $region22: #{tpu_custom_call.1} parent=1 // pred_check
      _
    $region23: #{tpu_custom_call.1} parent=1 // pred_check_branch
      %47 = sbr.rel (0) target = $region25
    $region24: #{tpu_custom_call.1} parent=1 // pred_region
      %s49 = ssub.s32 16, 16
      %50 = vsyncadd [#allocation5], %s49
      %s52 = sshll.u32 %s5, 4
      %s53 = int_to_ptr.vmem [resolvable:$true] %s52
      %55 = dma.vmem_to_smem %s53, 16, [#allocation8], [#allocation5]
    $region25: #{tpu_custom_call.1} parent=1 // pred_fallthru
      _
    // Predicated region
    $region26: #{tpu_custom_call.1} parent=1 // pred_check
      _
    $region27: #{tpu_custom_call.1} parent=1 // pred_check_branch
      %57 = sbr.rel (0) target = $region29
    $region28: #{tpu_custom_call.1} parent=1 // pred_region
      %s59 = ssub.s32 16, 16
      %60 = vsyncadd [#allocation10], %s59
      %s62 = sshll.u32 %s6, 4
      %s63 = int_to_ptr.vmem [resolvable:$true] %s62
      %65 = dma.vmem_to_smem %s63, 16, [#allocation9], [#allocation10]
    $region29: #{tpu_custom_call.1} parent=1 // pred_fallthru
      _
    // Predicated region
    $region30: #{tpu_custom_call.1} parent=1 // pred_check
      _
    $region31: #{tpu_custom_call.1} parent=1 // pred_check_branch
      %67 = sbr.rel (0) target = $region33
    $region32: #{tpu_custom_call.1} parent=1 // pred_region
      %s69 = ssub.s32 16, 16
      %70 = vsyncadd [#allocation10], %s69
      %s72 = sshll.u32 %s7, 4
      %s73 = int_to_ptr.vmem [resolvable:$true] %s72
      %75 = dma.vmem_to_smem %s73, 16, [#allocation11], [#allocation10]
    $region33: #{tpu_custom_call.1} parent=1 // pred_fallthru
      _
    // Predicated region
    $region34: #{tpu_custom_call.1} parent=1 // pred_check
      _
    $region35: #{tpu_custom_call.1} parent=1 // pred_check_branch
      %77 = sbr.rel (0) target = $region37
    $region36: #{tpu_custom_call.1} parent=1 // pred_region
      %s79 = ssub.s32 16, 16
      %80 = vsyncadd [#allocation13], %s79
      %s82 = sshll.u32 %s8, 4
      %s83 = int_to_ptr.vmem [resolvable:$true] %s82
      %85 = dma.vmem_to_smem %s83, 16, [#allocation12], [#allocation13]
    $region37: #{tpu_custom_call.1} parent=1 // pred_fallthru
      _
    // Predicated region
    $region38: #{tpu_custom_call.1} parent=1 // pred_check
      _
    $region39: #{tpu_custom_call.1} parent=1 // pred_check_branch
      %87 = sbr.rel (0) target = $region41
    $region40: #{tpu_custom_call.1} parent=1 // pred_region
      %88 = dma.done [#allocation3], 128
    $region41: #{tpu_custom_call.1} parent=1 // pred_fallthru
      _
    // Predicated region
    $region42: #{tpu_custom_call.1} parent=1 // pred_check
      _
    $region43: #{tpu_custom_call.1} parent=1 // pred_check_branch
      %90 = sbr.rel (0) target = $region45
    $region44: #{tpu_custom_call.1} parent=1 // pred_region
      %91 = dma.done [#allocation7], 64
    $region45: #{tpu_custom_call.1} parent=1 // pred_fallthru
      _
    // Predicated region
    $region46: #{tpu_custom_call.1} parent=1 // pred_check
      _
    $region47: #{tpu_custom_call.1} parent=1 // pred_check_branch
      %93 = sbr.rel (0) target = $region49
    $region48: #{tpu_custom_call.1} parent=1 // pred_region
      %94 = dma.done [#allocation5], 16
    $region49: #{tpu_custom_call.1} parent=1 // pred_fallthru
      _
    // Predicated region
    $region50: #{tpu_custom_call.1} parent=1 // pred_check
      _
    $region51: #{tpu_custom_call.1} parent=1 // pred_check_branch
      %96 = sbr.rel (0) target = $region53
    $region52: #{tpu_custom_call.1} parent=1 // pred_region
      %97 = dma.done [#allocation10], 16
    $region53: #{tpu_custom_call.1} parent=1 // pred_fallthru
      _
    // Predicated region
    $region54: #{tpu_custom_call.1} parent=1 // pred_check
      _
    $region55: #{tpu_custom_call.1} parent=1 // pred_check_branch
      %99 = sbr.rel (0) target = $region57
    $region56: #{tpu_custom_call.1} parent=1 // pred_region
      %100 = dma.done [#allocation10], 16
    $region57: #{tpu_custom_call.1} parent=1 // pred_fallthru
      _
    // Predicated region
    $region58: #{tpu_custom_call.1} parent=1 // pred_check
      _
    $region59: #{tpu_custom_call.1} parent=1 // pred_check_branch
      %102 = sbr.rel (0) target = $region61
    $region60: #{tpu_custom_call.1} parent=1 // pred_region
      %103 = dma.done [#allocation13], 16
    $region61: #{tpu_custom_call.1} parent=1 // pred_fallthru
      _
    %104 = sfence
    %v105 = vld [vmem:[#allocation2] sm:$0xff]
    %v106 = vld [vmem:[%s2] sm:$0xff]
    %v107 = vld [vmem:[%s2 + $0x8] sm:$0xff]
    %v108 = vld [vmem:[#allocation6] sm:$0xf]
    %v109 = vld [vmem:[%s4] sm:$0xff]
    %v110 = vld [vmem:[%s0] sm:$0xff]
    %v111 = vld [vmem:[%s0 + $0x8] sm:$0xff]
    %114 = vrot.lane.b32.xlu0 %v110, 1
    %v115 = vpop.permute.xlu0 %114
    %116 = vrot.lane.b32.xlu0 %v111, 1
    %v117 = vpop.permute.xlu0 %116
    %vm120 = vcmask 7168
    %v121 = vsel %vm120, 0.0, %v115
    %v122 = vsel %vm120, 0.0, %v117
    %vm123 = vcmask 138240
    %v124 = vsel %vm123, %v121, 0.0
    %v125 = vsel %vm123, %v122, 0.0
    %vm128 = vcmask 1040384
    %v129 = vrot.slane %v124, 7
    %v130 = vrot.slane %v125, 7
    %v131 = vsel %vm128, %v129, %v130
    %v135 = vsel %vm128, 0.0, %v129
    %v136 = vsel %vm128, %v130, 0.0
    %s137 = sld [smem:[#allocation8]]
    %v138 = vstv %s137
    %v139 = vmul.f32 %v135, %v138
    %v140 = vmul.f32 %v131, %v138
    %s141 = sld [smem:[#allocation8 + $0x9]]
    %v142 = vstv %s141
    %v143 = vmul.f32 %v135, %v142
    %v144 = vmul.f32 %v131, %v142
    %s145 = sld [smem:[#allocation8 + $0x1]]
    %v146 = vstv %s145
    %v147 = vmul.f32 %v135, %v146
    %v148 = vmul.f32 %v131, %v146
    %151 = vrot.lane.b32.xlu0 %v147, 127
    %v152 = vpop.permute.xlu0 %151
    %153 = vrot.lane.b32.xlu0 %v148, 127
    %v154 = vpop.permute.xlu0 %153
    %v157 = vadd.f32 %v139, %v152
    %v158 = vadd.f32 %v140, %v154
    %s159 = sld [smem:[#allocation8 + $0xa]]
    %v160 = vstv %s159
    %v161 = vmul.f32 %v135, %v160
    %v162 = vmul.f32 %v131, %v160
    %165 = vrot.lane.b32.xlu0 %v161, 127
    %v166 = vpop.permute.xlu0 %165
    %167 = vrot.lane.b32.xlu0 %v162, 127
    %v168 = vpop.permute.xlu0 %167
    %v171 = vadd.f32 %v143, %v166
    %v172 = vadd.f32 %v144, %v168
    %s173 = sld [smem:[#allocation8 + $0x2]]
    %v174 = vstv %s173
    %v175 = vmul.f32 %v135, %v174
    %v176 = vmul.f32 %v131, %v174
    %179 = vrot.lane.b32.xlu0 %v175, 126
    %v180 = vpop.permute.xlu0 %179
    %181 = vrot.lane.b32.xlu0 %v176, 126
    %v182 = vpop.permute.xlu0 %181
    %v185 = vadd.f32 %v157, %v180
    %v186 = vadd.f32 %v158, %v182
    %s187 = sld [smem:[#allocation8 + $0xb]]
    %v188 = vstv %s187
    %v189 = vmul.f32 %v135, %v188
    %v190 = vmul.f32 %v131, %v188
    %193 = vrot.lane.b32.xlu0 %v189, 126
    %v194 = vpop.permute.xlu0 %193
    %195 = vrot.lane.b32.xlu0 %v190, 126
    %v196 = vpop.permute.xlu0 %195
    %v199 = vadd.f32 %v171, %v194
    %v200 = vadd.f32 %v172, %v196
    %s201 = sld [smem:[#allocation8 + $0x3]]
    %v202 = vstv %s201
    %v203 = vmul.f32 %v135, %v202
    %v204 = vmul.f32 %v131, %v202
    %v205 = vmul.f32 %v136, %v202
    %vm209 = vcmask 1046528
    %v210 = vrot.slane %v203, 1
    %v211 = vrot.slane %v204, 1
    %v212 = vsel %vm209, %v210, %v211
    %v213 = vrot.slane %v205, 1
    %v214 = vsel %vm209, %v211, %v213
    %v217 = vadd.f32 %v185, %v212
    %v218 = vadd.f32 %v186, %v214
    %s219 = sld [smem:[#allocation8 + $0xc]]
    %v220 = vstv %s219
    %v221 = vmul.f32 %v135, %v220
    %v222 = vmul.f32 %v131, %v220
    %v223 = vmul.f32 %v136, %v220
    %v227 = vrot.slane %v221, 1
    %v228 = vrot.slane %v222, 1
    %v229 = vsel %vm209, %v227, %v228
    %v230 = vrot.slane %v223, 1
    %v231 = vsel %vm209, %v228, %v230
    %v234 = vadd.f32 %v199, %v229
    %v235 = vadd.f32 %v200, %v231
    %s236 = sld [smem:[#allocation8 + $0x4]]
    %v237 = vstv %s236
    %v238 = vmul.f32 %v135, %v237
    %v239 = vmul.f32 %v131, %v237
    %v240 = vmul.f32 %v136, %v237
    %v244 = vrot.slane %v238, 1
    %v245 = vrot.slane %v239, 1
    %v246 = vsel %vm209, %v244, %v245
    %v247 = vrot.slane %v240, 1
    %v248 = vsel %vm209, %v245, %v247
    %249 = vrot.lane.b32.xlu0 %v246, 127
    %v250 = vpop.permute.xlu0 %249
    %251 = vrot.lane.b32.xlu0 %v248, 127
    %v252 = vpop.permute.xlu0 %251
    %v255 = vadd.f32 %v217, %v250
    %v256 = vadd.f32 %v218, %v252
    %s257 = sld [smem:[#allocation8 + $0xd]]
    %v258 = vstv %s257
    %v259 = vmul.f32 %v135, %v258
    %v260 = vmul.f32 %v131, %v258
    %v261 = vmul.f32 %v136, %v258
    %v265 = vrot.slane %v259, 1
    %v266 = vrot.slane %v260, 1
    %v267 = vsel %vm209, %v265, %v266
    %v268 = vrot.slane %v261, 1
    %v269 = vsel %vm209, %v266, %v268
    %270 = vrot.lane.b32.xlu0 %v267, 127
    %v271 = vpop.permute.xlu0 %270
    %272 = vrot.lane.b32.xlu0 %v269, 127
    %v273 = vpop.permute.xlu0 %272
    %v276 = vadd.f32 %v234, %v271
    %v277 = vadd.f32 %v235, %v273
    %s278 = sld [smem:[#allocation8 + $0x5]]
    %v279 = vstv %s278
    %v280 = vmul.f32 %v135, %v279
    %v281 = vmul.f32 %v131, %v279
    %v282 = vmul.f32 %v136, %v279
    %v286 = vrot.slane %v280, 1
    %v287 = vrot.slane %v281, 1
    %v288 = vsel %vm209, %v286, %v287
    %v289 = vrot.slane %v282, 1
    %v290 = vsel %vm209, %v287, %v289
    %291 = vrot.lane.b32.xlu0 %v288, 126
    %v292 = vpop.permute.xlu0 %291
    %293 = vrot.lane.b32.xlu0 %v290, 126
    %v294 = vpop.permute.xlu0 %293
    %v297 = vadd.f32 %v255, %v292
    %v298 = vadd.f32 %v256, %v294
    %s299 = sld [smem:[#allocation8 + $0xe]]
    %v300 = vstv %s299
    %v301 = vmul.f32 %v135, %v300
    %v302 = vmul.f32 %v131, %v300
    %v303 = vmul.f32 %v136, %v300
    %v307 = vrot.slane %v301, 1
    %v308 = vrot.slane %v302, 1
    %v309 = vsel %vm209, %v307, %v308
    %v310 = vrot.slane %v303, 1
    %v311 = vsel %vm209, %v308, %v310
    %312 = vrot.lane.b32.xlu0 %v309, 126
    %v313 = vpop.permute.xlu0 %312
    %314 = vrot.lane.b32.xlu0 %v311, 126
    %v315 = vpop.permute.xlu0 %314
    %v318 = vadd.f32 %v276, %v313
    %v319 = vadd.f32 %v277, %v315
    %s320 = sld [smem:[#allocation8 + $0x6]]
    %v321 = vstv %s320
    %v322 = vmul.f32 %v135, %v321
    %v323 = vmul.f32 %v131, %v321
    %v324 = vmul.f32 %v136, %v321
    %vm328 = vcmask 1045504
    %v329 = vrot.slane %v322, 2
    %v330 = vrot.slane %v323, 2
    %v331 = vsel %vm328, %v329, %v330
    %v332 = vrot.slane %v324, 2
    %v333 = vsel %vm328, %v330, %v332
    %v336 = vadd.f32 %v297, %v331
    %v337 = vadd.f32 %v298, %v333
    %s338 = sld [smem:[#allocation8 + $0xf]]
    %v339 = vstv %s338
    %v340 = vmul.f32 %v135, %v339
    %v341 = vmul.f32 %v131, %v339
    %v342 = vmul.f32 %v136, %v339
    %v346 = vrot.slane %v340, 2
    %v347 = vrot.slane %v341, 2
    %v348 = vsel %vm328, %v346, %v347
    %v349 = vrot.slane %v342, 2
    %v350 = vsel %vm328, %v347, %v349
    %v353 = vadd.f32 %v318, %v348
    %v354 = vadd.f32 %v319, %v350
    %s355 = sld [smem:[#allocation8 + $0x7]]
    %v356 = vstv %s355
    %v357 = vmul.f32 %v135, %v356
    %v358 = vmul.f32 %v131, %v356
    %v359 = vmul.f32 %v136, %v356
    %v363 = vrot.slane %v357, 2
    %v364 = vrot.slane %v358, 2
    %v365 = vsel %vm328, %v363, %v364
    %v366 = vrot.slane %v359, 2
    %v367 = vsel %vm328, %v364, %v366
    %368 = vrot.lane.b32.xlu0 %v365, 127
    %v369 = vpop.permute.xlu0 %368
    %370 = vrot.lane.b32.xlu0 %v367, 127
    %v371 = vpop.permute.xlu0 %370
    %v374 = vadd.f32 %v336, %v369
    %v375 = vadd.f32 %v337, %v371
    %s376 = sld [smem:[#allocation8 + $0x10]]
    %v377 = vstv %s376
    %v378 = vmul.f32 %v135, %v377
    %v379 = vmul.f32 %v131, %v377
    %v380 = vmul.f32 %v136, %v377
    %v384 = vrot.slane %v378, 2
    %v385 = vrot.slane %v379, 2
    %v386 = vsel %vm328, %v384, %v385
    %v387 = vrot.slane %v380, 2
    %v388 = vsel %vm328, %v385, %v387
    %389 = vrot.lane.b32.xlu0 %v386, 127
    %v390 = vpop.permute.xlu0 %389
    %391 = vrot.lane.b32.xlu0 %v388, 127
    %v392 = vpop.permute.xlu0 %391
    %v395 = vadd.f32 %v353, %v390
    %v396 = vadd.f32 %v354, %v392
    %s397 = sld [smem:[#allocation8 + $0x8]]
    %v398 = vstv %s397
    %v399 = vmul.f32 %v135, %v398
    %v400 = vmul.f32 %v131, %v398
    %v401 = vmul.f32 %v136, %v398
    %v405 = vrot.slane %v399, 2
    %v406 = vrot.slane %v400, 2
    %v407 = vsel %vm328, %v405, %v406
    %v408 = vrot.slane %v401, 2
    %v409 = vsel %vm328, %v406, %v408
    %410 = vrot.lane.b32.xlu0 %v407, 126
    %v411 = vpop.permute.xlu0 %410
    %412 = vrot.lane.b32.xlu0 %v409, 126
    %v413 = vpop.permute.xlu0 %412
    %v416 = vadd.f32 %v374, %v411
    %v417 = vadd.f32 %v375, %v413
    %s418 = sld [smem:[#allocation8 + $0x11]]
    %v419 = vstv %s418
    %v420 = vmul.f32 %v135, %v419
    %v421 = vmul.f32 %v131, %v419
    %v422 = vmul.f32 %v136, %v419
    %v426 = vrot.slane %v420, 2
    %v427 = vrot.slane %v421, 2
    %v428 = vsel %vm328, %v426, %v427
    %v429 = vrot.slane %v422, 2
    %v430 = vsel %vm328, %v427, %v429
    %431 = vrot.lane.b32.xlu0 %v428, 126
    %v432 = vpop.permute.xlu0 %431
    %433 = vrot.lane.b32.xlu0 %v430, 126
    %v434 = vpop.permute.xlu0 %433
    %v437 = vadd.f32 %v395, %v432
    %v438 = vadd.f32 %v396, %v434
    %vm439 = vcmask 130048
    %v441 = vsel %vm439, %v105, 0
    %443 = vmatprep.subr.mxu0 0.0
    %444 = vmatpush1.msra.mxu0 %v416
    %445 = vmatprep.subr.mxu0 0.0
    %446 = vmatpush1.msra.mxu0 %v417
    %447 = vmatprep.subr.mxu0 0.0
    %448 = vmatpush1.msra.mxu0 0.0
    %449 = vmatprep.subr.mxu0 0.0
    %450 = vmatpush1.msra.mxu0 0.0
    %451 = vmatprep.subr.mxu0 0.0
    %452 = vmatpush1.msra.mxu0 0.0
    %453 = vmatprep.subr.mxu0 0.0
    %454 = vmatpush1.msra.mxu0 0.0
    %455 = vmatprep.subr.mxu0 0.0
    %456 = vmatpush1.msra.mxu0 0.0
    %457 = vmatprep.subr.mxu0 0.0
    %458 = vmatpush1.msra.mxu0 0.0
    %459 = vmatprep.subr.mxu0 0.0
    %460 = vmatpush1.msra.mxu0 0.0
    %461 = vmatprep.subr.mxu0 0.0
    %462 = vmatpush1.msra.mxu0 0.0
    %463 = vmatprep.subr.mxu0 0.0
    %464 = vmatpush1.msra.mxu0 0.0
    %465 = vmatprep.subr.mxu0 0.0
    %466 = vmatpush1.msra.mxu0 0.0
    %467 = vmatprep.subr.mxu0 0.0
    %468 = vmatpush1.msra.mxu0 0.0
    %469 = vmatprep.subr.mxu0 0.0
    %470 = vmatpush1.msra.mxu0 0.0
    %471 = vmatprep.subr.mxu0 0.0
    %472 = vmatpush1.msra.mxu0 0.0
    %473 = vmatprep.subr.mxu0 0.0
    %474 = vmatpush1.msra.mxu0 0.0
    %475 = vmatprep.subr.mxu0 0.0
    %476 = vmatpush1.msra.mxu0 0.0
    %477 = vmatprep.subr.mxu0 0.0
    %478 = vmatpush1.msra.mxu0 0.0
    %479 = vmatprep.subr.mxu0 0.0
    %480 = vmatpush1.msra.mxu0 0.0
    %481 = vmatprep.subr.mxu0 0.0
    %482 = vmatpush1.msra.mxu0 0.0
    %483 = vmatprep.subr.mxu0 0.0
    %484 = vmatpush1.msra.mxu0 0.0
    %485 = vmatprep.subr.mxu0 0.0
    %486 = vmatpush1.msra.mxu0 0.0
    %487 = vmatprep.subr.mxu0 0.0
    %488 = vmatpush1.msra.mxu0 0.0
    %489 = vmatprep.subr.mxu0 0.0
    %490 = vmatpush1.msra.mxu0 0.0
    %491 = vmatprep.subr.mxu0 0.0
    %492 = vmatpush1.msra.mxu0 0.0
    %493 = vmatprep.subr.mxu0 0.0
    %494 = vmatpush1.msra.mxu0 0.0
    %495 = vmatprep.subr.mxu0 0.0
    %496 = vmatpush1.msra.mxu0 0.0
    %497 = vmatprep.subr.mxu0 0.0
    %498 = vmatpush1.msra.mxu0 0.0
    %499 = vmatprep.subr.mxu0 0.0
    %500 = vmatpush1.msra.mxu0 0.0
    %501 = vmatprep.subr.mxu0 0.0
    %502 = vmatpush1.msra.mxu0 0.0
    %503 = vmatprep.subr.mxu0 0.0
    %504 = vmatpush1.msra.mxu0 0.0
    %505 = vmatprep.subr.mxu0 0.0
    %506 = vmatpush1.msra.mxu0 0.0
    %507 = vmatprep.mubr.f32.mxu0 0.0
    %508 = vmatmul.mubr.f32.gmra.mrb[0].mxu0 %v441
    %v509 = vpop.f32.mrb[0].mxu0
    %v510 = vadd.f32 0.0, %v509
    %v511 = vpop.f32.mrb[0].mxu0
    %512 = vdwg.mxu0
    %s513 = sld [smem:[#allocation9]]
    %v514 = vstv %s513
    %v516 = vsel %vm439, %v510, 0
    %518 = vmatprep.subr.mxu0 0.0
    %519 = vmatpush1.msra.mxu0 %v106
    %520 = vmatprep.subr.mxu0 0.0
    %521 = vmatpush1.msra.mxu0 %v107
    %522 = vmatprep.subr.mxu0 0.0
    %523 = vmatpush1.msra.mxu0 0.0
    %524 = vmatprep.subr.mxu0 0.0
    %525 = vmatpush1.msra.mxu0 0.0
    %526 = vmatprep.subr.mxu0 0.0
    %527 = vmatpush1.msra.mxu0 0.0
    %528 = vmatprep.subr.mxu0 0.0
    %529 = vmatpush1.msra.mxu0 0.0
    %530 = vmatprep.subr.mxu0 0.0
    %531 = vmatpush1.msra.mxu0 0.0
    %532 = vmatprep.subr.mxu0 0.0
    %533 = vmatpush1.msra.mxu0 0.0
    %534 = vmatprep.subr.mxu0 0.0
    %535 = vmatpush1.msra.mxu0 0.0
    %536 = vmatprep.subr.mxu0 0.0
    %537 = vmatpush1.msra.mxu0 0.0
    %538 = vmatprep.subr.mxu0 0.0
    %539 = vmatpush1.msra.mxu0 0.0
    %540 = vmatprep.subr.mxu0 0.0
    %541 = vmatpush1.msra.mxu0 0.0
    %542 = vmatprep.subr.mxu0 0.0
    %543 = vmatpush1.msra.mxu0 0.0
    %544 = vmatprep.subr.mxu0 0.0
    %545 = vmatpush1.msra.mxu0 0.0
    %546 = vmatprep.subr.mxu0 0.0
    %547 = vmatpush1.msra.mxu0 0.0
    %548 = vmatprep.subr.mxu0 0.0
    %549 = vmatpush1.msra.mxu0 0.0
    %550 = vmatprep.subr.mxu0 0.0
    %551 = vmatpush1.msra.mxu0 0.0
    %552 = vmatprep.subr.mxu0 0.0
    %553 = vmatpush1.msra.mxu0 0.0
    %554 = vmatprep.subr.mxu0 0.0
    %555 = vmatpush1.msra.mxu0 0.0
    %556 = vmatprep.subr.mxu0 0.0
    %557 = vmatpush1.msra.mxu0 0.0
    %558 = vmatprep.subr.mxu0 0.0
    %559 = vmatpush1.msra.mxu0 0.0
    %560 = vmatprep.subr.mxu0 0.0
    %561 = vmatpush1.msra.mxu0 0.0
    %562 = vmatprep.subr.mxu0 0.0
    %563 = vmatpush1.msra.mxu0 0.0
    %564 = vmatprep.subr.mxu0 0.0
    %565 = vmatpush1.msra.mxu0 0.0
    %566 = vmatprep.subr.mxu0 0.0
    %567 = vmatpush1.msra.mxu0 0.0
    %568 = vmatprep.subr.mxu0 0.0
    %569 = vmatpush1.msra.mxu0 0.0
    %570 = vmatprep.subr.mxu0 0.0
    %571 = vmatpush1.msra.mxu0 0.0
    %572 = vmatprep.subr.mxu0 0.0
    %573 = vmatpush1.msra.mxu0 0.0
    %574 = vmatprep.subr.mxu0 0.0
    %575 = vmatpush1.msra.mxu0 0.0
    %576 = vmatprep.subr.mxu0 0.0
    %577 = vmatpush1.msra.mxu0 0.0
    %578 = vmatprep.subr.mxu0 0.0
    %579 = vmatpush1.msra.mxu0 0.0
    %580 = vmatprep.subr.mxu0 0.0
    %581 = vmatpush1.msra.mxu0 0.0
    %582 = vmatprep.mubr.f32.mxu0 0.0
    %583 = vmatmul.mubr.f32.gmra.mrb[0].mxu0 %v516
    %v584 = vpop.f32.mrb[0].mxu0
    %v585 = vadd.f32 %v514, %v584
    %v586 = vpop.f32.mrb[0].mxu0
    %587 = vdwg.mxu0
    %v588 = vmax.f32 %v585, 0.0
    %589 = vmatprep.subr.mxu0 0.0
    %590 = vmatpush1.msra.mxu0 %v437
    %591 = vmatprep.subr.mxu0 0.0
    %592 = vmatpush1.msra.mxu0 %v438
    %593 = vmatprep.subr.mxu0 0.0
    %594 = vmatpush1.msra.mxu0 0.0
    %595 = vmatprep.subr.mxu0 0.0
    %596 = vmatpush1.msra.mxu0 0.0
    %597 = vmatprep.subr.mxu0 0.0
    %598 = vmatpush1.msra.mxu0 0.0
    %599 = vmatprep.subr.mxu0 0.0
    %600 = vmatpush1.msra.mxu0 0.0
    %601 = vmatprep.subr.mxu0 0.0
    %602 = vmatpush1.msra.mxu0 0.0
    %603 = vmatprep.subr.mxu0 0.0
    %604 = vmatpush1.msra.mxu0 0.0
    %605 = vmatprep.subr.mxu0 0.0
    %606 = vmatpush1.msra.mxu0 0.0
    %607 = vmatprep.subr.mxu0 0.0
    %608 = vmatpush1.msra.mxu0 0.0
    %609 = vmatprep.subr.mxu0 0.0
    %610 = vmatpush1.msra.mxu0 0.0
    %611 = vmatprep.subr.mxu0 0.0
    %612 = vmatpush1.msra.mxu0 0.0
    %613 = vmatprep.subr.mxu0 0.0
    %614 = vmatpush1.msra.mxu0 0.0
    %615 = vmatprep.subr.mxu0 0.0
    %616 = vmatpush1.msra.mxu0 0.0
    %617 = vmatprep.subr.mxu0 0.0
    %618 = vmatpush1.msra.mxu0 0.0
    %619 = vmatprep.subr.mxu0 0.0
    %620 = vmatpush1.msra.mxu0 0.0
    %621 = vmatprep.subr.mxu0 0.0
    %622 = vmatpush1.msra.mxu0 0.0
    %623 = vmatprep.subr.mxu0 0.0
    %624 = vmatpush1.msra.mxu0 0.0
    %625 = vmatprep.subr.mxu0 0.0
    %626 = vmatpush1.msra.mxu0 0.0
    %627 = vmatprep.subr.mxu0 0.0
    %628 = vmatpush1.msra.mxu0 0.0
    %629 = vmatprep.subr.mxu0 0.0
    %630 = vmatpush1.msra.mxu0 0.0
    %631 = vmatprep.subr.mxu0 0.0
    %632 = vmatpush1.msra.mxu0 0.0
    %633 = vmatprep.subr.mxu0 0.0
    %634 = vmatpush1.msra.mxu0 0.0
    %635 = vmatprep.subr.mxu0 0.0
    %636 = vmatpush1.msra.mxu0 0.0
    %637 = vmatprep.subr.mxu0 0.0
    %638 = vmatpush1.msra.mxu0 0.0
    %639 = vmatprep.subr.mxu0 0.0
    %640 = vmatpush1.msra.mxu0 0.0
    %641 = vmatprep.subr.mxu0 0.0
    %642 = vmatpush1.msra.mxu0 0.0
    %643 = vmatprep.subr.mxu0 0.0
    %644 = vmatpush1.msra.mxu0 0.0
    %645 = vmatprep.subr.mxu0 0.0
    %646 = vmatpush1.msra.mxu0 0.0
    %647 = vmatprep.subr.mxu0 0.0
    %648 = vmatpush1.msra.mxu0 0.0
    %649 = vmatprep.subr.mxu0 0.0
    %650 = vmatpush1.msra.mxu0 0.0
    %651 = vmatprep.subr.mxu0 0.0
    %652 = vmatpush1.msra.mxu0 0.0
    %653 = vmatprep.mubr.f32.mxu0 0.0
    %654 = vmatmul.mubr.f32.gmra.mrb[0].mxu0 %v441
    %v655 = vpop.f32.mrb[0].mxu0
    %v656 = vadd.f32 0.0, %v655
    %v657 = vpop.f32.mrb[0].mxu0
    %658 = vdwg.mxu0
    %s659 = sld [smem:[#allocation9 + $0x1]]
    %v660 = vstv %s659
    %v662 = vsel %vm439, %v656, 0
    %664 = vmatprep.subr.mxu0 0.0
    %665 = vmatpush1.msra.mxu0 %v106
    %666 = vmatprep.subr.mxu0 0.0
    %667 = vmatpush1.msra.mxu0 %v107
    %668 = vmatprep.subr.mxu0 0.0
    %669 = vmatpush1.msra.mxu0 0.0
    %670 = vmatprep.subr.mxu0 0.0
    %671 = vmatpush1.msra.mxu0 0.0
    %672 = vmatprep.subr.mxu0 0.0
    %673 = vmatpush1.msra.mxu0 0.0
    %674 = vmatprep.subr.mxu0 0.0
    %675 = vmatpush1.msra.mxu0 0.0
    %676 = vmatprep.subr.mxu0 0.0
    %677 = vmatpush1.msra.mxu0 0.0
    %678 = vmatprep.subr.mxu0 0.0
    %679 = vmatpush1.msra.mxu0 0.0
    %680 = vmatprep.subr.mxu0 0.0
    %681 = vmatpush1.msra.mxu0 0.0
    %682 = vmatprep.subr.mxu0 0.0
    %683 = vmatpush1.msra.mxu0 0.0
    %684 = vmatprep.subr.mxu0 0.0
    %685 = vmatpush1.msra.mxu0 0.0
    %686 = vmatprep.subr.mxu0 0.0
    %687 = vmatpush1.msra.mxu0 0.0
    %688 = vmatprep.subr.mxu0 0.0
    %689 = vmatpush1.msra.mxu0 0.0
    %690 = vmatprep.subr.mxu0 0.0
    %691 = vmatpush1.msra.mxu0 0.0
    %692 = vmatprep.subr.mxu0 0.0
    %693 = vmatpush1.msra.mxu0 0.0
    %694 = vmatprep.subr.mxu0 0.0
    %695 = vmatpush1.msra.mxu0 0.0
    %696 = vmatprep.subr.mxu0 0.0
    %697 = vmatpush1.msra.mxu0 0.0
    %698 = vmatprep.subr.mxu0 0.0
    %699 = vmatpush1.msra.mxu0 0.0
    %700 = vmatprep.subr.mxu0 0.0
    %701 = vmatpush1.msra.mxu0 0.0
    %702 = vmatprep.subr.mxu0 0.0
    %703 = vmatpush1.msra.mxu0 0.0
    %704 = vmatprep.subr.mxu0 0.0
    %705 = vmatpush1.msra.mxu0 0.0
    %706 = vmatprep.subr.mxu0 0.0
    %707 = vmatpush1.msra.mxu0 0.0
    %708 = vmatprep.subr.mxu0 0.0
    %709 = vmatpush1.msra.mxu0 0.0
    %710 = vmatprep.subr.mxu0 0.0
    %711 = vmatpush1.msra.mxu0 0.0
    %712 = vmatprep.subr.mxu0 0.0
    %713 = vmatpush1.msra.mxu0 0.0
    %714 = vmatprep.subr.mxu0 0.0
    %715 = vmatpush1.msra.mxu0 0.0
    %716 = vmatprep.subr.mxu0 0.0
    %717 = vmatpush1.msra.mxu0 0.0
    %718 = vmatprep.subr.mxu0 0.0
    %719 = vmatpush1.msra.mxu0 0.0
    %720 = vmatprep.subr.mxu0 0.0
    %721 = vmatpush1.msra.mxu0 0.0
    %722 = vmatprep.subr.mxu0 0.0
    %723 = vmatpush1.msra.mxu0 0.0
    %724 = vmatprep.subr.mxu0 0.0
    %725 = vmatpush1.msra.mxu0 0.0
    %726 = vmatprep.subr.mxu0 0.0
    %727 = vmatpush1.msra.mxu0 0.0
    %728 = vmatprep.mubr.f32.mxu0 0.0
    %729 = vmatmul.mubr.f32.gmra.mrb[0].mxu0 %v662
    %v730 = vpop.f32.mrb[0].mxu0
    %v731 = vadd.f32 %v660, %v730
    %v732 = vpop.f32.mrb[0].mxu0
    %733 = vdwg.mxu0
    %v734 = vmax.f32 %v731, 0.0
    %736 = vrot.lane.b32.xlu0 %v588, 1
    %v737 = vpop.permute.xlu0 %736
    %v739 = vsel %vm120, 0.0, %v737
    %vm740 = vcmask 72704
    %v741 = vsel %vm740, %v739, 0.0
    %v743 = vrot.slane %v741, 7
    %v745 = vsel %vm128, 0.0, %v743
    %v746 = vsel %vm128, %v743, 0.0
    %s747 = sld [smem:[#allocation11]]
    %v748 = vstv %s747
    %v749 = vmul.f32 %v745, %v748
    %s750 = sld [smem:[#allocation11 + $0x12]]
    %v751 = vstv %s750
    %v752 = vmul.f32 %v745, %v751
    %s753 = sld [smem:[#allocation11 + $0x24]]
    %v754 = vstv %s753
    %v755 = vmul.f32 %v745, %v754
    %s756 = sld [smem:[#allocation11 + $0x36]]
    %v757 = vstv %s756
    %v758 = vmul.f32 %v745, %v757
    %s759 = sld [smem:[#allocation11 + $0x1]]
    %v760 = vstv %s759
    %v761 = vmul.f32 %v745, %v760
    %763 = vrot.lane.b32.xlu0 %v761, 127
    %v764 = vpop.permute.xlu0 %763
    %v766 = vadd.f32 %v749, %v764
    %s767 = sld [smem:[#allocation11 + $0x13]]
    %v768 = vstv %s767
    %v769 = vmul.f32 %v745, %v768
    %771 = vrot.lane.b32.xlu0 %v769, 127
    %v772 = vpop.permute.xlu0 %771
    %v774 = vadd.f32 %v752, %v772
    %s775 = sld [smem:[#allocation11 + $0x25]]
    %v776 = vstv %s775
    %v777 = vmul.f32 %v745, %v776
    %779 = vrot.lane.b32.xlu0 %v777, 127
    %v780 = vpop.permute.xlu0 %779
    %v782 = vadd.f32 %v755, %v780
    %s783 = sld [smem:[#allocation11 + $0x37]]
    %v784 = vstv %s783
    %v785 = vmul.f32 %v745, %v784
    %787 = vrot.lane.b32.xlu0 %v785, 127
    %v788 = vpop.permute.xlu0 %787
    %v790 = vadd.f32 %v758, %v788
    %s791 = sld [smem:[#allocation11 + $0x2]]
    %v792 = vstv %s791
    %v793 = vmul.f32 %v745, %v792
    %795 = vrot.lane.b32.xlu0 %v793, 126
    %v796 = vpop.permute.xlu0 %795
    %v798 = vadd.f32 %v766, %v796
    %s799 = sld [smem:[#allocation11 + $0x14]]
    %v800 = vstv %s799
    %v801 = vmul.f32 %v745, %v800
    %803 = vrot.lane.b32.xlu0 %v801, 126
    %v804 = vpop.permute.xlu0 %803
    %v806 = vadd.f32 %v774, %v804
    %s807 = sld [smem:[#allocation11 + $0x26]]
    %v808 = vstv %s807
    %v809 = vmul.f32 %v745, %v808
    %811 = vrot.lane.b32.xlu0 %v809, 126
    %v812 = vpop.permute.xlu0 %811
    %v814 = vadd.f32 %v782, %v812
    %s815 = sld [smem:[#allocation11 + $0x38]]
    %v816 = vstv %s815
    %v817 = vmul.f32 %v745, %v816
    %819 = vrot.lane.b32.xlu0 %v817, 126
    %v820 = vpop.permute.xlu0 %819
    %v822 = vadd.f32 %v790, %v820
    %s823 = sld [smem:[#allocation11 + $0x3]]
    %v824 = vstv %s823
    %v825 = vmul.f32 %v745, %v824
    %v826 = vmul.f32 %v746, %v824
    %v829 = vrot.slane %v825, 1
    %v830 = vrot.slane %v826, 1
    %v831 = vsel %vm209, %v829, %v830
    %v833 = vadd.f32 %v798, %v831
    %s834 = sld [smem:[#allocation11 + $0x15]]
    %v835 = vstv %s834
    %v836 = vmul.f32 %v745, %v835
    %v837 = vmul.f32 %v746, %v835
    %v840 = vrot.slane %v836, 1
    %v841 = vrot.slane %v837, 1
    %v842 = vsel %vm209, %v840, %v841
    %v844 = vadd.f32 %v806, %v842
    %s845 = sld [smem:[#allocation11 + $0x27]]
    %v846 = vstv %s845
    %v847 = vmul.f32 %v745, %v846
    %v848 = vmul.f32 %v746, %v846
    %v851 = vrot.slane %v847, 1
    %v852 = vrot.slane %v848, 1
    %v853 = vsel %vm209, %v851, %v852
    %v855 = vadd.f32 %v814, %v853
    %s856 = sld [smem:[#allocation11 + $0x39]]
    %v857 = vstv %s856
    %v858 = vmul.f32 %v745, %v857
    %v859 = vmul.f32 %v746, %v857
    %v862 = vrot.slane %v858, 1
    %v863 = vrot.slane %v859, 1
    %v864 = vsel %vm209, %v862, %v863
    %v866 = vadd.f32 %v822, %v864
    %s867 = sld [smem:[#allocation11 + $0x4]]
    %v868 = vstv %s867
    %v869 = vmul.f32 %v745, %v868
    %v870 = vmul.f32 %v746, %v868
    %v873 = vrot.slane %v869, 1
    %v874 = vrot.slane %v870, 1
    %v875 = vsel %vm209, %v873, %v874
    %876 = vrot.lane.b32.xlu0 %v875, 127
    %v877 = vpop.permute.xlu0 %876
    %v879 = vadd.f32 %v833, %v877
    %s880 = sld [smem:[#allocation11 + $0x16]]
    %v881 = vstv %s880
    %v882 = vmul.f32 %v745, %v881
    %v883 = vmul.f32 %v746, %v881
    %v886 = vrot.slane %v882, 1
    %v887 = vrot.slane %v883, 1
    %v888 = vsel %vm209, %v886, %v887
    %889 = vrot.lane.b32.xlu0 %v888, 127
    %v890 = vpop.permute.xlu0 %889
    %v892 = vadd.f32 %v844, %v890
    %s893 = sld [smem:[#allocation11 + $0x28]]
    %v894 = vstv %s893
    %v895 = vmul.f32 %v745, %v894
    %v896 = vmul.f32 %v746, %v894
    %v899 = vrot.slane %v895, 1
    %v900 = vrot.slane %v896, 1
    %v901 = vsel %vm209, %v899, %v900
    %902 = vrot.lane.b32.xlu0 %v901, 127
    %v903 = vpop.permute.xlu0 %902
    %v905 = vadd.f32 %v855, %v903
    %s906 = sld [smem:[#allocation11 + $0x3a]]
    %v907 = vstv %s906
    %v908 = vmul.f32 %v745, %v907
    %v909 = vmul.f32 %v746, %v907
    %v912 = vrot.slane %v908, 1
    %v913 = vrot.slane %v909, 1
    %v914 = vsel %vm209, %v912, %v913
    %915 = vrot.lane.b32.xlu0 %v914, 127
    %v916 = vpop.permute.xlu0 %915
    %v918 = vadd.f32 %v866, %v916
    %s919 = sld [smem:[#allocation11 + $0x5]]
    %v920 = vstv %s919
    %v921 = vmul.f32 %v745, %v920
    %v922 = vmul.f32 %v746, %v920
    %v925 = vrot.slane %v921, 1
    %v926 = vrot.slane %v922, 1
    %v927 = vsel %vm209, %v925, %v926
    %928 = vrot.lane.b32.xlu0 %v927, 126
    %v929 = vpop.permute.xlu0 %928
    %v931 = vadd.f32 %v879, %v929
    %s932 = sld [smem:[#allocation11 + $0x17]]
    %v933 = vstv %s932
    %v934 = vmul.f32 %v745, %v933
    %v935 = vmul.f32 %v746, %v933
    %v938 = vrot.slane %v934, 1
    %v939 = vrot.slane %v935, 1
    %v940 = vsel %vm209, %v938, %v939
    %941 = vrot.lane.b32.xlu0 %v940, 126
    %v942 = vpop.permute.xlu0 %941
    %v944 = vadd.f32 %v892, %v942
    %s945 = sld [smem:[#allocation11 + $0x29]]
    %v946 = vstv %s945
    %v947 = vmul.f32 %v745, %v946
    %v948 = vmul.f32 %v746, %v946
    %v951 = vrot.slane %v947, 1
    %v952 = vrot.slane %v948, 1
    %v953 = vsel %vm209, %v951, %v952
    %954 = vrot.lane.b32.xlu0 %v953, 126
    %v955 = vpop.permute.xlu0 %954
    %v957 = vadd.f32 %v905, %v955
    %s958 = sld [smem:[#allocation11 + $0x3b]]
    %v959 = vstv %s958
    %v960 = vmul.f32 %v745, %v959
    %v961 = vmul.f32 %v746, %v959
    %v964 = vrot.slane %v960, 1
    %v965 = vrot.slane %v961, 1
    %v966 = vsel %vm209, %v964, %v965
    %967 = vrot.lane.b32.xlu0 %v966, 126
    %v968 = vpop.permute.xlu0 %967
    %v970 = vadd.f32 %v918, %v968
    %s971 = sld [smem:[#allocation11 + $0x6]]
    %v972 = vstv %s971
    %v973 = vmul.f32 %v745, %v972
    %v974 = vmul.f32 %v746, %v972
    %v977 = vrot.slane %v973, 2
    %v978 = vrot.slane %v974, 2
    %v979 = vsel %vm328, %v977, %v978
    %v981 = vadd.f32 %v931, %v979
    %s982 = sld [smem:[#allocation11 + $0x18]]
    %v983 = vstv %s982
    %v984 = vmul.f32 %v745, %v983
    %v985 = vmul.f32 %v746, %v983
    %v988 = vrot.slane %v984, 2
    %v989 = vrot.slane %v985, 2
    %v990 = vsel %vm328, %v988, %v989
    %v992 = vadd.f32 %v944, %v990
    %s993 = sld [smem:[#allocation11 + $0x2a]]
    %v994 = vstv %s993
    %v995 = vmul.f32 %v745, %v994
    %v996 = vmul.f32 %v746, %v994
    %v999 = vrot.slane %v995, 2
    %v1000 = vrot.slane %v996, 2
    %v1001 = vsel %vm328, %v999, %v1000
    %v1003 = vadd.f32 %v957, %v1001
    %s1004 = sld [smem:[#allocation11 + $0x3c]]
    %v1005 = vstv %s1004
    %v1006 = vmul.f32 %v745, %v1005
    %v1007 = vmul.f32 %v746, %v1005
    %v1010 = vrot.slane %v1006, 2
    %v1011 = vrot.slane %v1007, 2
    %v1012 = vsel %vm328, %v1010, %v1011
    %v1014 = vadd.f32 %v970, %v1012
    %s1015 = sld [smem:[#allocation11 + $0x7]]
    %v1016 = vstv %s1015
    %v1017 = vmul.f32 %v745, %v1016
    %v1018 = vmul.f32 %v746, %v1016
    %v1021 = vrot.slane %v1017, 2
    %v1022 = vrot.slane %v1018, 2
    %v1023 = vsel %vm328, %v1021, %v1022
    %1024 = vrot.lane.b32.xlu0 %v1023, 127
    %v1025 = vpop.permute.xlu0 %1024
    %v1027 = vadd.f32 %v981, %v1025
    %s1028 = sld [smem:[#allocation11 + $0x19]]
    %v1029 = vstv %s1028
    %v1030 = vmul.f32 %v745, %v1029
    %v1031 = vmul.f32 %v746, %v1029
    %v1034 = vrot.slane %v1030, 2
    %v1035 = vrot.slane %v1031, 2
    %v1036 = vsel %vm328, %v1034, %v1035
    %1037 = vrot.lane.b32.xlu0 %v1036, 127
    %v1038 = vpop.permute.xlu0 %1037
    %v1040 = vadd.f32 %v992, %v1038
    %s1041 = sld [smem:[#allocation11 + $0x2b]]
    %v1042 = vstv %s1041
    %v1043 = vmul.f32 %v745, %v1042
    %v1044 = vmul.f32 %v746, %v1042
    %v1047 = vrot.slane %v1043, 2
    %v1048 = vrot.slane %v1044, 2
    %v1049 = vsel %vm328, %v1047, %v1048
    %1050 = vrot.lane.b32.xlu0 %v1049, 127
    %v1051 = vpop.permute.xlu0 %1050
    %v1053 = vadd.f32 %v1003, %v1051
    %s1054 = sld [smem:[#allocation11 + $0x3d]]
    %v1055 = vstv %s1054
    %v1056 = vmul.f32 %v745, %v1055
    %v1057 = vmul.f32 %v746, %v1055
    %v1060 = vrot.slane %v1056, 2
    %v1061 = vrot.slane %v1057, 2
    %v1062 = vsel %vm328, %v1060, %v1061
    %1063 = vrot.lane.b32.xlu0 %v1062, 127
    %v1064 = vpop.permute.xlu0 %1063
    %v1066 = vadd.f32 %v1014, %v1064
    %s1067 = sld [smem:[#allocation11 + $0x8]]
    %v1068 = vstv %s1067
    %v1069 = vmul.f32 %v745, %v1068
    %v1070 = vmul.f32 %v746, %v1068
    %v1073 = vrot.slane %v1069, 2
    %v1074 = vrot.slane %v1070, 2
    %v1075 = vsel %vm328, %v1073, %v1074
    %1076 = vrot.lane.b32.xlu0 %v1075, 126
    %v1077 = vpop.permute.xlu0 %1076
    %v1079 = vadd.f32 %v1027, %v1077
    %s1080 = sld [smem:[#allocation11 + $0x1a]]
    %v1081 = vstv %s1080
    %v1082 = vmul.f32 %v745, %v1081
    %v1083 = vmul.f32 %v746, %v1081
    %v1086 = vrot.slane %v1082, 2
    %v1087 = vrot.slane %v1083, 2
    %v1088 = vsel %vm328, %v1086, %v1087
    %1089 = vrot.lane.b32.xlu0 %v1088, 126
    %v1090 = vpop.permute.xlu0 %1089
    %v1092 = vadd.f32 %v1040, %v1090
    %s1093 = sld [smem:[#allocation11 + $0x2c]]
    %v1094 = vstv %s1093
    %v1095 = vmul.f32 %v745, %v1094
    %v1096 = vmul.f32 %v746, %v1094
    %v1099 = vrot.slane %v1095, 2
    %v1100 = vrot.slane %v1096, 2
    %v1101 = vsel %vm328, %v1099, %v1100
    %1102 = vrot.lane.b32.xlu0 %v1101, 126
    %v1103 = vpop.permute.xlu0 %1102
    %v1105 = vadd.f32 %v1053, %v1103
    %s1106 = sld [smem:[#allocation11 + $0x3e]]
    %v1107 = vstv %s1106
    %v1108 = vmul.f32 %v745, %v1107
    %v1109 = vmul.f32 %v746, %v1107
    %v1112 = vrot.slane %v1108, 2
    %v1113 = vrot.slane %v1109, 2
    %v1114 = vsel %vm328, %v1112, %v1113
    %1115 = vrot.lane.b32.xlu0 %v1114, 126
    %v1116 = vpop.permute.xlu0 %1115
    %v1118 = vadd.f32 %v1066, %v1116
    %1120 = vrot.lane.b32.xlu0 %v734, 1
    %v1121 = vpop.permute.xlu0 %1120
    %v1123 = vsel %vm120, 0.0, %v1121
    %v1124 = vsel %vm740, %v1123, 0.0
    %v1126 = vrot.slane %v1124, 7
    %v1128 = vsel %vm128, 0.0, %v1126
    %v1129 = vsel %vm128, %v1126, 0.0
    %s1130 = sld [smem:[#allocation11 + $0x9]]
    %v1131 = vstv %s1130
    %v1132 = vmul.f32 %v1128, %v1131
    %v1133 = vadd.f32 %v1079, %v1132
    %s1134 = sld [smem:[#allocation11 + $0x1b]]
    %v1135 = vstv %s1134
    %v1136 = vmul.f32 %v1128, %v1135
    %v1137 = vadd.f32 %v1092, %v1136
    %s1138 = sld [smem:[#allocation11 + $0x2d]]
    %v1139 = vstv %s1138
    %v1140 = vmul.f32 %v1128, %v1139
    %v1141 = vadd.f32 %v1105, %v1140
    %s1142 = sld [smem:[#allocation11 + $0x3f]]
    %v1143 = vstv %s1142
    %v1144 = vmul.f32 %v1128, %v1143
    %v1145 = vadd.f32 %v1118, %v1144
    %s1146 = sld [smem:[#allocation11 + $0xa]]
    %v1147 = vstv %s1146
    %v1148 = vmul.f32 %v1128, %v1147
    %1150 = vrot.lane.b32.xlu0 %v1148, 127
    %v1151 = vpop.permute.xlu0 %1150
    %v1153 = vadd.f32 %v1133, %v1151
    %s1154 = sld [smem:[#allocation11 + $0x1c]]
    %v1155 = vstv %s1154
    %v1156 = vmul.f32 %v1128, %v1155
    %1158 = vrot.lane.b32.xlu0 %v1156, 127
    %v1159 = vpop.permute.xlu0 %1158
    %v1161 = vadd.f32 %v1137, %v1159
    %s1162 = sld [smem:[#allocation11 + $0x2e]]
    %v1163 = vstv %s1162
    %v1164 = vmul.f32 %v1128, %v1163
    %1166 = vrot.lane.b32.xlu0 %v1164, 127
    %v1167 = vpop.permute.xlu0 %1166
    %v1169 = vadd.f32 %v1141, %v1167
    %s1170 = sld [smem:[#allocation11 + $0x40]]
    %v1171 = vstv %s1170
    %v1172 = vmul.f32 %v1128, %v1171
    %1174 = vrot.lane.b32.xlu0 %v1172, 127
    %v1175 = vpop.permute.xlu0 %1174
    %v1177 = vadd.f32 %v1145, %v1175
    %s1178 = sld [smem:[#allocation11 + $0xb]]
    %v1179 = vstv %s1178
    %v1180 = vmul.f32 %v1128, %v1179
    %1182 = vrot.lane.b32.xlu0 %v1180, 126
    %v1183 = vpop.permute.xlu0 %1182
    %v1185 = vadd.f32 %v1153, %v1183
    %s1186 = sld [smem:[#allocation11 + $0x1d]]
    %v1187 = vstv %s1186
    %v1188 = vmul.f32 %v1128, %v1187
    %1190 = vrot.lane.b32.xlu0 %v1188, 126
    %v1191 = vpop.permute.xlu0 %1190
    %v1193 = vadd.f32 %v1161, %v1191
    %s1194 = sld [smem:[#allocation11 + $0x2f]]
    %v1195 = vstv %s1194
    %v1196 = vmul.f32 %v1128, %v1195
    %1198 = vrot.lane.b32.xlu0 %v1196, 126
    %v1199 = vpop.permute.xlu0 %1198
    %v1201 = vadd.f32 %v1169, %v1199
    %s1202 = sld [smem:[#allocation11 + $0x41]]
    %v1203 = vstv %s1202
    %v1204 = vmul.f32 %v1128, %v1203
    %1206 = vrot.lane.b32.xlu0 %v1204, 126
    %v1207 = vpop.permute.xlu0 %1206
    %v1209 = vadd.f32 %v1177, %v1207
    %s1210 = sld [smem:[#allocation11 + $0xc]]
    %v1211 = vstv %s1210
    %v1212 = vmul.f32 %v1128, %v1211
    %v1213 = vmul.f32 %v1129, %v1211
    %v1216 = vrot.slane %v1212, 1
    %v1217 = vrot.slane %v1213, 1
    %v1218 = vsel %vm209, %v1216, %v1217
    %v1220 = vadd.f32 %v1185, %v1218
    %s1221 = sld [smem:[#allocation11 + $0x1e]]
    %v1222 = vstv %s1221
    %v1223 = vmul.f32 %v1128, %v1222
    %v1224 = vmul.f32 %v1129, %v1222
    %v1227 = vrot.slane %v1223, 1
    %v1228 = vrot.slane %v1224, 1
    %v1229 = vsel %vm209, %v1227, %v1228
    %v1231 = vadd.f32 %v1193, %v1229
    %s1232 = sld [smem:[#allocation11 + $0x30]]
    %v1233 = vstv %s1232
    %v1234 = vmul.f32 %v1128, %v1233
    %v1235 = vmul.f32 %v1129, %v1233
    %v1238 = vrot.slane %v1234, 1
    %v1239 = vrot.slane %v1235, 1
    %v1240 = vsel %vm209, %v1238, %v1239
    %v1242 = vadd.f32 %v1201, %v1240
    %s1243 = sld [smem:[#allocation11 + $0x42]]
    %v1244 = vstv %s1243
    %v1245 = vmul.f32 %v1128, %v1244
    %v1246 = vmul.f32 %v1129, %v1244
    %v1249 = vrot.slane %v1245, 1
    %v1250 = vrot.slane %v1246, 1
    %v1251 = vsel %vm209, %v1249, %v1250
    %v1253 = vadd.f32 %v1209, %v1251
    %s1254 = sld [smem:[#allocation11 + $0xd]]
    %v1255 = vstv %s1254
    %v1256 = vmul.f32 %v1128, %v1255
    %v1257 = vmul.f32 %v1129, %v1255
    %v1260 = vrot.slane %v1256, 1
    %v1261 = vrot.slane %v1257, 1
    %v1262 = vsel %vm209, %v1260, %v1261
    %1263 = vrot.lane.b32.xlu0 %v1262, 127
    %v1264 = vpop.permute.xlu0 %1263
    %v1266 = vadd.f32 %v1220, %v1264
    %s1267 = sld [smem:[#allocation11 + $0x1f]]
    %v1268 = vstv %s1267
    %v1269 = vmul.f32 %v1128, %v1268
    %v1270 = vmul.f32 %v1129, %v1268
    %v1273 = vrot.slane %v1269, 1
    %v1274 = vrot.slane %v1270, 1
    %v1275 = vsel %vm209, %v1273, %v1274
    %1276 = vrot.lane.b32.xlu0 %v1275, 127
    %v1277 = vpop.permute.xlu0 %1276
    %v1279 = vadd.f32 %v1231, %v1277
    %s1280 = sld [smem:[#allocation11 + $0x31]]
    %v1281 = vstv %s1280
    %v1282 = vmul.f32 %v1128, %v1281
    %v1283 = vmul.f32 %v1129, %v1281
    %v1286 = vrot.slane %v1282, 1
    %v1287 = vrot.slane %v1283, 1
    %v1288 = vsel %vm209, %v1286, %v1287
    %1289 = vrot.lane.b32.xlu0 %v1288, 127
    %v1290 = vpop.permute.xlu0 %1289
    %v1292 = vadd.f32 %v1242, %v1290
    %s1293 = sld [smem:[#allocation11 + $0x43]]
    %v1294 = vstv %s1293
    %v1295 = vmul.f32 %v1128, %v1294
    %v1296 = vmul.f32 %v1129, %v1294
    %v1299 = vrot.slane %v1295, 1
    %v1300 = vrot.slane %v1296, 1
    %v1301 = vsel %vm209, %v1299, %v1300
    %1302 = vrot.lane.b32.xlu0 %v1301, 127
    %v1303 = vpop.permute.xlu0 %1302
    %v1305 = vadd.f32 %v1253, %v1303
    %s1306 = sld [smem:[#allocation11 + $0xe]]
    %v1307 = vstv %s1306
    %v1308 = vmul.f32 %v1128, %v1307
    %v1309 = vmul.f32 %v1129, %v1307
    %v1312 = vrot.slane %v1308, 1
    %v1313 = vrot.slane %v1309, 1
    %v1314 = vsel %vm209, %v1312, %v1313
    %1315 = vrot.lane.b32.xlu0 %v1314, 126
    %v1316 = vpop.permute.xlu0 %1315
    %v1318 = vadd.f32 %v1266, %v1316
    %s1319 = sld [smem:[#allocation11 + $0x20]]
    %v1320 = vstv %s1319
    %v1321 = vmul.f32 %v1128, %v1320
    %v1322 = vmul.f32 %v1129, %v1320
    %v1325 = vrot.slane %v1321, 1
    %v1326 = vrot.slane %v1322, 1
    %v1327 = vsel %vm209, %v1325, %v1326
    %1328 = vrot.lane.b32.xlu0 %v1327, 126
    %v1329 = vpop.permute.xlu0 %1328
    %v1331 = vadd.f32 %v1279, %v1329
    %s1332 = sld [smem:[#allocation11 + $0x32]]
    %v1333 = vstv %s1332
    %v1334 = vmul.f32 %v1128, %v1333
    %v1335 = vmul.f32 %v1129, %v1333
    %v1338 = vrot.slane %v1334, 1
    %v1339 = vrot.slane %v1335, 1
    %v1340 = vsel %vm209, %v1338, %v1339
    %1341 = vrot.lane.b32.xlu0 %v1340, 126
    %v1342 = vpop.permute.xlu0 %1341
    %v1344 = vadd.f32 %v1292, %v1342
    %s1345 = sld [smem:[#allocation11 + $0x44]]
    %v1346 = vstv %s1345
    %v1347 = vmul.f32 %v1128, %v1346
    %v1348 = vmul.f32 %v1129, %v1346
    %v1351 = vrot.slane %v1347, 1
    %v1352 = vrot.slane %v1348, 1
    %v1353 = vsel %vm209, %v1351, %v1352
    %1354 = vrot.lane.b32.xlu0 %v1353, 126
    %v1355 = vpop.permute.xlu0 %1354
    %v1357 = vadd.f32 %v1305, %v1355
    %s1358 = sld [smem:[#allocation11 + $0xf]]
    %v1359 = vstv %s1358
    %v1360 = vmul.f32 %v1128, %v1359
    %v1361 = vmul.f32 %v1129, %v1359
    %v1364 = vrot.slane %v1360, 2
    %v1365 = vrot.slane %v1361, 2
    %v1366 = vsel %vm328, %v1364, %v1365
    %v1368 = vadd.f32 %v1318, %v1366
    %s1369 = sld [smem:[#allocation11 + $0x21]]
    %v1370 = vstv %s1369
    %v1371 = vmul.f32 %v1128, %v1370
    %v1372 = vmul.f32 %v1129, %v1370
    %v1375 = vrot.slane %v1371, 2
    %v1376 = vrot.slane %v1372, 2
    %v1377 = vsel %vm328, %v1375, %v1376
    %v1379 = vadd.f32 %v1331, %v1377
    %s1380 = sld [smem:[#allocation11 + $0x33]]
    %v1381 = vstv %s1380
    %v1382 = vmul.f32 %v1128, %v1381
    %v1383 = vmul.f32 %v1129, %v1381
    %v1386 = vrot.slane %v1382, 2
    %v1387 = vrot.slane %v1383, 2
    %v1388 = vsel %vm328, %v1386, %v1387
    %v1390 = vadd.f32 %v1344, %v1388
    %s1391 = sld [smem:[#allocation11 + $0x45]]
    %v1392 = vstv %s1391
    %v1393 = vmul.f32 %v1128, %v1392
    %v1394 = vmul.f32 %v1129, %v1392
    %v1397 = vrot.slane %v1393, 2
    %v1398 = vrot.slane %v1394, 2
    %v1399 = vsel %vm328, %v1397, %v1398
    %v1401 = vadd.f32 %v1357, %v1399
    %s1402 = sld [smem:[#allocation11 + $0x10]]
    %v1403 = vstv %s1402
    %v1404 = vmul.f32 %v1128, %v1403
    %v1405 = vmul.f32 %v1129, %v1403
    %v1408 = vrot.slane %v1404, 2
    %v1409 = vrot.slane %v1405, 2
    %v1410 = vsel %vm328, %v1408, %v1409
    %1411 = vrot.lane.b32.xlu0 %v1410, 127
    %v1412 = vpop.permute.xlu0 %1411
    %v1414 = vadd.f32 %v1368, %v1412
    %s1415 = sld [smem:[#allocation11 + $0x22]]
    %v1416 = vstv %s1415
    %v1417 = vmul.f32 %v1128, %v1416
    %v1418 = vmul.f32 %v1129, %v1416
    %v1421 = vrot.slane %v1417, 2
    %v1422 = vrot.slane %v1418, 2
    %v1423 = vsel %vm328, %v1421, %v1422
    %1424 = vrot.lane.b32.xlu0 %v1423, 127
    %v1425 = vpop.permute.xlu0 %1424
    %v1427 = vadd.f32 %v1379, %v1425
    %s1428 = sld [smem:[#allocation11 + $0x34]]
    %v1429 = vstv %s1428
    %v1430 = vmul.f32 %v1128, %v1429
    %v1431 = vmul.f32 %v1129, %v1429
    %v1434 = vrot.slane %v1430, 2
    %v1435 = vrot.slane %v1431, 2
    %v1436 = vsel %vm328, %v1434, %v1435
    %1437 = vrot.lane.b32.xlu0 %v1436, 127
    %v1438 = vpop.permute.xlu0 %1437
    %v1440 = vadd.f32 %v1390, %v1438
    %s1441 = sld [smem:[#allocation11 + $0x46]]
    %v1442 = vstv %s1441
    %v1443 = vmul.f32 %v1128, %v1442
    %v1444 = vmul.f32 %v1129, %v1442
    %v1447 = vrot.slane %v1443, 2
    %v1448 = vrot.slane %v1444, 2
    %v1449 = vsel %vm328, %v1447, %v1448
    %1450 = vrot.lane.b32.xlu0 %v1449, 127
    %v1451 = vpop.permute.xlu0 %1450
    %v1453 = vadd.f32 %v1401, %v1451
    %s1454 = sld [smem:[#allocation11 + $0x11]]
    %v1455 = vstv %s1454
    %v1456 = vmul.f32 %v1128, %v1455
    %v1457 = vmul.f32 %v1129, %v1455
    %v1460 = vrot.slane %v1456, 2
    %v1461 = vrot.slane %v1457, 2
    %v1462 = vsel %vm328, %v1460, %v1461
    %1463 = vrot.lane.b32.xlu0 %v1462, 126
    %v1464 = vpop.permute.xlu0 %1463
    %v1466 = vadd.f32 %v1414, %v1464
    %s1467 = sld [smem:[#allocation11 + $0x23]]
    %v1468 = vstv %s1467
    %v1469 = vmul.f32 %v1128, %v1468
    %v1470 = vmul.f32 %v1129, %v1468
    %v1473 = vrot.slane %v1469, 2
    %v1474 = vrot.slane %v1470, 2
    %v1475 = vsel %vm328, %v1473, %v1474
    %1476 = vrot.lane.b32.xlu0 %v1475, 126
    %v1477 = vpop.permute.xlu0 %1476
    %v1479 = vadd.f32 %v1427, %v1477
    %s1480 = sld [smem:[#allocation11 + $0x35]]
    %v1481 = vstv %s1480
    %v1482 = vmul.f32 %v1128, %v1481
    %v1483 = vmul.f32 %v1129, %v1481
    %v1486 = vrot.slane %v1482, 2
    %v1487 = vrot.slane %v1483, 2
    %v1488 = vsel %vm328, %v1486, %v1487
    %1489 = vrot.lane.b32.xlu0 %v1488, 126
    %v1490 = vpop.permute.xlu0 %1489
    %v1492 = vadd.f32 %v1440, %v1490
    %s1493 = sld [smem:[#allocation11 + $0x47]]
    %v1494 = vstv %s1493
    %v1495 = vmul.f32 %v1128, %v1494
    %v1496 = vmul.f32 %v1129, %v1494
    %v1499 = vrot.slane %v1495, 2
    %v1500 = vrot.slane %v1496, 2
    %v1501 = vsel %vm328, %v1499, %v1500
    %1502 = vrot.lane.b32.xlu0 %v1501, 126
    %v1503 = vpop.permute.xlu0 %1502
    %v1505 = vadd.f32 %v1453, %v1503
    %vm1506 = vcmask 64512
    %v1508 = vsel %vm1506, %v108, 0
    %1510 = vmatprep.subr.mxu0 0.0
    %1511 = vmatpush1.msra.mxu0 %v1466
    %1512 = vmatprep.subr.mxu0 0.0
    %1513 = vmatpush1.msra.mxu0 0.0
    %1514 = vmatprep.subr.mxu0 0.0
    %1515 = vmatpush1.msra.mxu0 0.0
    %1516 = vmatprep.subr.mxu0 0.0
    %1517 = vmatpush1.msra.mxu0 0.0
    %1518 = vmatprep.subr.mxu0 0.0
    %1519 = vmatpush1.msra.mxu0 0.0
    %1520 = vmatprep.subr.mxu0 0.0
    %1521 = vmatpush1.msra.mxu0 0.0
    %1522 = vmatprep.subr.mxu0 0.0
    %1523 = vmatpush1.msra.mxu0 0.0
    %1524 = vmatprep.subr.mxu0 0.0
    %1525 = vmatpush1.msra.mxu0 0.0
    %1526 = vmatprep.subr.mxu0 0.0
    %1527 = vmatpush1.msra.mxu0 0.0
    %1528 = vmatprep.subr.mxu0 0.0
    %1529 = vmatpush1.msra.mxu0 0.0
    %1530 = vmatprep.subr.mxu0 0.0
    %1531 = vmatpush1.msra.mxu0 0.0
    %1532 = vmatprep.subr.mxu0 0.0
    %1533 = vmatpush1.msra.mxu0 0.0
    %1534 = vmatprep.subr.mxu0 0.0
    %1535 = vmatpush1.msra.mxu0 0.0
    %1536 = vmatprep.subr.mxu0 0.0
    %1537 = vmatpush1.msra.mxu0 0.0
    %1538 = vmatprep.subr.mxu0 0.0
    %1539 = vmatpush1.msra.mxu0 0.0
    %1540 = vmatprep.subr.mxu0 0.0
    %1541 = vmatpush1.msra.mxu0 0.0
    %1542 = vmatprep.subr.mxu0 0.0
    %1543 = vmatpush1.msra.mxu0 0.0
    %1544 = vmatprep.subr.mxu0 0.0
    %1545 = vmatpush1.msra.mxu0 0.0
    %1546 = vmatprep.subr.mxu0 0.0
    %1547 = vmatpush1.msra.mxu0 0.0
    %1548 = vmatprep.subr.mxu0 0.0
    %1549 = vmatpush1.msra.mxu0 0.0
    %1550 = vmatprep.subr.mxu0 0.0
    %1551 = vmatpush1.msra.mxu0 0.0
    %1552 = vmatprep.subr.mxu0 0.0
    %1553 = vmatpush1.msra.mxu0 0.0
    %1554 = vmatprep.subr.mxu0 0.0
    %1555 = vmatpush1.msra.mxu0 0.0
    %1556 = vmatprep.subr.mxu0 0.0
    %1557 = vmatpush1.msra.mxu0 0.0
    %1558 = vmatprep.subr.mxu0 0.0
    %1559 = vmatpush1.msra.mxu0 0.0
    %1560 = vmatprep.subr.mxu0 0.0
    %1561 = vmatpush1.msra.mxu0 0.0
    %1562 = vmatprep.subr.mxu0 0.0
    %1563 = vmatpush1.msra.mxu0 0.0
    %1564 = vmatprep.subr.mxu0 0.0
    %1565 = vmatpush1.msra.mxu0 0.0
    %1566 = vmatprep.subr.mxu0 0.0
    %1567 = vmatpush1.msra.mxu0 0.0
    %1568 = vmatprep.subr.mxu0 0.0
    %1569 = vmatpush1.msra.mxu0 0.0
    %1570 = vmatprep.subr.mxu0 0.0
    %1571 = vmatpush1.msra.mxu0 0.0
    %1572 = vmatprep.subr.mxu0 0.0
    %1573 = vmatpush1.msra.mxu0 0.0
    %1574 = vmatprep.mubr.f32.mxu0 0.0
    %1575 = vmatmul.mubr.f32.gmra.mrb[0].mxu0 %v1508
    %v1576 = vpop.f32.mrb[0].mxu0
    %v1577 = vadd.f32 0.0, %v1576
    %v1578 = vpop.f32.mrb[0].mxu0
    %1579 = vdwg.mxu0
    %s1580 = sld [smem:[#allocation12]]
    %v1581 = vstv %s1580
    %v1583 = vsel %vm1506, %v1577, 0
    %1585 = vmatprep.subr.mxu0 0.0
    %1586 = vmatpush1.msra.mxu0 %v109
    %1587 = vmatprep.subr.mxu0 0.0
    %1588 = vmatpush1.msra.mxu0 0.0
    %1589 = vmatprep.subr.mxu0 0.0
    %1590 = vmatpush1.msra.mxu0 0.0
    %1591 = vmatprep.subr.mxu0 0.0
    %1592 = vmatpush1.msra.mxu0 0.0
    %1593 = vmatprep.subr.mxu0 0.0
    %1594 = vmatpush1.msra.mxu0 0.0
    %1595 = vmatprep.subr.mxu0 0.0
    %1596 = vmatpush1.msra.mxu0 0.0
    %1597 = vmatprep.subr.mxu0 0.0
    %1598 = vmatpush1.msra.mxu0 0.0
    %1599 = vmatprep.subr.mxu0 0.0
    %1600 = vmatpush1.msra.mxu0 0.0
    %1601 = vmatprep.subr.mxu0 0.0
    %1602 = vmatpush1.msra.mxu0 0.0
    %1603 = vmatprep.subr.mxu0 0.0
    %1604 = vmatpush1.msra.mxu0 0.0
    %1605 = vmatprep.subr.mxu0 0.0
    %1606 = vmatpush1.msra.mxu0 0.0
    %1607 = vmatprep.subr.mxu0 0.0
    %1608 = vmatpush1.msra.mxu0 0.0
    %1609 = vmatprep.subr.mxu0 0.0
    %1610 = vmatpush1.msra.mxu0 0.0
    %1611 = vmatprep.subr.mxu0 0.0
    %1612 = vmatpush1.msra.mxu0 0.0
    %1613 = vmatprep.subr.mxu0 0.0
    %1614 = vmatpush1.msra.mxu0 0.0
    %1615 = vmatprep.subr.mxu0 0.0
    %1616 = vmatpush1.msra.mxu0 0.0
    %1617 = vmatprep.subr.mxu0 0.0
    %1618 = vmatpush1.msra.mxu0 0.0
    %1619 = vmatprep.subr.mxu0 0.0
    %1620 = vmatpush1.msra.mxu0 0.0
    %1621 = vmatprep.subr.mxu0 0.0
    %1622 = vmatpush1.msra.mxu0 0.0
    %1623 = vmatprep.subr.mxu0 0.0
    %1624 = vmatpush1.msra.mxu0 0.0
    %1625 = vmatprep.subr.mxu0 0.0
    %1626 = vmatpush1.msra.mxu0 0.0
    %1627 = vmatprep.subr.mxu0 0.0
    %1628 = vmatpush1.msra.mxu0 0.0
    %1629 = vmatprep.subr.mxu0 0.0
    %1630 = vmatpush1.msra.mxu0 0.0
    %1631 = vmatprep.subr.mxu0 0.0
    %1632 = vmatpush1.msra.mxu0 0.0
    %1633 = vmatprep.subr.mxu0 0.0
    %1634 = vmatpush1.msra.mxu0 0.0
    %1635 = vmatprep.subr.mxu0 0.0
    %1636 = vmatpush1.msra.mxu0 0.0
    %1637 = vmatprep.subr.mxu0 0.0
    %1638 = vmatpush1.msra.mxu0 0.0
    %1639 = vmatprep.subr.mxu0 0.0
    %1640 = vmatpush1.msra.mxu0 0.0
    %1641 = vmatprep.subr.mxu0 0.0
    %1642 = vmatpush1.msra.mxu0 0.0
    %1643 = vmatprep.subr.mxu0 0.0
    %1644 = vmatpush1.msra.mxu0 0.0
    %1645 = vmatprep.subr.mxu0 0.0
    %1646 = vmatpush1.msra.mxu0 0.0
    %1647 = vmatprep.subr.mxu0 0.0
    %1648 = vmatpush1.msra.mxu0 0.0
    %1649 = vmatprep.mubr.f32.mxu0 0.0
    %1650 = vmatmul.mubr.f32.gmra.mrb[0].mxu0 %v1583
    %v1651 = vpop.f32.mrb[0].mxu0
    %v1652 = vadd.f32 %v1581, %v1651
    %v1653 = vpop.f32.mrb[0].mxu0
    %1654 = vdwg.mxu0
    %v1655 = vmax.f32 %v1652, 0.0
    %1656 = vmatprep.subr.mxu0 0.0
    %1657 = vmatpush1.msra.mxu0 %v1479
    %1658 = vmatprep.subr.mxu0 0.0
    %1659 = vmatpush1.msra.mxu0 0.0
    %1660 = vmatprep.subr.mxu0 0.0
    %1661 = vmatpush1.msra.mxu0 0.0
    %1662 = vmatprep.subr.mxu0 0.0
    %1663 = vmatpush1.msra.mxu0 0.0
    %1664 = vmatprep.subr.mxu0 0.0
    %1665 = vmatpush1.msra.mxu0 0.0
    %1666 = vmatprep.subr.mxu0 0.0
    %1667 = vmatpush1.msra.mxu0 0.0
    %1668 = vmatprep.subr.mxu0 0.0
    %1669 = vmatpush1.msra.mxu0 0.0
    %1670 = vmatprep.subr.mxu0 0.0
    %1671 = vmatpush1.msra.mxu0 0.0
    %1672 = vmatprep.subr.mxu0 0.0
    %1673 = vmatpush1.msra.mxu0 0.0
    %1674 = vmatprep.subr.mxu0 0.0
    %1675 = vmatpush1.msra.mxu0 0.0
    %1676 = vmatprep.subr.mxu0 0.0
    %1677 = vmatpush1.msra.mxu0 0.0
    %1678 = vmatprep.subr.mxu0 0.0
    %1679 = vmatpush1.msra.mxu0 0.0
    %1680 = vmatprep.subr.mxu0 0.0
    %1681 = vmatpush1.msra.mxu0 0.0
    %1682 = vmatprep.subr.mxu0 0.0
    %1683 = vmatpush1.msra.mxu0 0.0
    %1684 = vmatprep.subr.mxu0 0.0
    %1685 = vmatpush1.msra.mxu0 0.0
    %1686 = vmatprep.subr.mxu0 0.0
    %1687 = vmatpush1.msra.mxu0 0.0
    %1688 = vmatprep.subr.mxu0 0.0
    %1689 = vmatpush1.msra.mxu0 0.0
    %1690 = vmatprep.subr.mxu0 0.0
    %1691 = vmatpush1.msra.mxu0 0.0
    %1692 = vmatprep.subr.mxu0 0.0
    %1693 = vmatpush1.msra.mxu0 0.0
    %1694 = vmatprep.subr.mxu0 0.0
    %1695 = vmatpush1.msra.mxu0 0.0
    %1696 = vmatprep.subr.mxu0 0.0
    %1697 = vmatpush1.msra.mxu0 0.0
    %1698 = vmatprep.subr.mxu0 0.0
    %1699 = vmatpush1.msra.mxu0 0.0
    %1700 = vmatprep.subr.mxu0 0.0
    %1701 = vmatpush1.msra.mxu0 0.0
    %1702 = vmatprep.subr.mxu0 0.0
    %1703 = vmatpush1.msra.mxu0 0.0
    %1704 = vmatprep.subr.mxu0 0.0
    %1705 = vmatpush1.msra.mxu0 0.0
    %1706 = vmatprep.subr.mxu0 0.0
    %1707 = vmatpush1.msra.mxu0 0.0
    %1708 = vmatprep.subr.mxu0 0.0
    %1709 = vmatpush1.msra.mxu0 0.0
    %1710 = vmatprep.subr.mxu0 0.0
    %1711 = vmatpush1.msra.mxu0 0.0
    %1712 = vmatprep.subr.mxu0 0.0
    %1713 = vmatpush1.msra.mxu0 0.0
    %1714 = vmatprep.subr.mxu0 0.0
    %1715 = vmatpush1.msra.mxu0 0.0
    %1716 = vmatprep.subr.mxu0 0.0
    %1717 = vmatpush1.msra.mxu0 0.0
    %1718 = vmatprep.subr.mxu0 0.0
    %1719 = vmatpush1.msra.mxu0 0.0
    %1720 = vmatprep.mubr.f32.mxu0 0.0
    %1721 = vmatmul.mubr.f32.gmra.mrb[0].mxu0 %v1508
    %v1722 = vpop.f32.mrb[0].mxu0
    %v1723 = vadd.f32 0.0, %v1722
    %v1724 = vpop.f32.mrb[0].mxu0
    %1725 = vdwg.mxu0
    %s1726 = sld [smem:[#allocation12 + $0x1]]
    %v1727 = vstv %s1726
    %v1729 = vsel %vm1506, %v1723, 0
    %1731 = vmatprep.subr.mxu0 0.0
    %1732 = vmatpush1.msra.mxu0 %v109
    %1733 = vmatprep.subr.mxu0 0.0
    %1734 = vmatpush1.msra.mxu0 0.0
    %1735 = vmatprep.subr.mxu0 0.0
    %1736 = vmatpush1.msra.mxu0 0.0
    %1737 = vmatprep.subr.mxu0 0.0
    %1738 = vmatpush1.msra.mxu0 0.0
    %1739 = vmatprep.subr.mxu0 0.0
    %1740 = vmatpush1.msra.mxu0 0.0
    %1741 = vmatprep.subr.mxu0 0.0
    %1742 = vmatpush1.msra.mxu0 0.0
    %1743 = vmatprep.subr.mxu0 0.0
    %1744 = vmatpush1.msra.mxu0 0.0
    %1745 = vmatprep.subr.mxu0 0.0
    %1746 = vmatpush1.msra.mxu0 0.0
    %1747 = vmatprep.subr.mxu0 0.0
    %1748 = vmatpush1.msra.mxu0 0.0
    %1749 = vmatprep.subr.mxu0 0.0
    %1750 = vmatpush1.msra.mxu0 0.0
    %1751 = vmatprep.subr.mxu0 0.0
    %1752 = vmatpush1.msra.mxu0 0.0
    %1753 = vmatprep.subr.mxu0 0.0
    %1754 = vmatpush1.msra.mxu0 0.0
    %1755 = vmatprep.subr.mxu0 0.0
    %1756 = vmatpush1.msra.mxu0 0.0
    %1757 = vmatprep.subr.mxu0 0.0
    %1758 = vmatpush1.msra.mxu0 0.0
    %1759 = vmatprep.subr.mxu0 0.0
    %1760 = vmatpush1.msra.mxu0 0.0
    %1761 = vmatprep.subr.mxu0 0.0
    %1762 = vmatpush1.msra.mxu0 0.0
    %1763 = vmatprep.subr.mxu0 0.0
    %1764 = vmatpush1.msra.mxu0 0.0
    %1765 = vmatprep.subr.mxu0 0.0
    %1766 = vmatpush1.msra.mxu0 0.0
    %1767 = vmatprep.subr.mxu0 0.0
    %1768 = vmatpush1.msra.mxu0 0.0
    %1769 = vmatprep.subr.mxu0 0.0
    %1770 = vmatpush1.msra.mxu0 0.0
    %1771 = vmatprep.subr.mxu0 0.0
    %1772 = vmatpush1.msra.mxu0 0.0
    %1773 = vmatprep.subr.mxu0 0.0
    %1774 = vmatpush1.msra.mxu0 0.0
    %1775 = vmatprep.subr.mxu0 0.0
    %1776 = vmatpush1.msra.mxu0 0.0
    %1777 = vmatprep.subr.mxu0 0.0
    %1778 = vmatpush1.msra.mxu0 0.0
    %1779 = vmatprep.subr.mxu0 0.0
    %1780 = vmatpush1.msra.mxu0 0.0
    %1781 = vmatprep.subr.mxu0 0.0
    %1782 = vmatpush1.msra.mxu0 0.0
    %1783 = vmatprep.subr.mxu0 0.0
    %1784 = vmatpush1.msra.mxu0 0.0
    %1785 = vmatprep.subr.mxu0 0.0
    %1786 = vmatpush1.msra.mxu0 0.0
    %1787 = vmatprep.subr.mxu0 0.0
    %1788 = vmatpush1.msra.mxu0 0.0
    %1789 = vmatprep.subr.mxu0 0.0
    %1790 = vmatpush1.msra.mxu0 0.0
    %1791 = vmatprep.subr.mxu0 0.0
    %1792 = vmatpush1.msra.mxu0 0.0
    %1793 = vmatprep.subr.mxu0 0.0
    %1794 = vmatpush1.msra.mxu0 0.0
    %1795 = vmatprep.mubr.f32.mxu0 0.0
    %1796 = vmatmul.mubr.f32.gmra.mrb[0].mxu0 %v1729
    %v1797 = vpop.f32.mrb[0].mxu0
    %v1798 = vadd.f32 %v1727, %v1797
    %v1799 = vpop.f32.mrb[0].mxu0
    %1800 = vdwg.mxu0
    %v1801 = vmax.f32 %v1798, 0.0
    %1802 = vmatprep.subr.mxu0 0.0
    %1803 = vmatpush1.msra.mxu0 %v1492
    %1804 = vmatprep.subr.mxu0 0.0
    %1805 = vmatpush1.msra.mxu0 0.0
    %1806 = vmatprep.subr.mxu0 0.0
    %1807 = vmatpush1.msra.mxu0 0.0
    %1808 = vmatprep.subr.mxu0 0.0
    %1809 = vmatpush1.msra.mxu0 0.0
    %1810 = vmatprep.subr.mxu0 0.0
    %1811 = vmatpush1.msra.mxu0 0.0
    %1812 = vmatprep.subr.mxu0 0.0
    %1813 = vmatpush1.msra.mxu0 0.0
    %1814 = vmatprep.subr.mxu0 0.0
    %1815 = vmatpush1.msra.mxu0 0.0
    %1816 = vmatprep.subr.mxu0 0.0
    %1817 = vmatpush1.msra.mxu0 0.0
    %1818 = vmatprep.subr.mxu0 0.0
    %1819 = vmatpush1.msra.mxu0 0.0
    %1820 = vmatprep.subr.mxu0 0.0
    %1821 = vmatpush1.msra.mxu0 0.0
    %1822 = vmatprep.subr.mxu0 0.0
    %1823 = vmatpush1.msra.mxu0 0.0
    %1824 = vmatprep.subr.mxu0 0.0
    %1825 = vmatpush1.msra.mxu0 0.0
    %1826 = vmatprep.subr.mxu0 0.0
    %1827 = vmatpush1.msra.mxu0 0.0
    %1828 = vmatprep.subr.mxu0 0.0
    %1829 = vmatpush1.msra.mxu0 0.0
    %1830 = vmatprep.subr.mxu0 0.0
    %1831 = vmatpush1.msra.mxu0 0.0
    %1832 = vmatprep.subr.mxu0 0.0
    %1833 = vmatpush1.msra.mxu0 0.0
    %1834 = vmatprep.subr.mxu0 0.0
    %1835 = vmatpush1.msra.mxu0 0.0
    %1836 = vmatprep.subr.mxu0 0.0
    %1837 = vmatpush1.msra.mxu0 0.0
    %1838 = vmatprep.subr.mxu0 0.0
    %1839 = vmatpush1.msra.mxu0 0.0
    %1840 = vmatprep.subr.mxu0 0.0
    %1841 = vmatpush1.msra.mxu0 0.0
    %1842 = vmatprep.subr.mxu0 0.0
    %1843 = vmatpush1.msra.mxu0 0.0
    %1844 = vmatprep.subr.mxu0 0.0
    %1845 = vmatpush1.msra.mxu0 0.0
    %1846 = vmatprep.subr.mxu0 0.0
    %1847 = vmatpush1.msra.mxu0 0.0
    %1848 = vmatprep.subr.mxu0 0.0
    %1849 = vmatpush1.msra.mxu0 0.0
    %1850 = vmatprep.subr.mxu0 0.0
    %1851 = vmatpush1.msra.mxu0 0.0
    %1852 = vmatprep.subr.mxu0 0.0
    %1853 = vmatpush1.msra.mxu0 0.0
    %1854 = vmatprep.subr.mxu0 0.0
    %1855 = vmatpush1.msra.mxu0 0.0
    %1856 = vmatprep.subr.mxu0 0.0
    %1857 = vmatpush1.msra.mxu0 0.0
    %1858 = vmatprep.subr.mxu0 0.0
    %1859 = vmatpush1.msra.mxu0 0.0
    %1860 = vmatprep.subr.mxu0 0.0
    %1861 = vmatpush1.msra.mxu0 0.0
    %1862 = vmatprep.subr.mxu0 0.0
    %1863 = vmatpush1.msra.mxu0 0.0
    %1864 = vmatprep.subr.mxu0 0.0
    %1865 = vmatpush1.msra.mxu0 0.0
    %1866 = vmatprep.mubr.f32.mxu0 0.0
    %1867 = vmatmul.mubr.f32.gmra.mrb[0].mxu0 %v1508
    %v1868 = vpop.f32.mrb[0].mxu0
    %v1869 = vadd.f32 0.0, %v1868
    %v1870 = vpop.f32.mrb[0].mxu0
    %1871 = vdwg.mxu0
    %s1872 = sld [smem:[#allocation12 + $0x2]]
    %v1873 = vstv %s1872
    %v1875 = vsel %vm1506, %v1869, 0
    %1877 = vmatprep.subr.mxu0 0.0
    %1878 = vmatpush1.msra.mxu0 %v109
    %1879 = vmatprep.subr.mxu0 0.0
    %1880 = vmatpush1.msra.mxu0 0.0
    %1881 = vmatprep.subr.mxu0 0.0
    %1882 = vmatpush1.msra.mxu0 0.0
    %1883 = vmatprep.subr.mxu0 0.0
    %1884 = vmatpush1.msra.mxu0 0.0
    %1885 = vmatprep.subr.mxu0 0.0
    %1886 = vmatpush1.msra.mxu0 0.0
    %1887 = vmatprep.subr.mxu0 0.0
    %1888 = vmatpush1.msra.mxu0 0.0
    %1889 = vmatprep.subr.mxu0 0.0
    %1890 = vmatpush1.msra.mxu0 0.0
    %1891 = vmatprep.subr.mxu0 0.0
    %1892 = vmatpush1.msra.mxu0 0.0
    %1893 = vmatprep.subr.mxu0 0.0
    %1894 = vmatpush1.msra.mxu0 0.0
    %1895 = vmatprep.subr.mxu0 0.0
    %1896 = vmatpush1.msra.mxu0 0.0
    %1897 = vmatprep.subr.mxu0 0.0
    %1898 = vmatpush1.msra.mxu0 0.0
    %1899 = vmatprep.subr.mxu0 0.0
    %1900 = vmatpush1.msra.mxu0 0.0
    %1901 = vmatprep.subr.mxu0 0.0
    %1902 = vmatpush1.msra.mxu0 0.0
    %1903 = vmatprep.subr.mxu0 0.0
    %1904 = vmatpush1.msra.mxu0 0.0
    %1905 = vmatprep.subr.mxu0 0.0
    %1906 = vmatpush1.msra.mxu0 0.0
    %1907 = vmatprep.subr.mxu0 0.0
    %1908 = vmatpush1.msra.mxu0 0.0
    %1909 = vmatprep.subr.mxu0 0.0
    %1910 = vmatpush1.msra.mxu0 0.0
    %1911 = vmatprep.subr.mxu0 0.0
    %1912 = vmatpush1.msra.mxu0 0.0
    %1913 = vmatprep.subr.mxu0 0.0
    %1914 = vmatpush1.msra.mxu0 0.0
    %1915 = vmatprep.subr.mxu0 0.0
    %1916 = vmatpush1.msra.mxu0 0.0
    %1917 = vmatprep.subr.mxu0 0.0
    %1918 = vmatpush1.msra.mxu0 0.0
    %1919 = vmatprep.subr.mxu0 0.0
    %1920 = vmatpush1.msra.mxu0 0.0
    %1921 = vmatprep.subr.mxu0 0.0
    %1922 = vmatpush1.msra.mxu0 0.0
    %1923 = vmatprep.subr.mxu0 0.0
    %1924 = vmatpush1.msra.mxu0 0.0
    %1925 = vmatprep.subr.mxu0 0.0
    %1926 = vmatpush1.msra.mxu0 0.0
    %1927 = vmatprep.subr.mxu0 0.0
    %1928 = vmatpush1.msra.mxu0 0.0
    %1929 = vmatprep.subr.mxu0 0.0
    %1930 = vmatpush1.msra.mxu0 0.0
    %1931 = vmatprep.subr.mxu0 0.0
    %1932 = vmatpush1.msra.mxu0 0.0
    %1933 = vmatprep.subr.mxu0 0.0
    %1934 = vmatpush1.msra.mxu0 0.0
    %1935 = vmatprep.subr.mxu0 0.0
    %1936 = vmatpush1.msra.mxu0 0.0
    %1937 = vmatprep.subr.mxu0 0.0
    %1938 = vmatpush1.msra.mxu0 0.0
    %1939 = vmatprep.subr.mxu0 0.0
    %1940 = vmatpush1.msra.mxu0 0.0
    %1941 = vmatprep.mubr.f32.mxu0 0.0
    %1942 = vmatmul.mubr.f32.gmra.mrb[0].mxu0 %v1875
    %v1943 = vpop.f32.mrb[0].mxu0
    %v1944 = vadd.f32 %v1873, %v1943
    %v1945 = vpop.f32.mrb[0].mxu0
    %1946 = vdwg.mxu0
    %v1947 = vmax.f32 %v1944, 0.0
    %1948 = vmatprep.subr.mxu0 0.0
    %1949 = vmatpush1.msra.mxu0 %v1505
    %1950 = vmatprep.subr.mxu0 0.0
    %1951 = vmatpush1.msra.mxu0 0.0
    %1952 = vmatprep.subr.mxu0 0.0
    %1953 = vmatpush1.msra.mxu0 0.0
    %1954 = vmatprep.subr.mxu0 0.0
    %1955 = vmatpush1.msra.mxu0 0.0
    %1956 = vmatprep.subr.mxu0 0.0
    %1957 = vmatpush1.msra.mxu0 0.0
    %1958 = vmatprep.subr.mxu0 0.0
    %1959 = vmatpush1.msra.mxu0 0.0
    %1960 = vmatprep.subr.mxu0 0.0
    %1961 = vmatpush1.msra.mxu0 0.0
    %1962 = vmatprep.subr.mxu0 0.0
    %1963 = vmatpush1.msra.mxu0 0.0
    %1964 = vmatprep.subr.mxu0 0.0
    %1965 = vmatpush1.msra.mxu0 0.0
    %1966 = vmatprep.subr.mxu0 0.0
    %1967 = vmatpush1.msra.mxu0 0.0
    %1968 = vmatprep.subr.mxu0 0.0
    %1969 = vmatpush1.msra.mxu0 0.0
    %1970 = vmatprep.subr.mxu0 0.0
    %1971 = vmatpush1.msra.mxu0 0.0
    %1972 = vmatprep.subr.mxu0 0.0
    %1973 = vmatpush1.msra.mxu0 0.0
    %1974 = vmatprep.subr.mxu0 0.0
    %1975 = vmatpush1.msra.mxu0 0.0
    %1976 = vmatprep.subr.mxu0 0.0
    %1977 = vmatpush1.msra.mxu0 0.0
    %1978 = vmatprep.subr.mxu0 0.0
    %1979 = vmatpush1.msra.mxu0 0.0
    %1980 = vmatprep.subr.mxu0 0.0
    %1981 = vmatpush1.msra.mxu0 0.0
    %1982 = vmatprep.subr.mxu0 0.0
    %1983 = vmatpush1.msra.mxu0 0.0
    %1984 = vmatprep.subr.mxu0 0.0
    %1985 = vmatpush1.msra.mxu0 0.0
    %1986 = vmatprep.subr.mxu0 0.0
    %1987 = vmatpush1.msra.mxu0 0.0
    %1988 = vmatprep.subr.mxu0 0.0
    %1989 = vmatpush1.msra.mxu0 0.0
    %1990 = vmatprep.subr.mxu0 0.0
    %1991 = vmatpush1.msra.mxu0 0.0
    %1992 = vmatprep.subr.mxu0 0.0
    %1993 = vmatpush1.msra.mxu0 0.0
    %1994 = vmatprep.subr.mxu0 0.0
    %1995 = vmatpush1.msra.mxu0 0.0
    %1996 = vmatprep.subr.mxu0 0.0
    %1997 = vmatpush1.msra.mxu0 0.0
    %1998 = vmatprep.subr.mxu0 0.0
    %1999 = vmatpush1.msra.mxu0 0.0
    %2000 = vmatprep.subr.mxu0 0.0
    %2001 = vmatpush1.msra.mxu0 0.0
    %2002 = vmatprep.subr.mxu0 0.0
    %2003 = vmatpush1.msra.mxu0 0.0
    %2004 = vmatprep.subr.mxu0 0.0
    %2005 = vmatpush1.msra.mxu0 0.0
    %2006 = vmatprep.subr.mxu0 0.0
    %2007 = vmatpush1.msra.mxu0 0.0
    %2008 = vmatprep.subr.mxu0 0.0
    %2009 = vmatpush1.msra.mxu0 0.0
    %2010 = vmatprep.subr.mxu0 0.0
    %2011 = vmatpush1.msra.mxu0 0.0
    %2012 = vmatprep.mubr.f32.mxu0 0.0
    %2013 = vmatmul.mubr.f32.gmra.mrb[0].mxu0 %v1508
    %v2014 = vpop.f32.mrb[0].mxu0
    %v2015 = vadd.f32 0.0, %v2014
    %v2016 = vpop.f32.mrb[0].mxu0
    %2017 = vdwg.mxu0
    %s2018 = sld [smem:[#allocation12 + $0x3]]
    %v2019 = vstv %s2018
    %v2021 = vsel %vm1506, %v2015, 0
    %2023 = vmatprep.subr.mxu0 0.0
    %2024 = vmatpush1.msra.mxu0 %v109
    %2025 = vmatprep.subr.mxu0 0.0
    %2026 = vmatpush1.msra.mxu0 0.0
    %2027 = vmatprep.subr.mxu0 0.0
    %2028 = vmatpush1.msra.mxu0 0.0
    %2029 = vmatprep.subr.mxu0 0.0
    %2030 = vmatpush1.msra.mxu0 0.0
    %2031 = vmatprep.subr.mxu0 0.0
    %2032 = vmatpush1.msra.mxu0 0.0
    %2033 = vmatprep.subr.mxu0 0.0
    %2034 = vmatpush1.msra.mxu0 0.0
    %2035 = vmatprep.subr.mxu0 0.0
    %2036 = vmatpush1.msra.mxu0 0.0
    %2037 = vmatprep.subr.mxu0 0.0
    %2038 = vmatpush1.msra.mxu0 0.0
    %2039 = vmatprep.subr.mxu0 0.0
    %2040 = vmatpush1.msra.mxu0 0.0
    %2041 = vmatprep.subr.mxu0 0.0
    %2042 = vmatpush1.msra.mxu0 0.0
    %2043 = vmatprep.subr.mxu0 0.0
    %2044 = vmatpush1.msra.mxu0 0.0
    %2045 = vmatprep.subr.mxu0 0.0
    %2046 = vmatpush1.msra.mxu0 0.0
    %2047 = vmatprep.subr.mxu0 0.0
    %2048 = vmatpush1.msra.mxu0 0.0
    %2049 = vmatprep.subr.mxu0 0.0
    %2050 = vmatpush1.msra.mxu0 0.0
    %2051 = vmatprep.subr.mxu0 0.0
    %2052 = vmatpush1.msra.mxu0 0.0
    %2053 = vmatprep.subr.mxu0 0.0
    %2054 = vmatpush1.msra.mxu0 0.0
    %2055 = vmatprep.subr.mxu0 0.0
    %2056 = vmatpush1.msra.mxu0 0.0
    %2057 = vmatprep.subr.mxu0 0.0
    %2058 = vmatpush1.msra.mxu0 0.0
    %2059 = vmatprep.subr.mxu0 0.0
    %2060 = vmatpush1.msra.mxu0 0.0
    %2061 = vmatprep.subr.mxu0 0.0
    %2062 = vmatpush1.msra.mxu0 0.0
    %2063 = vmatprep.subr.mxu0 0.0
    %2064 = vmatpush1.msra.mxu0 0.0
    %2065 = vmatprep.subr.mxu0 0.0
    %2066 = vmatpush1.msra.mxu0 0.0
    %2067 = vmatprep.subr.mxu0 0.0
    %2068 = vmatpush1.msra.mxu0 0.0
    %2069 = vmatprep.subr.mxu0 0.0
    %2070 = vmatpush1.msra.mxu0 0.0
    %2071 = vmatprep.subr.mxu0 0.0
    %2072 = vmatpush1.msra.mxu0 0.0
    %2073 = vmatprep.subr.mxu0 0.0
    %2074 = vmatpush1.msra.mxu0 0.0
    %2075 = vmatprep.subr.mxu0 0.0
    %2076 = vmatpush1.msra.mxu0 0.0
    %2077 = vmatprep.subr.mxu0 0.0
    %2078 = vmatpush1.msra.mxu0 0.0
    %2079 = vmatprep.subr.mxu0 0.0
    %2080 = vmatpush1.msra.mxu0 0.0
    %2081 = vmatprep.subr.mxu0 0.0
    %2082 = vmatpush1.msra.mxu0 0.0
    %2083 = vmatprep.subr.mxu0 0.0
    %2084 = vmatpush1.msra.mxu0 0.0
    %2085 = vmatprep.subr.mxu0 0.0
    %2086 = vmatpush1.msra.mxu0 0.0
    %2087 = vmatprep.mubr.f32.mxu0 0.0
    %2088 = vmatmul.mubr.f32.gmra.mrb[0].mxu0 %v2021
    %v2089 = vpop.f32.mrb[0].mxu0
    %v2090 = vadd.f32 %v2019, %v2089
    %v2091 = vpop.f32.mrb[0].mxu0
    %2092 = vdwg.mxu0
    %v2093 = vmax.f32 %v2090, 0.0
    %vm2094 = vcmask 27648
    %2095 = vst.msk [vmem:[#allocation14] sm:$0xf] %vm2094, %v1655
    %2096 = vst.msk [vmem:[#allocation14 + $0x4] sm:$0xf] %vm2094, %v1801
    %2097 = vst.msk [vmem:[#allocation14 + $0x8] sm:$0xf] %vm2094, %v1947
    %2098 = vst.msk [vmem:[#allocation14 + $0xc] sm:$0xf] %vm2094, %v2093
    %s2099 = scalar_lea.vmem %s0, 16
    %v2100 = vld [vmem:[%s2099] sm:$0xff]
    %v2101 = vld [vmem:[%s2099 + $0x8] sm:$0xff]
    %2104 = vrot.lane.b32.xlu0 %v2100, 1
    %v2105 = vpop.permute.xlu0 %2104
    %2106 = vrot.lane.b32.xlu0 %v2101, 1
    %v2107 = vpop.permute.xlu0 %2106
    %v2110 = vsel %vm120, 0.0, %v2105
    %v2111 = vsel %vm120, 0.0, %v2107
    %v2112 = vsel %vm123, %v2110, 0.0
    %v2113 = vsel %vm123, %v2111, 0.0
    %v2116 = vrot.slane %v2112, 7
    %v2117 = vrot.slane %v2113, 7
    %v2118 = vsel %vm128, %v2116, %v2117
    %v2122 = vsel %vm128, 0.0, %v2116
    %v2123 = vsel %vm128, %v2117, 0.0
    %s2124 = sld [smem:[#allocation8]]
    %v2125 = vstv %s2124
    %v2126 = vmul.f32 %v2122, %v2125
    %v2127 = vmul.f32 %v2118, %v2125
    %s2128 = sld [smem:[#allocation8 + $0x9]]
    %v2129 = vstv %s2128
    %v2130 = vmul.f32 %v2122, %v2129
    %v2131 = vmul.f32 %v2118, %v2129
    %s2132 = sld [smem:[#allocation8 + $0x1]]
    %v2133 = vstv %s2132
    %v2134 = vmul.f32 %v2122, %v2133
    %v2135 = vmul.f32 %v2118, %v2133
    %2138 = vrot.lane.b32.xlu0 %v2134, 127
    %v2139 = vpop.permute.xlu0 %2138
    %2140 = vrot.lane.b32.xlu0 %v2135, 127
    %v2141 = vpop.permute.xlu0 %2140
    %v2144 = vadd.f32 %v2126, %v2139
    %v2145 = vadd.f32 %v2127, %v2141
    %s2146 = sld [smem:[#allocation8 + $0xa]]
    %v2147 = vstv %s2146
    %v2148 = vmul.f32 %v2122, %v2147
    %v2149 = vmul.f32 %v2118, %v2147
    %2152 = vrot.lane.b32.xlu0 %v2148, 127
    %v2153 = vpop.permute.xlu0 %2152
    %2154 = vrot.lane.b32.xlu0 %v2149, 127
    %v2155 = vpop.permute.xlu0 %2154
    %v2158 = vadd.f32 %v2130, %v2153
    %v2159 = vadd.f32 %v2131, %v2155
    %s2160 = sld [smem:[#allocation8 + $0x2]]
    %v2161 = vstv %s2160
    %v2162 = vmul.f32 %v2122, %v2161
    %v2163 = vmul.f32 %v2118, %v2161
    %2166 = vrot.lane.b32.xlu0 %v2162, 126
    %v2167 = vpop.permute.xlu0 %2166
    %2168 = vrot.lane.b32.xlu0 %v2163, 126
    %v2169 = vpop.permute.xlu0 %2168
    %v2172 = vadd.f32 %v2144, %v2167
    %v2173 = vadd.f32 %v2145, %v2169
    %s2174 = sld [smem:[#allocation8 + $0xb]]
    %v2175 = vstv %s2174
    %v2176 = vmul.f32 %v2122, %v2175
    %v2177 = vmul.f32 %v2118, %v2175
    %2180 = vrot.lane.b32.xlu0 %v2176, 126
    %v2181 = vpop.permute.xlu0 %2180
    %2182 = vrot.lane.b32.xlu0 %v2177, 126
    %v2183 = vpop.permute.xlu0 %2182
    %v2186 = vadd.f32 %v2158, %v2181
    %v2187 = vadd.f32 %v2159, %v2183
    %s2188 = sld [smem:[#allocation8 + $0x3]]
    %v2189 = vstv %s2188
    %v2190 = vmul.f32 %v2122, %v2189
    %v2191 = vmul.f32 %v2118, %v2189
    %v2192 = vmul.f32 %v2123, %v2189
    %v2196 = vrot.slane %v2190, 1
    %v2197 = vrot.slane %v2191, 1
    %v2198 = vsel %vm209, %v2196, %v2197
    %v2199 = vrot.slane %v2192, 1
    %v2200 = vsel %vm209, %v2197, %v2199
    %v2203 = vadd.f32 %v2172, %v2198
    %v2204 = vadd.f32 %v2173, %v2200
    %s2205 = sld [smem:[#allocation8 + $0xc]]
    %v2206 = vstv %s2205
    %v2207 = vmul.f32 %v2122, %v2206
    %v2208 = vmul.f32 %v2118, %v2206
    %v2209 = vmul.f32 %v2123, %v2206
    %v2213 = vrot.slane %v2207, 1
    %v2214 = vrot.slane %v2208, 1
    %v2215 = vsel %vm209, %v2213, %v2214
    %v2216 = vrot.slane %v2209, 1
    %v2217 = vsel %vm209, %v2214, %v2216
    %v2220 = vadd.f32 %v2186, %v2215
    %v2221 = vadd.f32 %v2187, %v2217
    %s2222 = sld [smem:[#allocation8 + $0x4]]
    %v2223 = vstv %s2222
    %v2224 = vmul.f32 %v2122, %v2223
    %v2225 = vmul.f32 %v2118, %v2223
    %v2226 = vmul.f32 %v2123, %v2223
    %v2230 = vrot.slane %v2224, 1
    %v2231 = vrot.slane %v2225, 1
    %v2232 = vsel %vm209, %v2230, %v2231
    %v2233 = vrot.slane %v2226, 1
    %v2234 = vsel %vm209, %v2231, %v2233
    %2235 = vrot.lane.b32.xlu0 %v2232, 127
    %v2236 = vpop.permute.xlu0 %2235
    %2237 = vrot.lane.b32.xlu0 %v2234, 127
    %v2238 = vpop.permute.xlu0 %2237
    %v2241 = vadd.f32 %v2203, %v2236
    %v2242 = vadd.f32 %v2204, %v2238
    %s2243 = sld [smem:[#allocation8 + $0xd]]
    %v2244 = vstv %s2243
    %v2245 = vmul.f32 %v2122, %v2244
    %v2246 = vmul.f32 %v2118, %v2244
    %v2247 = vmul.f32 %v2123, %v2244
    %v2251 = vrot.slane %v2245, 1
    %v2252 = vrot.slane %v2246, 1
    %v2253 = vsel %vm209, %v2251, %v2252
    %v2254 = vrot.slane %v2247, 1
    %v2255 = vsel %vm209, %v2252, %v2254
    %2256 = vrot.lane.b32.xlu0 %v2253, 127
    %v2257 = vpop.permute.xlu0 %2256
    %2258 = vrot.lane.b32.xlu0 %v2255, 127
    %v2259 = vpop.permute.xlu0 %2258
    %v2262 = vadd.f32 %v2220, %v2257
    %v2263 = vadd.f32 %v2221, %v2259
    %s2264 = sld [smem:[#allocation8 + $0x5]]
    %v2265 = vstv %s2264
    %v2266 = vmul.f32 %v2122, %v2265
    %v2267 = vmul.f32 %v2118, %v2265
    %v2268 = vmul.f32 %v2123, %v2265
    %v2272 = vrot.slane %v2266, 1
    %v2273 = vrot.slane %v2267, 1
    %v2274 = vsel %vm209, %v2272, %v2273
    %v2275 = vrot.slane %v2268, 1
    %v2276 = vsel %vm209, %v2273, %v2275
    %2277 = vrot.lane.b32.xlu0 %v2274, 126
    %v2278 = vpop.permute.xlu0 %2277
    %2279 = vrot.lane.b32.xlu0 %v2276, 126
    %v2280 = vpop.permute.xlu0 %2279
    %v2283 = vadd.f32 %v2241, %v2278
    %v2284 = vadd.f32 %v2242, %v2280
    %s2285 = sld [smem:[#allocation8 + $0xe]]
    %v2286 = vstv %s2285
    %v2287 = vmul.f32 %v2122, %v2286
    %v2288 = vmul.f32 %v2118, %v2286
    %v2289 = vmul.f32 %v2123, %v2286
    %v2293 = vrot.slane %v2287, 1
    %v2294 = vrot.slane %v2288, 1
    %v2295 = vsel %vm209, %v2293, %v2294
    %v2296 = vrot.slane %v2289, 1
    %v2297 = vsel %vm209, %v2294, %v2296
    %2298 = vrot.lane.b32.xlu0 %v2295, 126
    %v2299 = vpop.permute.xlu0 %2298
    %2300 = vrot.lane.b32.xlu0 %v2297, 126
    %v2301 = vpop.permute.xlu0 %2300
    %v2304 = vadd.f32 %v2262, %v2299
    %v2305 = vadd.f32 %v2263, %v2301
    %s2306 = sld [smem:[#allocation8 + $0x6]]
    %v2307 = vstv %s2306
    %v2308 = vmul.f32 %v2122, %v2307
    %v2309 = vmul.f32 %v2118, %v2307
    %v2310 = vmul.f32 %v2123, %v2307
    %v2314 = vrot.slane %v2308, 2
    %v2315 = vrot.slane %v2309, 2
    %v2316 = vsel %vm328, %v2314, %v2315
    %v2317 = vrot.slane %v2310, 2
    %v2318 = vsel %vm328, %v2315, %v2317
    %v2321 = vadd.f32 %v2283, %v2316
    %v2322 = vadd.f32 %v2284, %v2318
    %s2323 = sld [smem:[#allocation8 + $0xf]]
    %v2324 = vstv %s2323
    %v2325 = vmul.f32 %v2122, %v2324
    %v2326 = vmul.f32 %v2118, %v2324
    %v2327 = vmul.f32 %v2123, %v2324
    %v2331 = vrot.slane %v2325, 2
    %v2332 = vrot.slane %v2326, 2
    %v2333 = vsel %vm328, %v2331, %v2332
    %v2334 = vrot.slane %v2327, 2
    %v2335 = vsel %vm328, %v2332, %v2334
    %v2338 = vadd.f32 %v2304, %v2333
    %v2339 = vadd.f32 %v2305, %v2335
    %s2340 = sld [smem:[#allocation8 + $0x7]]
    %v2341 = vstv %s2340
    %v2342 = vmul.f32 %v2122, %v2341
    %v2343 = vmul.f32 %v2118, %v2341
    %v2344 = vmul.f32 %v2123, %v2341
    %v2348 = vrot.slane %v2342, 2
    %v2349 = vrot.slane %v2343, 2
    %v2350 = vsel %vm328, %v2348, %v2349
    %v2351 = vrot.slane %v2344, 2
    %v2352 = vsel %vm328, %v2349, %v2351
    %2353 = vrot.lane.b32.xlu0 %v2350, 127
    %v2354 = vpop.permute.xlu0 %2353
    %2355 = vrot.lane.b32.xlu0 %v2352, 127
    %v2356 = vpop.permute.xlu0 %2355
    %v2359 = vadd.f32 %v2321, %v2354
    %v2360 = vadd.f32 %v2322, %v2356
    %s2361 = sld [smem:[#allocation8 + $0x10]]
    %v2362 = vstv %s2361
    %v2363 = vmul.f32 %v2122, %v2362
    %v2364 = vmul.f32 %v2118, %v2362
    %v2365 = vmul.f32 %v2123, %v2362
    %v2369 = vrot.slane %v2363, 2
    %v2370 = vrot.slane %v2364, 2
    %v2371 = vsel %vm328, %v2369, %v2370
    %v2372 = vrot.slane %v2365, 2
    %v2373 = vsel %vm328, %v2370, %v2372
    %2374 = vrot.lane.b32.xlu0 %v2371, 127
    %v2375 = vpop.permute.xlu0 %2374
    %2376 = vrot.lane.b32.xlu0 %v2373, 127
    %v2377 = vpop.permute.xlu0 %2376
    %v2380 = vadd.f32 %v2338, %v2375
    %v2381 = vadd.f32 %v2339, %v2377
    %s2382 = sld [smem:[#allocation8 + $0x8]]
    %v2383 = vstv %s2382
    %v2384 = vmul.f32 %v2122, %v2383
    %v2385 = vmul.f32 %v2118, %v2383
    %v2386 = vmul.f32 %v2123, %v2383
    %v2390 = vrot.slane %v2384, 2
    %v2391 = vrot.slane %v2385, 2
    %v2392 = vsel %vm328, %v2390, %v2391
    %v2393 = vrot.slane %v2386, 2
    %v2394 = vsel %vm328, %v2391, %v2393
    %2395 = vrot.lane.b32.xlu0 %v2392, 126
    %v2396 = vpop.permute.xlu0 %2395
    %2397 = vrot.lane.b32.xlu0 %v2394, 126
    %v2398 = vpop.permute.xlu0 %2397
    %v2401 = vadd.f32 %v2359, %v2396
    %v2402 = vadd.f32 %v2360, %v2398
    %s2403 = sld [smem:[#allocation8 + $0x11]]
    %v2404 = vstv %s2403
    %v2405 = vmul.f32 %v2122, %v2404
    %v2406 = vmul.f32 %v2118, %v2404
    %v2407 = vmul.f32 %v2123, %v2404
    %v2411 = vrot.slane %v2405, 2
    %v2412 = vrot.slane %v2406, 2
    %v2413 = vsel %vm328, %v2411, %v2412
    %v2414 = vrot.slane %v2407, 2
    %v2415 = vsel %vm328, %v2412, %v2414
    %2416 = vrot.lane.b32.xlu0 %v2413, 126
    %v2417 = vpop.permute.xlu0 %2416
    %2418 = vrot.lane.b32.xlu0 %v2415, 126
    %v2419 = vpop.permute.xlu0 %2418
    %v2422 = vadd.f32 %v2380, %v2417
    %v2423 = vadd.f32 %v2381, %v2419
    %2424 = vmatprep.subr.mxu0 0.0
    %2425 = vmatpush1.msra.mxu0 %v2401
    %2426 = vmatprep.subr.mxu0 0.0
    %2427 = vmatpush1.msra.mxu0 %v2402
    %2428 = vmatprep.subr.mxu0 0.0
    %2429 = vmatpush1.msra.mxu0 0.0
    %2430 = vmatprep.subr.mxu0 0.0
    %2431 = vmatpush1.msra.mxu0 0.0
    %2432 = vmatprep.subr.mxu0 0.0
    %2433 = vmatpush1.msra.mxu0 0.0
    %2434 = vmatprep.subr.mxu0 0.0
    %2435 = vmatpush1.msra.mxu0 0.0
    %2436 = vmatprep.subr.mxu0 0.0
    %2437 = vmatpush1.msra.mxu0 0.0
    %2438 = vmatprep.subr.mxu0 0.0
    %2439 = vmatpush1.msra.mxu0 0.0
    %2440 = vmatprep.subr.mxu0 0.0
    %2441 = vmatpush1.msra.mxu0 0.0
    %2442 = vmatprep.subr.mxu0 0.0
    %2443 = vmatpush1.msra.mxu0 0.0
    %2444 = vmatprep.subr.mxu0 0.0
    %2445 = vmatpush1.msra.mxu0 0.0
    %2446 = vmatprep.subr.mxu0 0.0
    %2447 = vmatpush1.msra.mxu0 0.0
    %2448 = vmatprep.subr.mxu0 0.0
    %2449 = vmatpush1.msra.mxu0 0.0
    %2450 = vmatprep.subr.mxu0 0.0
    %2451 = vmatpush1.msra.mxu0 0.0
    %2452 = vmatprep.subr.mxu0 0.0
    %2453 = vmatpush1.msra.mxu0 0.0
    %2454 = vmatprep.subr.mxu0 0.0
    %2455 = vmatpush1.msra.mxu0 0.0
    %2456 = vmatprep.subr.mxu0 0.0
    %2457 = vmatpush1.msra.mxu0 0.0
    %2458 = vmatprep.subr.mxu0 0.0
    %2459 = vmatpush1.msra.mxu0 0.0
    %2460 = vmatprep.subr.mxu0 0.0
    %2461 = vmatpush1.msra.mxu0 0.0
    %2462 = vmatprep.subr.mxu0 0.0
    %2463 = vmatpush1.msra.mxu0 0.0
    %2464 = vmatprep.subr.mxu0 0.0
    %2465 = vmatpush1.msra.mxu0 0.0
    %2466 = vmatprep.subr.mxu0 0.0
    %2467 = vmatpush1.msra.mxu0 0.0
    %2468 = vmatprep.subr.mxu0 0.0
    %2469 = vmatpush1.msra.mxu0 0.0
    %2470 = vmatprep.subr.mxu0 0.0
    %2471 = vmatpush1.msra.mxu0 0.0
    %2472 = vmatprep.subr.mxu0 0.0
    %2473 = vmatpush1.msra.mxu0 0.0
    %2474 = vmatprep.subr.mxu0 0.0
    %2475 = vmatpush1.msra.mxu0 0.0
    %2476 = vmatprep.subr.mxu0 0.0
    %2477 = vmatpush1.msra.mxu0 0.0
    %2478 = vmatprep.subr.mxu0 0.0
    %2479 = vmatpush1.msra.mxu0 0.0
    %2480 = vmatprep.subr.mxu0 0.0
    %2481 = vmatpush1.msra.mxu0 0.0
    %2482 = vmatprep.subr.mxu0 0.0
    %2483 = vmatpush1.msra.mxu0 0.0
    %2484 = vmatprep.subr.mxu0 0.0
    %2485 = vmatpush1.msra.mxu0 0.0
    %2486 = vmatprep.subr.mxu0 0.0
    %2487 = vmatpush1.msra.mxu0 0.0
    %2488 = vmatprep.mubr.f32.mxu0 0.0
    %2489 = vmatmul.mubr.f32.gmra.mrb[0].mxu0 %v441
    %v2490 = vpop.f32.mrb[0].mxu0
    %v2491 = vadd.f32 0.0, %v2490
    %v2492 = vpop.f32.mrb[0].mxu0
    %2493 = vdwg.mxu0
    %s2494 = sld [smem:[#allocation9]]
    %v2495 = vstv %s2494
    %v2497 = vsel %vm439, %v2491, 0
    %2499 = vmatprep.subr.mxu0 0.0
    %2500 = vmatpush1.msra.mxu0 %v106
    %2501 = vmatprep.subr.mxu0 0.0
    %2502 = vmatpush1.msra.mxu0 %v107
    %2503 = vmatprep.subr.mxu0 0.0
    %2504 = vmatpush1.msra.mxu0 0.0
    %2505 = vmatprep.subr.mxu0 0.0
    %2506 = vmatpush1.msra.mxu0 0.0
    %2507 = vmatprep.subr.mxu0 0.0
    %2508 = vmatpush1.msra.mxu0 0.0
    %2509 = vmatprep.subr.mxu0 0.0
    %2510 = vmatpush1.msra.mxu0 0.0
    %2511 = vmatprep.subr.mxu0 0.0
    %2512 = vmatpush1.msra.mxu0 0.0
    %2513 = vmatprep.subr.mxu0 0.0
    %2514 = vmatpush1.msra.mxu0 0.0
    %2515 = vmatprep.subr.mxu0 0.0
    %2516 = vmatpush1.msra.mxu0 0.0
    %2517 = vmatprep.subr.mxu0 0.0
    %2518 = vmatpush1.msra.mxu0 0.0
    %2519 = vmatprep.subr.mxu0 0.0
    %2520 = vmatpush1.msra.mxu0 0.0
    %2521 = vmatprep.subr.mxu0 0.0
    %2522 = vmatpush1.msra.mxu0 0.0
    %2523 = vmatprep.subr.mxu0 0.0
    %2524 = vmatpush1.msra.mxu0 0.0
    %2525 = vmatprep.subr.mxu0 0.0
    %2526 = vmatpush1.msra.mxu0 0.0
    %2527 = vmatprep.subr.mxu0 0.0
    %2528 = vmatpush1.msra.mxu0 0.0
    %2529 = vmatprep.subr.mxu0 0.0
    %2530 = vmatpush1.msra.mxu0 0.0
    %2531 = vmatprep.subr.mxu0 0.0
    %2532 = vmatpush1.msra.mxu0 0.0
    %2533 = vmatprep.subr.mxu0 0.0
    %2534 = vmatpush1.msra.mxu0 0.0
    %2535 = vmatprep.subr.mxu0 0.0
    %2536 = vmatpush1.msra.mxu0 0.0
    %2537 = vmatprep.subr.mxu0 0.0
    %2538 = vmatpush1.msra.mxu0 0.0
    %2539 = vmatprep.subr.mxu0 0.0
    %2540 = vmatpush1.msra.mxu0 0.0
    %2541 = vmatprep.subr.mxu0 0.0
    %2542 = vmatpush1.msra.mxu0 0.0
    %2543 = vmatprep.subr.mxu0 0.0
    %2544 = vmatpush1.msra.mxu0 0.0
    %2545 = vmatprep.subr.mxu0 0.0
    %2546 = vmatpush1.msra.mxu0 0.0
    %2547 = vmatprep.subr.mxu0 0.0
    %2548 = vmatpush1.msra.mxu0 0.0
    %2549 = vmatprep.subr.mxu0 0.0
    %2550 = vmatpush1.msra.mxu0 0.0
    %2551 = vmatprep.subr.mxu0 0.0
    %2552 = vmatpush1.msra.mxu0 0.0
    %2553 = vmatprep.subr.mxu0 0.0
    %2554 = vmatpush1.msra.mxu0 0.0
    %2555 = vmatprep.subr.mxu0 0.0
    %2556 = vmatpush1.msra.mxu0 0.0
    %2557 = vmatprep.subr.mxu0 0.0
    %2558 = vmatpush1.msra.mxu0 0.0
    %2559 = vmatprep.subr.mxu0 0.0
    %2560 = vmatpush1.msra.mxu0 0.0
    %2561 = vmatprep.subr.mxu0 0.0
    %2562 = vmatpush1.msra.mxu0 0.0
    %2563 = vmatprep.mubr.f32.mxu0 0.0
    %2564 = vmatmul.mubr.f32.gmra.mrb[0].mxu0 %v2497
    %v2565 = vpop.f32.mrb[0].mxu0
    %v2566 = vadd.f32 %v2495, %v2565
    %v2567 = vpop.f32.mrb[0].mxu0
    %2568 = vdwg.mxu0
    %v2569 = vmax.f32 %v2566, 0.0
    %2570 = vmatprep.subr.mxu0 0.0
    %2571 = vmatpush1.msra.mxu0 %v2422
    %2572 = vmatprep.subr.mxu0 0.0
    %2573 = vmatpush1.msra.mxu0 %v2423
    %2574 = vmatprep.subr.mxu0 0.0
    %2575 = vmatpush1.msra.mxu0 0.0
    %2576 = vmatprep.subr.mxu0 0.0
    %2577 = vmatpush1.msra.mxu0 0.0
    %2578 = vmatprep.subr.mxu0 0.0
    %2579 = vmatpush1.msra.mxu0 0.0
    %2580 = vmatprep.subr.mxu0 0.0
    %2581 = vmatpush1.msra.mxu0 0.0
    %2582 = vmatprep.subr.mxu0 0.0
    %2583 = vmatpush1.msra.mxu0 0.0
    %2584 = vmatprep.subr.mxu0 0.0
    %2585 = vmatpush1.msra.mxu0 0.0
    %2586 = vmatprep.subr.mxu0 0.0
    %2587 = vmatpush1.msra.mxu0 0.0
    %2588 = vmatprep.subr.mxu0 0.0
    %2589 = vmatpush1.msra.mxu0 0.0
    %2590 = vmatprep.subr.mxu0 0.0
    %2591 = vmatpush1.msra.mxu0 0.0
    %2592 = vmatprep.subr.mxu0 0.0
    %2593 = vmatpush1.msra.mxu0 0.0
    %2594 = vmatprep.subr.mxu0 0.0
    %2595 = vmatpush1.msra.mxu0 0.0
    %2596 = vmatprep.subr.mxu0 0.0
    %2597 = vmatpush1.msra.mxu0 0.0
    %2598 = vmatprep.subr.mxu0 0.0
    %2599 = vmatpush1.msra.mxu0 0.0
    %2600 = vmatprep.subr.mxu0 0.0
    %2601 = vmatpush1.msra.mxu0 0.0
    %2602 = vmatprep.subr.mxu0 0.0
    %2603 = vmatpush1.msra.mxu0 0.0
    %2604 = vmatprep.subr.mxu0 0.0
    %2605 = vmatpush1.msra.mxu0 0.0
    %2606 = vmatprep.subr.mxu0 0.0
    %2607 = vmatpush1.msra.mxu0 0.0
    %2608 = vmatprep.subr.mxu0 0.0
    %2609 = vmatpush1.msra.mxu0 0.0
    %2610 = vmatprep.subr.mxu0 0.0
    %2611 = vmatpush1.msra.mxu0 0.0
    %2612 = vmatprep.subr.mxu0 0.0
    %2613 = vmatpush1.msra.mxu0 0.0
    %2614 = vmatprep.subr.mxu0 0.0
    %2615 = vmatpush1.msra.mxu0 0.0
    %2616 = vmatprep.subr.mxu0 0.0
    %2617 = vmatpush1.msra.mxu0 0.0
    %2618 = vmatprep.subr.mxu0 0.0
    %2619 = vmatpush1.msra.mxu0 0.0
    %2620 = vmatprep.subr.mxu0 0.0
    %2621 = vmatpush1.msra.mxu0 0.0
    %2622 = vmatprep.subr.mxu0 0.0
    %2623 = vmatpush1.msra.mxu0 0.0
    %2624 = vmatprep.subr.mxu0 0.0
    %2625 = vmatpush1.msra.mxu0 0.0
    %2626 = vmatprep.subr.mxu0 0.0
    %2627 = vmatpush1.msra.mxu0 0.0
    %2628 = vmatprep.subr.mxu0 0.0
    %2629 = vmatpush1.msra.mxu0 0.0
    %2630 = vmatprep.subr.mxu0 0.0
    %2631 = vmatpush1.msra.mxu0 0.0
    %2632 = vmatprep.subr.mxu0 0.0
    %2633 = vmatpush1.msra.mxu0 0.0
    %2634 = vmatprep.mubr.f32.mxu0 0.0
    %2635 = vmatmul.mubr.f32.gmra.mrb[0].mxu0 %v441
    %v2636 = vpop.f32.mrb[0].mxu0
    %v2637 = vadd.f32 0.0, %v2636
    %v2638 = vpop.f32.mrb[0].mxu0
    %2639 = vdwg.mxu0
    %s2640 = sld [smem:[#allocation9 + $0x1]]
    %v2641 = vstv %s2640
    %v2643 = vsel %vm439, %v2637, 0
    %2645 = vmatprep.subr.mxu0 0.0
    %2646 = vmatpush1.msra.mxu0 %v106
    %2647 = vmatprep.subr.mxu0 0.0
    %2648 = vmatpush1.msra.mxu0 %v107
    %2649 = vmatprep.subr.mxu0 0.0
    %2650 = vmatpush1.msra.mxu0 0.0
    %2651 = vmatprep.subr.mxu0 0.0
    %2652 = vmatpush1.msra.mxu0 0.0
    %2653 = vmatprep.subr.mxu0 0.0
    %2654 = vmatpush1.msra.mxu0 0.0
    %2655 = vmatprep.subr.mxu0 0.0
    %2656 = vmatpush1.msra.mxu0 0.0
    %2657 = vmatprep.subr.mxu0 0.0
    %2658 = vmatpush1.msra.mxu0 0.0
    %2659 = vmatprep.subr.mxu0 0.0
    %2660 = vmatpush1.msra.mxu0 0.0
    %2661 = vmatprep.subr.mxu0 0.0
    %2662 = vmatpush1.msra.mxu0 0.0
    %2663 = vmatprep.subr.mxu0 0.0
    %2664 = vmatpush1.msra.mxu0 0.0
    %2665 = vmatprep.subr.mxu0 0.0
    %2666 = vmatpush1.msra.mxu0 0.0
    %2667 = vmatprep.subr.mxu0 0.0
    %2668 = vmatpush1.msra.mxu0 0.0
    %2669 = vmatprep.subr.mxu0 0.0
    %2670 = vmatpush1.msra.mxu0 0.0
    %2671 = vmatprep.subr.mxu0 0.0
    %2672 = vmatpush1.msra.mxu0 0.0
    %2673 = vmatprep.subr.mxu0 0.0
    %2674 = vmatpush1.msra.mxu0 0.0
    %2675 = vmatprep.subr.mxu0 0.0
    %2676 = vmatpush1.msra.mxu0 0.0
    %2677 = vmatprep.subr.mxu0 0.0
    %2678 = vmatpush1.msra.mxu0 0.0
    %2679 = vmatprep.subr.mxu0 0.0
    %2680 = vmatpush1.msra.mxu0 0.0
    %2681 = vmatprep.subr.mxu0 0.0
    %2682 = vmatpush1.msra.mxu0 0.0
    %2683 = vmatprep.subr.mxu0 0.0
    %2684 = vmatpush1.msra.mxu0 0.0
    %2685 = vmatprep.subr.mxu0 0.0
    %2686 = vmatpush1.msra.mxu0 0.0
    %2687 = vmatprep.subr.mxu0 0.0
    %2688 = vmatpush1.msra.mxu0 0.0
    %2689 = vmatprep.subr.mxu0 0.0
    %2690 = vmatpush1.msra.mxu0 0.0
    %2691 = vmatprep.subr.mxu0 0.0
    %2692 = vmatpush1.msra.mxu0 0.0
    %2693 = vmatprep.subr.mxu0 0.0
    %2694 = vmatpush1.msra.mxu0 0.0
    %2695 = vmatprep.subr.mxu0 0.0
    %2696 = vmatpush1.msra.mxu0 0.0
    %2697 = vmatprep.subr.mxu0 0.0
    %2698 = vmatpush1.msra.mxu0 0.0
    %2699 = vmatprep.subr.mxu0 0.0
    %2700 = vmatpush1.msra.mxu0 0.0
    %2701 = vmatprep.subr.mxu0 0.0
    %2702 = vmatpush1.msra.mxu0 0.0
    %2703 = vmatprep.subr.mxu0 0.0
    %2704 = vmatpush1.msra.mxu0 0.0
    %2705 = vmatprep.subr.mxu0 0.0
    %2706 = vmatpush1.msra.mxu0 0.0
    %2707 = vmatprep.subr.mxu0 0.0
    %2708 = vmatpush1.msra.mxu0 0.0
    %2709 = vmatprep.mubr.f32.mxu0 0.0
    %2710 = vmatmul.mubr.f32.gmra.mrb[0].mxu0 %v2643
    %v2711 = vpop.f32.mrb[0].mxu0
    %v2712 = vadd.f32 %v2641, %v2711
    %v2713 = vpop.f32.mrb[0].mxu0
    %2714 = vdwg.mxu0
    %v2715 = vmax.f32 %v2712, 0.0
    %2717 = vrot.lane.b32.xlu0 %v2569, 1
    %v2718 = vpop.permute.xlu0 %2717
    %v2720 = vsel %vm120, 0.0, %v2718
    %v2721 = vsel %vm740, %v2720, 0.0
    %v2723 = vrot.slane %v2721, 7
    %v2725 = vsel %vm128, 0.0, %v2723
    %v2726 = vsel %vm128, %v2723, 0.0
    %s2727 = sld [smem:[#allocation11]]
    %v2728 = vstv %s2727
    %v2729 = vmul.f32 %v2725, %v2728
    %s2730 = sld [smem:[#allocation11 + $0x12]]
    %v2731 = vstv %s2730
    %v2732 = vmul.f32 %v2725, %v2731
    %s2733 = sld [smem:[#allocation11 + $0x24]]
    %v2734 = vstv %s2733
    %v2735 = vmul.f32 %v2725, %v2734
    %s2736 = sld [smem:[#allocation11 + $0x36]]
    %v2737 = vstv %s2736
    %v2738 = vmul.f32 %v2725, %v2737
    %s2739 = sld [smem:[#allocation11 + $0x1]]
    %v2740 = vstv %s2739
    %v2741 = vmul.f32 %v2725, %v2740
    %2743 = vrot.lane.b32.xlu0 %v2741, 127
    %v2744 = vpop.permute.xlu0 %2743
    %v2746 = vadd.f32 %v2729, %v2744
    %s2747 = sld [smem:[#allocation11 + $0x13]]
    %v2748 = vstv %s2747
    %v2749 = vmul.f32 %v2725, %v2748
    %2751 = vrot.lane.b32.xlu0 %v2749, 127
    %v2752 = vpop.permute.xlu0 %2751
    %v2754 = vadd.f32 %v2732, %v2752
    %s2755 = sld [smem:[#allocation11 + $0x25]]
    %v2756 = vstv %s2755
    %v2757 = vmul.f32 %v2725, %v2756
    %2759 = vrot.lane.b32.xlu0 %v2757, 127
    %v2760 = vpop.permute.xlu0 %2759
    %v2762 = vadd.f32 %v2735, %v2760
    %s2763 = sld [smem:[#allocation11 + $0x37]]
    %v2764 = vstv %s2763
    %v2765 = vmul.f32 %v2725, %v2764
    %2767 = vrot.lane.b32.xlu0 %v2765, 127
    %v2768 = vpop.permute.xlu0 %2767
    %v2770 = vadd.f32 %v2738, %v2768
    %s2771 = sld [smem:[#allocation11 + $0x2]]
    %v2772 = vstv %s2771
    %v2773 = vmul.f32 %v2725, %v2772
    %2775 = vrot.lane.b32.xlu0 %v2773, 126
    %v2776 = vpop.permute.xlu0 %2775
    %v2778 = vadd.f32 %v2746, %v2776
    %s2779 = sld [smem:[#allocation11 + $0x14]]
    %v2780 = vstv %s2779
    %v2781 = vmul.f32 %v2725, %v2780
    %2783 = vrot.lane.b32.xlu0 %v2781, 126
    %v2784 = vpop.permute.xlu0 %2783
    %v2786 = vadd.f32 %v2754, %v2784
    %s2787 = sld [smem:[#allocation11 + $0x26]]
    %v2788 = vstv %s2787
    %v2789 = vmul.f32 %v2725, %v2788
    %2791 = vrot.lane.b32.xlu0 %v2789, 126
    %v2792 = vpop.permute.xlu0 %2791
    %v2794 = vadd.f32 %v2762, %v2792
    %s2795 = sld [smem:[#allocation11 + $0x38]]
    %v2796 = vstv %s2795
    %v2797 = vmul.f32 %v2725, %v2796
    %2799 = vrot.lane.b32.xlu0 %v2797, 126
    %v2800 = vpop.permute.xlu0 %2799
    %v2802 = vadd.f32 %v2770, %v2800
    %s2803 = sld [smem:[#allocation11 + $0x3]]
    %v2804 = vstv %s2803
    %v2805 = vmul.f32 %v2725, %v2804
    %v2806 = vmul.f32 %v2726, %v2804
    %v2809 = vrot.slane %v2805, 1
    %v2810 = vrot.slane %v2806, 1
    %v2811 = vsel %vm209, %v2809, %v2810
    %v2813 = vadd.f32 %v2778, %v2811
    %s2814 = sld [smem:[#allocation11 + $0x15]]
    %v2815 = vstv %s2814
    %v2816 = vmul.f32 %v2725, %v2815
    %v2817 = vmul.f32 %v2726, %v2815
    %v2820 = vrot.slane %v2816, 1
    %v2821 = vrot.slane %v2817, 1
    %v2822 = vsel %vm209, %v2820, %v2821
    %v2824 = vadd.f32 %v2786, %v2822
    %s2825 = sld [smem:[#allocation11 + $0x27]]
    %v2826 = vstv %s2825
    %v2827 = vmul.f32 %v2725, %v2826
    %v2828 = vmul.f32 %v2726, %v2826
    %v2831 = vrot.slane %v2827, 1
    %v2832 = vrot.slane %v2828, 1
    %v2833 = vsel %vm209, %v2831, %v2832
    %v2835 = vadd.f32 %v2794, %v2833
    %s2836 = sld [smem:[#allocation11 + $0x39]]
    %v2837 = vstv %s2836
    %v2838 = vmul.f32 %v2725, %v2837
    %v2839 = vmul.f32 %v2726, %v2837
    %v2842 = vrot.slane %v2838, 1
    %v2843 = vrot.slane %v2839, 1
    %v2844 = vsel %vm209, %v2842, %v2843
    %v2846 = vadd.f32 %v2802, %v2844
    %s2847 = sld [smem:[#allocation11 + $0x4]]
    %v2848 = vstv %s2847
    %v2849 = vmul.f32 %v2725, %v2848
    %v2850 = vmul.f32 %v2726, %v2848
    %v2853 = vrot.slane %v2849, 1
    %v2854 = vrot.slane %v2850, 1
    %v2855 = vsel %vm209, %v2853, %v2854
    %2856 = vrot.lane.b32.xlu0 %v2855, 127
    %v2857 = vpop.permute.xlu0 %2856
    %v2859 = vadd.f32 %v2813, %v2857
    %s2860 = sld [smem:[#allocation11 + $0x16]]
    %v2861 = vstv %s2860
    %v2862 = vmul.f32 %v2725, %v2861
    %v2863 = vmul.f32 %v2726, %v2861
    %v2866 = vrot.slane %v2862, 1
    %v2867 = vrot.slane %v2863, 1
    %v2868 = vsel %vm209, %v2866, %v2867
    %2869 = vrot.lane.b32.xlu0 %v2868, 127
    %v2870 = vpop.permute.xlu0 %2869
    %v2872 = vadd.f32 %v2824, %v2870
    %s2873 = sld [smem:[#allocation11 + $0x28]]
    %v2874 = vstv %s2873
    %v2875 = vmul.f32 %v2725, %v2874
    %v2876 = vmul.f32 %v2726, %v2874
    %v2879 = vrot.slane %v2875, 1
    %v2880 = vrot.slane %v2876, 1
    %v2881 = vsel %vm209, %v2879, %v2880
    %2882 = vrot.lane.b32.xlu0 %v2881, 127
    %v2883 = vpop.permute.xlu0 %2882
    %v2885 = vadd.f32 %v2835, %v2883
    %s2886 = sld [smem:[#allocation11 + $0x3a]]
    %v2887 = vstv %s2886
    %v2888 = vmul.f32 %v2725, %v2887
    %v2889 = vmul.f32 %v2726, %v2887
    %v2892 = vrot.slane %v2888, 1
    %v2893 = vrot.slane %v2889, 1
    %v2894 = vsel %vm209, %v2892, %v2893
    %2895 = vrot.lane.b32.xlu0 %v2894, 127
    %v2896 = vpop.permute.xlu0 %2895
    %v2898 = vadd.f32 %v2846, %v2896
    %s2899 = sld [smem:[#allocation11 + $0x5]]
    %v2900 = vstv %s2899
    %v2901 = vmul.f32 %v2725, %v2900
    %v2902 = vmul.f32 %v2726, %v2900
    %v2905 = vrot.slane %v2901, 1
    %v2906 = vrot.slane %v2902, 1
    %v2907 = vsel %vm209, %v2905, %v2906
    %2908 = vrot.lane.b32.xlu0 %v2907, 126
    %v2909 = vpop.permute.xlu0 %2908
    %v2911 = vadd.f32 %v2859, %v2909
    %s2912 = sld [smem:[#allocation11 + $0x17]]
    %v2913 = vstv %s2912
    %v2914 = vmul.f32 %v2725, %v2913
    %v2915 = vmul.f32 %v2726, %v2913
    %v2918 = vrot.slane %v2914, 1
    %v2919 = vrot.slane %v2915, 1
    %v2920 = vsel %vm209, %v2918, %v2919
    %2921 = vrot.lane.b32.xlu0 %v2920, 126
    %v2922 = vpop.permute.xlu0 %2921
    %v2924 = vadd.f32 %v2872, %v2922
    %s2925 = sld [smem:[#allocation11 + $0x29]]
    %v2926 = vstv %s2925
    %v2927 = vmul.f32 %v2725, %v2926
    %v2928 = vmul.f32 %v2726, %v2926
    %v2931 = vrot.slane %v2927, 1
    %v2932 = vrot.slane %v2928, 1
    %v2933 = vsel %vm209, %v2931, %v2932
    %2934 = vrot.lane.b32.xlu0 %v2933, 126
    %v2935 = vpop.permute.xlu0 %2934
    %v2937 = vadd.f32 %v2885, %v2935
    %s2938 = sld [smem:[#allocation11 + $0x3b]]
    %v2939 = vstv %s2938
    %v2940 = vmul.f32 %v2725, %v2939
    %v2941 = vmul.f32 %v2726, %v2939
    %v2944 = vrot.slane %v2940, 1
    %v2945 = vrot.slane %v2941, 1
    %v2946 = vsel %vm209, %v2944, %v2945
    %2947 = vrot.lane.b32.xlu0 %v2946, 126
    %v2948 = vpop.permute.xlu0 %2947
    %v2950 = vadd.f32 %v2898, %v2948
    %s2951 = sld [smem:[#allocation11 + $0x6]]
    %v2952 = vstv %s2951
    %v2953 = vmul.f32 %v2725, %v2952
    %v2954 = vmul.f32 %v2726, %v2952
    %v2957 = vrot.slane %v2953, 2
    %v2958 = vrot.slane %v2954, 2
    %v2959 = vsel %vm328, %v2957, %v2958
    %v2961 = vadd.f32 %v2911, %v2959
    %s2962 = sld [smem:[#allocation11 + $0x18]]
    %v2963 = vstv %s2962
    %v2964 = vmul.f32 %v2725, %v2963
    %v2965 = vmul.f32 %v2726, %v2963
    %v2968 = vrot.slane %v2964, 2
    %v2969 = vrot.slane %v2965, 2
    %v2970 = vsel %vm328, %v2968, %v2969
    %v2972 = vadd.f32 %v2924, %v2970
    %s2973 = sld [smem:[#allocation11 + $0x2a]]
    %v2974 = vstv %s2973
    %v2975 = vmul.f32 %v2725, %v2974
    %v2976 = vmul.f32 %v2726, %v2974
    %v2979 = vrot.slane %v2975, 2
    %v2980 = vrot.slane %v2976, 2
    %v2981 = vsel %vm328, %v2979, %v2980
    %v2983 = vadd.f32 %v2937, %v2981
    %s2984 = sld [smem:[#allocation11 + $0x3c]]
    %v2985 = vstv %s2984
    %v2986 = vmul.f32 %v2725, %v2985
    %v2987 = vmul.f32 %v2726, %v2985
    %v2990 = vrot.slane %v2986, 2
    %v2991 = vrot.slane %v2987, 2
    %v2992 = vsel %vm328, %v2990, %v2991
    %v2994 = vadd.f32 %v2950, %v2992
    %s2995 = sld [smem:[#allocation11 + $0x7]]
    %v2996 = vstv %s2995
    %v2997 = vmul.f32 %v2725, %v2996
    %v2998 = vmul.f32 %v2726, %v2996
    %v3001 = vrot.slane %v2997, 2
    %v3002 = vrot.slane %v2998, 2
    %v3003 = vsel %vm328, %v3001, %v3002
    %3004 = vrot.lane.b32.xlu0 %v3003, 127
    %v3005 = vpop.permute.xlu0 %3004
    %v3007 = vadd.f32 %v2961, %v3005
    %s3008 = sld [smem:[#allocation11 + $0x19]]
    %v3009 = vstv %s3008
    %v3010 = vmul.f32 %v2725, %v3009
    %v3011 = vmul.f32 %v2726, %v3009
    %v3014 = vrot.slane %v3010, 2
    %v3015 = vrot.slane %v3011, 2
    %v3016 = vsel %vm328, %v3014, %v3015
    %3017 = vrot.lane.b32.xlu0 %v3016, 127
    %v3018 = vpop.permute.xlu0 %3017
    %v3020 = vadd.f32 %v2972, %v3018
    %s3021 = sld [smem:[#allocation11 + $0x2b]]
    %v3022 = vstv %s3021
    %v3023 = vmul.f32 %v2725, %v3022
    %v3024 = vmul.f32 %v2726, %v3022
    %v3027 = vrot.slane %v3023, 2
    %v3028 = vrot.slane %v3024, 2
    %v3029 = vsel %vm328, %v3027, %v3028
    %3030 = vrot.lane.b32.xlu0 %v3029, 127
    %v3031 = vpop.permute.xlu0 %3030
    %v3033 = vadd.f32 %v2983, %v3031
    %s3034 = sld [smem:[#allocation11 + $0x3d]]
    %v3035 = vstv %s3034
    %v3036 = vmul.f32 %v2725, %v3035
    %v3037 = vmul.f32 %v2726, %v3035
    %v3040 = vrot.slane %v3036, 2
    %v3041 = vrot.slane %v3037, 2
    %v3042 = vsel %vm328, %v3040, %v3041
    %3043 = vrot.lane.b32.xlu0 %v3042, 127
    %v3044 = vpop.permute.xlu0 %3043
    %v3046 = vadd.f32 %v2994, %v3044
    %s3047 = sld [smem:[#allocation11 + $0x8]]
    %v3048 = vstv %s3047
    %v3049 = vmul.f32 %v2725, %v3048
    %v3050 = vmul.f32 %v2726, %v3048
    %v3053 = vrot.slane %v3049, 2
    %v3054 = vrot.slane %v3050, 2
    %v3055 = vsel %vm328, %v3053, %v3054
    %3056 = vrot.lane.b32.xlu0 %v3055, 126
    %v3057 = vpop.permute.xlu0 %3056
    %v3059 = vadd.f32 %v3007, %v3057
    %s3060 = sld [smem:[#allocation11 + $0x1a]]
    %v3061 = vstv %s3060
    %v3062 = vmul.f32 %v2725, %v3061
    %v3063 = vmul.f32 %v2726, %v3061
    %v3066 = vrot.slane %v3062, 2
    %v3067 = vrot.slane %v3063, 2
    %v3068 = vsel %vm328, %v3066, %v3067
    %3069 = vrot.lane.b32.xlu0 %v3068, 126
    %v3070 = vpop.permute.xlu0 %3069
    %v3072 = vadd.f32 %v3020, %v3070
    %s3073 = sld [smem:[#allocation11 + $0x2c]]
    %v3074 = vstv %s3073
    %v3075 = vmul.f32 %v2725, %v3074
    %v3076 = vmul.f32 %v2726, %v3074
    %v3079 = vrot.slane %v3075, 2
    %v3080 = vrot.slane %v3076, 2
    %v3081 = vsel %vm328, %v3079, %v3080
    %3082 = vrot.lane.b32.xlu0 %v3081, 126
    %v3083 = vpop.permute.xlu0 %3082
    %v3085 = vadd.f32 %v3033, %v3083
    %s3086 = sld [smem:[#allocation11 + $0x3e]]
    %v3087 = vstv %s3086
    %v3088 = vmul.f32 %v2725, %v3087
    %v3089 = vmul.f32 %v2726, %v3087
    %v3092 = vrot.slane %v3088, 2
    %v3093 = vrot.slane %v3089, 2
    %v3094 = vsel %vm328, %v3092, %v3093
    %3095 = vrot.lane.b32.xlu0 %v3094, 126
    %v3096 = vpop.permute.xlu0 %3095
    %v3098 = vadd.f32 %v3046, %v3096
    %3100 = vrot.lane.b32.xlu0 %v2715, 1
    %v3101 = vpop.permute.xlu0 %3100
    %v3103 = vsel %vm120, 0.0, %v3101
    %v3104 = vsel %vm740, %v3103, 0.0
    %v3106 = vrot.slane %v3104, 7
    %v3108 = vsel %vm128, 0.0, %v3106
    %v3109 = vsel %vm128, %v3106, 0.0
    %s3110 = sld [smem:[#allocation11 + $0x9]]
    %v3111 = vstv %s3110
    %v3112 = vmul.f32 %v3108, %v3111
    %v3113 = vadd.f32 %v3059, %v3112
    %s3114 = sld [smem:[#allocation11 + $0x1b]]
    %v3115 = vstv %s3114
    %v3116 = vmul.f32 %v3108, %v3115
    %v3117 = vadd.f32 %v3072, %v3116
    %s3118 = sld [smem:[#allocation11 + $0x2d]]
    %v3119 = vstv %s3118
    %v3120 = vmul.f32 %v3108, %v3119
    %v3121 = vadd.f32 %v3085, %v3120
    %s3122 = sld [smem:[#allocation11 + $0x3f]]
    %v3123 = vstv %s3122
    %v3124 = vmul.f32 %v3108, %v3123
    %v3125 = vadd.f32 %v3098, %v3124
    %s3126 = sld [smem:[#allocation11 + $0xa]]
    %v3127 = vstv %s3126
    %v3128 = vmul.f32 %v3108, %v3127
    %3130 = vrot.lane.b32.xlu0 %v3128, 127
    %v3131 = vpop.permute.xlu0 %3130
    %v3133 = vadd.f32 %v3113, %v3131
    %s3134 = sld [smem:[#allocation11 + $0x1c]]
    %v3135 = vstv %s3134
    %v3136 = vmul.f32 %v3108, %v3135
    %3138 = vrot.lane.b32.xlu0 %v3136, 127
    %v3139 = vpop.permute.xlu0 %3138
    %v3141 = vadd.f32 %v3117, %v3139
    %s3142 = sld [smem:[#allocation11 + $0x2e]]
    %v3143 = vstv %s3142
    %v3144 = vmul.f32 %v3108, %v3143
    %3146 = vrot.lane.b32.xlu0 %v3144, 127
    %v3147 = vpop.permute.xlu0 %3146
    %v3149 = vadd.f32 %v3121, %v3147
    %s3150 = sld [smem:[#allocation11 + $0x40]]
    %v3151 = vstv %s3150
    %v3152 = vmul.f32 %v3108, %v3151
    %3154 = vrot.lane.b32.xlu0 %v3152, 127
    %v3155 = vpop.permute.xlu0 %3154
    %v3157 = vadd.f32 %v3125, %v3155
    %s3158 = sld [smem:[#allocation11 + $0xb]]
    %v3159 = vstv %s3158
    %v3160 = vmul.f32 %v3108, %v3159
    %3162 = vrot.lane.b32.xlu0 %v3160, 126
    %v3163 = vpop.permute.xlu0 %3162
    %v3165 = vadd.f32 %v3133, %v3163
    %s3166 = sld [smem:[#allocation11 + $0x1d]]
    %v3167 = vstv %s3166
    %v3168 = vmul.f32 %v3108, %v3167
    %3170 = vrot.lane.b32.xlu0 %v3168, 126
    %v3171 = vpop.permute.xlu0 %3170
    %v3173 = vadd.f32 %v3141, %v3171
    %s3174 = sld [smem:[#allocation11 + $0x2f]]
    %v3175 = vstv %s3174
    %v3176 = vmul.f32 %v3108, %v3175
    %3178 = vrot.lane.b32.xlu0 %v3176, 126
    %v3179 = vpop.permute.xlu0 %3178
    %v3181 = vadd.f32 %v3149, %v3179
    %s3182 = sld [smem:[#allocation11 + $0x41]]
    %v3183 = vstv %s3182
    %v3184 = vmul.f32 %v3108, %v3183
    %3186 = vrot.lane.b32.xlu0 %v3184, 126
    %v3187 = vpop.permute.xlu0 %3186
    %v3189 = vadd.f32 %v3157, %v3187
    %s3190 = sld [smem:[#allocation11 + $0xc]]
    %v3191 = vstv %s3190
    %v3192 = vmul.f32 %v3108, %v3191
    %v3193 = vmul.f32 %v3109, %v3191
    %v3196 = vrot.slane %v3192, 1
    %v3197 = vrot.slane %v3193, 1
    %v3198 = vsel %vm209, %v3196, %v3197
    %v3200 = vadd.f32 %v3165, %v3198
    %s3201 = sld [smem:[#allocation11 + $0x1e]]
    %v3202 = vstv %s3201
    %v3203 = vmul.f32 %v3108, %v3202
    %v3204 = vmul.f32 %v3109, %v3202
    %v3207 = vrot.slane %v3203, 1
    %v3208 = vrot.slane %v3204, 1
    %v3209 = vsel %vm209, %v3207, %v3208
    %v3211 = vadd.f32 %v3173, %v3209
    %s3212 = sld [smem:[#allocation11 + $0x30]]
    %v3213 = vstv %s3212
    %v3214 = vmul.f32 %v3108, %v3213
    %v3215 = vmul.f32 %v3109, %v3213
    %v3218 = vrot.slane %v3214, 1
    %v3219 = vrot.slane %v3215, 1
    %v3220 = vsel %vm209, %v3218, %v3219
    %v3222 = vadd.f32 %v3181, %v3220
    %s3223 = sld [smem:[#allocation11 + $0x42]]
    %v3224 = vstv %s3223
    %v3225 = vmul.f32 %v3108, %v3224
    %v3226 = vmul.f32 %v3109, %v3224
    %v3229 = vrot.slane %v3225, 1
    %v3230 = vrot.slane %v3226, 1
    %v3231 = vsel %vm209, %v3229, %v3230
    %v3233 = vadd.f32 %v3189, %v3231
    %s3234 = sld [smem:[#allocation11 + $0xd]]
    %v3235 = vstv %s3234
    %v3236 = vmul.f32 %v3108, %v3235
    %v3237 = vmul.f32 %v3109, %v3235
    %v3240 = vrot.slane %v3236, 1
    %v3241 = vrot.slane %v3237, 1
    %v3242 = vsel %vm209, %v3240, %v3241
    %3243 = vrot.lane.b32.xlu0 %v3242, 127
    %v3244 = vpop.permute.xlu0 %3243
    %v3246 = vadd.f32 %v3200, %v3244
    %s3247 = sld [smem:[#allocation11 + $0x1f]]
    %v3248 = vstv %s3247
    %v3249 = vmul.f32 %v3108, %v3248
    %v3250 = vmul.f32 %v3109, %v3248
    %v3253 = vrot.slane %v3249, 1
    %v3254 = vrot.slane %v3250, 1
    %v3255 = vsel %vm209, %v3253, %v3254
    %3256 = vrot.lane.b32.xlu0 %v3255, 127
    %v3257 = vpop.permute.xlu0 %3256
    %v3259 = vadd.f32 %v3211, %v3257
    %s3260 = sld [smem:[#allocation11 + $0x31]]
    %v3261 = vstv %s3260
    %v3262 = vmul.f32 %v3108, %v3261
    %v3263 = vmul.f32 %v3109, %v3261
    %v3266 = vrot.slane %v3262, 1
    %v3267 = vrot.slane %v3263, 1
    %v3268 = vsel %vm209, %v3266, %v3267
    %3269 = vrot.lane.b32.xlu0 %v3268, 127
    %v3270 = vpop.permute.xlu0 %3269
    %v3272 = vadd.f32 %v3222, %v3270
    %s3273 = sld [smem:[#allocation11 + $0x43]]
    %v3274 = vstv %s3273
    %v3275 = vmul.f32 %v3108, %v3274
    %v3276 = vmul.f32 %v3109, %v3274
    %v3279 = vrot.slane %v3275, 1
    %v3280 = vrot.slane %v3276, 1
    %v3281 = vsel %vm209, %v3279, %v3280
    %3282 = vrot.lane.b32.xlu0 %v3281, 127
    %v3283 = vpop.permute.xlu0 %3282
    %v3285 = vadd.f32 %v3233, %v3283
    %s3286 = sld [smem:[#allocation11 + $0xe]]
    %v3287 = vstv %s3286
    %v3288 = vmul.f32 %v3108, %v3287
    %v3289 = vmul.f32 %v3109, %v3287
    %v3292 = vrot.slane %v3288, 1
    %v3293 = vrot.slane %v3289, 1
    %v3294 = vsel %vm209, %v3292, %v3293
    %3295 = vrot.lane.b32.xlu0 %v3294, 126
    %v3296 = vpop.permute.xlu0 %3295
    %v3298 = vadd.f32 %v3246, %v3296
    %s3299 = sld [smem:[#allocation11 + $0x20]]
    %v3300 = vstv %s3299
    %v3301 = vmul.f32 %v3108, %v3300
    %v3302 = vmul.f32 %v3109, %v3300
    %v3305 = vrot.slane %v3301, 1
    %v3306 = vrot.slane %v3302, 1
    %v3307 = vsel %vm209, %v3305, %v3306
    %3308 = vrot.lane.b32.xlu0 %v3307, 126
    %v3309 = vpop.permute.xlu0 %3308
    %v3311 = vadd.f32 %v3259, %v3309
    %s3312 = sld [smem:[#allocation11 + $0x32]]
    %v3313 = vstv %s3312
    %v3314 = vmul.f32 %v3108, %v3313
    %v3315 = vmul.f32 %v3109, %v3313
    %v3318 = vrot.slane %v3314, 1
    %v3319 = vrot.slane %v3315, 1
    %v3320 = vsel %vm209, %v3318, %v3319
    %3321 = vrot.lane.b32.xlu0 %v3320, 126
    %v3322 = vpop.permute.xlu0 %3321
    %v3324 = vadd.f32 %v3272, %v3322
    %s3325 = sld [smem:[#allocation11 + $0x44]]
    %v3326 = vstv %s3325
    %v3327 = vmul.f32 %v3108, %v3326
    %v3328 = vmul.f32 %v3109, %v3326
    %v3331 = vrot.slane %v3327, 1
    %v3332 = vrot.slane %v3328, 1
    %v3333 = vsel %vm209, %v3331, %v3332
    %3334 = vrot.lane.b32.xlu0 %v3333, 126
    %v3335 = vpop.permute.xlu0 %3334
    %v3337 = vadd.f32 %v3285, %v3335
    %s3338 = sld [smem:[#allocation11 + $0xf]]
    %v3339 = vstv %s3338
    %v3340 = vmul.f32 %v3108, %v3339
    %v3341 = vmul.f32 %v3109, %v3339
    %v3344 = vrot.slane %v3340, 2
    %v3345 = vrot.slane %v3341, 2
    %v3346 = vsel %vm328, %v3344, %v3345
    %v3348 = vadd.f32 %v3298, %v3346
    %s3349 = sld [smem:[#allocation11 + $0x21]]
    %v3350 = vstv %s3349
    %v3351 = vmul.f32 %v3108, %v3350
    %v3352 = vmul.f32 %v3109, %v3350
    %v3355 = vrot.slane %v3351, 2
    %v3356 = vrot.slane %v3352, 2
    %v3357 = vsel %vm328, %v3355, %v3356
    %v3359 = vadd.f32 %v3311, %v3357
    %s3360 = sld [smem:[#allocation11 + $0x33]]
    %v3361 = vstv %s3360
    %v3362 = vmul.f32 %v3108, %v3361
    %v3363 = vmul.f32 %v3109, %v3361
    %v3366 = vrot.slane %v3362, 2
    %v3367 = vrot.slane %v3363, 2
    %v3368 = vsel %vm328, %v3366, %v3367
    %v3370 = vadd.f32 %v3324, %v3368
    %s3371 = sld [smem:[#allocation11 + $0x45]]
    %v3372 = vstv %s3371
    %v3373 = vmul.f32 %v3108, %v3372
    %v3374 = vmul.f32 %v3109, %v3372
    %v3377 = vrot.slane %v3373, 2
    %v3378 = vrot.slane %v3374, 2
    %v3379 = vsel %vm328, %v3377, %v3378
    %v3381 = vadd.f32 %v3337, %v3379
    %s3382 = sld [smem:[#allocation11 + $0x10]]
    %v3383 = vstv %s3382
    %v3384 = vmul.f32 %v3108, %v3383
    %v3385 = vmul.f32 %v3109, %v3383
    %v3388 = vrot.slane %v3384, 2
    %v3389 = vrot.slane %v3385, 2
    %v3390 = vsel %vm328, %v3388, %v3389
    %3391 = vrot.lane.b32.xlu0 %v3390, 127
    %v3392 = vpop.permute.xlu0 %3391
    %v3394 = vadd.f32 %v3348, %v3392
    %s3395 = sld [smem:[#allocation11 + $0x22]]
    %v3396 = vstv %s3395
    %v3397 = vmul.f32 %v3108, %v3396
    %v3398 = vmul.f32 %v3109, %v3396
    %v3401 = vrot.slane %v3397, 2
    %v3402 = vrot.slane %v3398, 2
    %v3403 = vsel %vm328, %v3401, %v3402
    %3404 = vrot.lane.b32.xlu0 %v3403, 127
    %v3405 = vpop.permute.xlu0 %3404
    %v3407 = vadd.f32 %v3359, %v3405
    %s3408 = sld [smem:[#allocation11 + $0x34]]
    %v3409 = vstv %s3408
    %v3410 = vmul.f32 %v3108, %v3409
    %v3411 = vmul.f32 %v3109, %v3409
    %v3414 = vrot.slane %v3410, 2
    %v3415 = vrot.slane %v3411, 2
    %v3416 = vsel %vm328, %v3414, %v3415
    %3417 = vrot.lane.b32.xlu0 %v3416, 127
    %v3418 = vpop.permute.xlu0 %3417
    %v3420 = vadd.f32 %v3370, %v3418
    %s3421 = sld [smem:[#allocation11 + $0x46]]
    %v3422 = vstv %s3421
    %v3423 = vmul.f32 %v3108, %v3422
    %v3424 = vmul.f32 %v3109, %v3422
    %v3427 = vrot.slane %v3423, 2
    %v3428 = vrot.slane %v3424, 2
    %v3429 = vsel %vm328, %v3427, %v3428
    %3430 = vrot.lane.b32.xlu0 %v3429, 127
    %v3431 = vpop.permute.xlu0 %3430
    %v3433 = vadd.f32 %v3381, %v3431
    %s3434 = sld [smem:[#allocation11 + $0x11]]
    %v3435 = vstv %s3434
    %v3436 = vmul.f32 %v3108, %v3435
    %v3437 = vmul.f32 %v3109, %v3435
    %v3440 = vrot.slane %v3436, 2
    %v3441 = vrot.slane %v3437, 2
    %v3442 = vsel %vm328, %v3440, %v3441
    %3443 = vrot.lane.b32.xlu0 %v3442, 126
    %v3444 = vpop.permute.xlu0 %3443
    %v3446 = vadd.f32 %v3394, %v3444
    %s3447 = sld [smem:[#allocation11 + $0x23]]
    %v3448 = vstv %s3447
    %v3449 = vmul.f32 %v3108, %v3448
    %v3450 = vmul.f32 %v3109, %v3448
    %v3453 = vrot.slane %v3449, 2
    %v3454 = vrot.slane %v3450, 2
    %v3455 = vsel %vm328, %v3453, %v3454
    %3456 = vrot.lane.b32.xlu0 %v3455, 126
    %v3457 = vpop.permute.xlu0 %3456
    %v3459 = vadd.f32 %v3407, %v3457
    %s3460 = sld [smem:[#allocation11 + $0x35]]
    %v3461 = vstv %s3460
    %v3462 = vmul.f32 %v3108, %v3461
    %v3463 = vmul.f32 %v3109, %v3461
    %v3466 = vrot.slane %v3462, 2
    %v3467 = vrot.slane %v3463, 2
    %v3468 = vsel %vm328, %v3466, %v3467
    %3469 = vrot.lane.b32.xlu0 %v3468, 126
    %v3470 = vpop.permute.xlu0 %3469
    %v3472 = vadd.f32 %v3420, %v3470
    %s3473 = sld [smem:[#allocation11 + $0x47]]
    %v3474 = vstv %s3473
    %v3475 = vmul.f32 %v3108, %v3474
    %v3476 = vmul.f32 %v3109, %v3474
    %v3479 = vrot.slane %v3475, 2
    %v3480 = vrot.slane %v3476, 2
    %v3481 = vsel %vm328, %v3479, %v3480
    %3482 = vrot.lane.b32.xlu0 %v3481, 126
    %v3483 = vpop.permute.xlu0 %3482
    %v3485 = vadd.f32 %v3433, %v3483
    %3486 = vmatprep.subr.mxu0 0.0
    %3487 = vmatpush1.msra.mxu0 %v3446
    %3488 = vmatprep.subr.mxu0 0.0
    %3489 = vmatpush1.msra.mxu0 0.0
    %3490 = vmatprep.subr.mxu0 0.0
    %3491 = vmatpush1.msra.mxu0 0.0
    %3492 = vmatprep.subr.mxu0 0.0
    %3493 = vmatpush1.msra.mxu0 0.0
    %3494 = vmatprep.subr.mxu0 0.0
    %3495 = vmatpush1.msra.mxu0 0.0
    %3496 = vmatprep.subr.mxu0 0.0
    %3497 = vmatpush1.msra.mxu0 0.0
    %3498 = vmatprep.subr.mxu0 0.0
    %3499 = vmatpush1.msra.mxu0 0.0
    %3500 = vmatprep.subr.mxu0 0.0
    %3501 = vmatpush1.msra.mxu0 0.0
    %3502 = vmatprep.subr.mxu0 0.0
    %3503 = vmatpush1.msra.mxu0 0.0
    %3504 = vmatprep.subr.mxu0 0.0
    %3505 = vmatpush1.msra.mxu0 0.0
    %3506 = vmatprep.subr.mxu0 0.0
    %3507 = vmatpush1.msra.mxu0 0.0
    %3508 = vmatprep.subr.mxu0 0.0
    %3509 = vmatpush1.msra.mxu0 0.0
    %3510 = vmatprep.subr.mxu0 0.0
    %3511 = vmatpush1.msra.mxu0 0.0
    %3512 = vmatprep.subr.mxu0 0.0
    %3513 = vmatpush1.msra.mxu0 0.0
    %3514 = vmatprep.subr.mxu0 0.0
    %3515 = vmatpush1.msra.mxu0 0.0
    %3516 = vmatprep.subr.mxu0 0.0
    %3517 = vmatpush1.msra.mxu0 0.0
    %3518 = vmatprep.subr.mxu0 0.0
    %3519 = vmatpush1.msra.mxu0 0.0
    %3520 = vmatprep.subr.mxu0 0.0
    %3521 = vmatpush1.msra.mxu0 0.0
    %3522 = vmatprep.subr.mxu0 0.0
    %3523 = vmatpush1.msra.mxu0 0.0
    %3524 = vmatprep.subr.mxu0 0.0
    %3525 = vmatpush1.msra.mxu0 0.0
    %3526 = vmatprep.subr.mxu0 0.0
    %3527 = vmatpush1.msra.mxu0 0.0
    %3528 = vmatprep.subr.mxu0 0.0
    %3529 = vmatpush1.msra.mxu0 0.0
    %3530 = vmatprep.subr.mxu0 0.0
    %3531 = vmatpush1.msra.mxu0 0.0
    %3532 = vmatprep.subr.mxu0 0.0
    %3533 = vmatpush1.msra.mxu0 0.0
    %3534 = vmatprep.subr.mxu0 0.0
    %3535 = vmatpush1.msra.mxu0 0.0
    %3536 = vmatprep.subr.mxu0 0.0
    %3537 = vmatpush1.msra.mxu0 0.0
    %3538 = vmatprep.subr.mxu0 0.0
    %3539 = vmatpush1.msra.mxu0 0.0
    %3540 = vmatprep.subr.mxu0 0.0
    %3541 = vmatpush1.msra.mxu0 0.0
    %3542 = vmatprep.subr.mxu0 0.0
    %3543 = vmatpush1.msra.mxu0 0.0
    %3544 = vmatprep.subr.mxu0 0.0
    %3545 = vmatpush1.msra.mxu0 0.0
    %3546 = vmatprep.subr.mxu0 0.0
    %3547 = vmatpush1.msra.mxu0 0.0
    %3548 = vmatprep.subr.mxu0 0.0
    %3549 = vmatpush1.msra.mxu0 0.0
    %3550 = vmatprep.mubr.f32.mxu0 0.0
    %3551 = vmatmul.mubr.f32.gmra.mrb[0].mxu0 %v1508
    %v3552 = vpop.f32.mrb[0].mxu0
    %v3553 = vadd.f32 0.0, %v3552
    %v3554 = vpop.f32.mrb[0].mxu0
    %3555 = vdwg.mxu0
    %s3556 = sld [smem:[#allocation12]]
    %v3557 = vstv %s3556
    %v3559 = vsel %vm1506, %v3553, 0
    %3561 = vmatprep.subr.mxu0 0.0
    %3562 = vmatpush1.msra.mxu0 %v109
    %3563 = vmatprep.subr.mxu0 0.0
    %3564 = vmatpush1.msra.mxu0 0.0
    %3565 = vmatprep.subr.mxu0 0.0
    %3566 = vmatpush1.msra.mxu0 0.0
    %3567 = vmatprep.subr.mxu0 0.0
    %3568 = vmatpush1.msra.mxu0 0.0
    %3569 = vmatprep.subr.mxu0 0.0
    %3570 = vmatpush1.msra.mxu0 0.0
    %3571 = vmatprep.subr.mxu0 0.0
    %3572 = vmatpush1.msra.mxu0 0.0
    %3573 = vmatprep.subr.mxu0 0.0
    %3574 = vmatpush1.msra.mxu0 0.0
    %3575 = vmatprep.subr.mxu0 0.0
    %3576 = vmatpush1.msra.mxu0 0.0
    %3577 = vmatprep.subr.mxu0 0.0
    %3578 = vmatpush1.msra.mxu0 0.0
    %3579 = vmatprep.subr.mxu0 0.0
    %3580 = vmatpush1.msra.mxu0 0.0
    %3581 = vmatprep.subr.mxu0 0.0
    %3582 = vmatpush1.msra.mxu0 0.0
    %3583 = vmatprep.subr.mxu0 0.0
    %3584 = vmatpush1.msra.mxu0 0.0
    %3585 = vmatprep.subr.mxu0 0.0
    %3586 = vmatpush1.msra.mxu0 0.0
    %3587 = vmatprep.subr.mxu0 0.0
    %3588 = vmatpush1.msra.mxu0 0.0
    %3589 = vmatprep.subr.mxu0 0.0
    %3590 = vmatpush1.msra.mxu0 0.0
    %3591 = vmatprep.subr.mxu0 0.0
    %3592 = vmatpush1.msra.mxu0 0.0
    %3593 = vmatprep.subr.mxu0 0.0
    %3594 = vmatpush1.msra.mxu0 0.0
    %3595 = vmatprep.subr.mxu0 0.0
    %3596 = vmatpush1.msra.mxu0 0.0
    %3597 = vmatprep.subr.mxu0 0.0
    %3598 = vmatpush1.msra.mxu0 0.0
    %3599 = vmatprep.subr.mxu0 0.0
    %3600 = vmatpush1.msra.mxu0 0.0
    %3601 = vmatprep.subr.mxu0 0.0
    %3602 = vmatpush1.msra.mxu0 0.0
    %3603 = vmatprep.subr.mxu0 0.0
    %3604 = vmatpush1.msra.mxu0 0.0
    %3605 = vmatprep.subr.mxu0 0.0
    %3606 = vmatpush1.msra.mxu0 0.0
    %3607 = vmatprep.subr.mxu0 0.0
    %3608 = vmatpush1.msra.mxu0 0.0
    %3609 = vmatprep.subr.mxu0 0.0
    %3610 = vmatpush1.msra.mxu0 0.0
    %3611 = vmatprep.subr.mxu0 0.0
    %3612 = vmatpush1.msra.mxu0 0.0
    %3613 = vmatprep.subr.mxu0 0.0
    %3614 = vmatpush1.msra.mxu0 0.0
    %3615 = vmatprep.subr.mxu0 0.0
    %3616 = vmatpush1.msra.mxu0 0.0
    %3617 = vmatprep.subr.mxu0 0.0
    %3618 = vmatpush1.msra.mxu0 0.0
    %3619 = vmatprep.subr.mxu0 0.0
    %3620 = vmatpush1.msra.mxu0 0.0
    %3621 = vmatprep.subr.mxu0 0.0
    %3622 = vmatpush1.msra.mxu0 0.0
    %3623 = vmatprep.subr.mxu0 0.0
    %3624 = vmatpush1.msra.mxu0 0.0
    %3625 = vmatprep.mubr.f32.mxu0 0.0
    %3626 = vmatmul.mubr.f32.gmra.mrb[0].mxu0 %v3559
    %v3627 = vpop.f32.mrb[0].mxu0
    %v3628 = vadd.f32 %v3557, %v3627
    %v3629 = vpop.f32.mrb[0].mxu0
    %3630 = vdwg.mxu0
    %v3631 = vmax.f32 %v3628, 0.0
    %3632 = vmatprep.subr.mxu0 0.0
    %3633 = vmatpush1.msra.mxu0 %v3459
    %3634 = vmatprep.subr.mxu0 0.0
    %3635 = vmatpush1.msra.mxu0 0.0
    %3636 = vmatprep.subr.mxu0 0.0
    %3637 = vmatpush1.msra.mxu0 0.0
    %3638 = vmatprep.subr.mxu0 0.0
    %3639 = vmatpush1.msra.mxu0 0.0
    %3640 = vmatprep.subr.mxu0 0.0
    %3641 = vmatpush1.msra.mxu0 0.0
    %3642 = vmatprep.subr.mxu0 0.0
    %3643 = vmatpush1.msra.mxu0 0.0
    %3644 = vmatprep.subr.mxu0 0.0
    %3645 = vmatpush1.msra.mxu0 0.0
    %3646 = vmatprep.subr.mxu0 0.0
    %3647 = vmatpush1.msra.mxu0 0.0
    %3648 = vmatprep.subr.mxu0 0.0
    %3649 = vmatpush1.msra.mxu0 0.0
    %3650 = vmatprep.subr.mxu0 0.0
    %3651 = vmatpush1.msra.mxu0 0.0
    %3652 = vmatprep.subr.mxu0 0.0
    %3653 = vmatpush1.msra.mxu0 0.0
    %3654 = vmatprep.subr.mxu0 0.0
    %3655 = vmatpush1.msra.mxu0 0.0
    %3656 = vmatprep.subr.mxu0 0.0
    %3657 = vmatpush1.msra.mxu0 0.0
    %3658 = vmatprep.subr.mxu0 0.0
    %3659 = vmatpush1.msra.mxu0 0.0
    %3660 = vmatprep.subr.mxu0 0.0
    %3661 = vmatpush1.msra.mxu0 0.0
    %3662 = vmatprep.subr.mxu0 0.0
    %3663 = vmatpush1.msra.mxu0 0.0
    %3664 = vmatprep.subr.mxu0 0.0
    %3665 = vmatpush1.msra.mxu0 0.0
    %3666 = vmatprep.subr.mxu0 0.0
    %3667 = vmatpush1.msra.mxu0 0.0
    %3668 = vmatprep.subr.mxu0 0.0
    %3669 = vmatpush1.msra.mxu0 0.0
    %3670 = vmatprep.subr.mxu0 0.0
    %3671 = vmatpush1.msra.mxu0 0.0
    %3672 = vmatprep.subr.mxu0 0.0
    %3673 = vmatpush1.msra.mxu0 0.0
    %3674 = vmatprep.subr.mxu0 0.0
    %3675 = vmatpush1.msra.mxu0 0.0
    %3676 = vmatprep.subr.mxu0 0.0
    %3677 = vmatpush1.msra.mxu0 0.0
    %3678 = vmatprep.subr.mxu0 0.0
    %3679 = vmatpush1.msra.mxu0 0.0
    %3680 = vmatprep.subr.mxu0 0.0
    %3681 = vmatpush1.msra.mxu0 0.0
    %3682 = vmatprep.subr.mxu0 0.0
    %3683 = vmatpush1.msra.mxu0 0.0
    %3684 = vmatprep.subr.mxu0 0.0
    %3685 = vmatpush1.msra.mxu0 0.0
    %3686 = vmatprep.subr.mxu0 0.0
    %3687 = vmatpush1.msra.mxu0 0.0
    %3688 = vmatprep.subr.mxu0 0.0
    %3689 = vmatpush1.msra.mxu0 0.0
    %3690 = vmatprep.subr.mxu0 0.0
    %3691 = vmatpush1.msra.mxu0 0.0
    %3692 = vmatprep.subr.mxu0 0.0
    %3693 = vmatpush1.msra.mxu0 0.0
    %3694 = vmatprep.subr.mxu0 0.0
    %3695 = vmatpush1.msra.mxu0 0.0
    %3696 = vmatprep.mubr.f32.mxu0 0.0
    %3697 = vmatmul.mubr.f32.gmra.mrb[0].mxu0 %v1508
    %v3698 = vpop.f32.mrb[0].mxu0
    %v3699 = vadd.f32 0.0, %v3698
    %v3700 = vpop.f32.mrb[0].mxu0
    %3701 = vdwg.mxu0
    %s3702 = sld [smem:[#allocation12 + $0x1]]
    %v3703 = vstv %s3702
    %v3705 = vsel %vm1506, %v3699, 0
    %3707 = vmatprep.subr.mxu0 0.0
    %3708 = vmatpush1.msra.mxu0 %v109
    %3709 = vmatprep.subr.mxu0 0.0
    %3710 = vmatpush1.msra.mxu0 0.0
    %3711 = vmatprep.subr.mxu0 0.0
    %3712 = vmatpush1.msra.mxu0 0.0
    %3713 = vmatprep.subr.mxu0 0.0
    %3714 = vmatpush1.msra.mxu0 0.0
    %3715 = vmatprep.subr.mxu0 0.0
    %3716 = vmatpush1.msra.mxu0 0.0
    %3717 = vmatprep.subr.mxu0 0.0
    %3718 = vmatpush1.msra.mxu0 0.0
    %3719 = vmatprep.subr.mxu0 0.0
    %3720 = vmatpush1.msra.mxu0 0.0
    %3721 = vmatprep.subr.mxu0 0.0
    %3722 = vmatpush1.msra.mxu0 0.0
    %3723 = vmatprep.subr.mxu0 0.0
    %3724 = vmatpush1.msra.mxu0 0.0
    %3725 = vmatprep.subr.mxu0 0.0
    %3726 = vmatpush1.msra.mxu0 0.0
    %3727 = vmatprep.subr.mxu0 0.0
    %3728 = vmatpush1.msra.mxu0 0.0
    %3729 = vmatprep.subr.mxu0 0.0
    %3730 = vmatpush1.msra.mxu0 0.0
    %3731 = vmatprep.subr.mxu0 0.0
    %3732 = vmatpush1.msra.mxu0 0.0
    %3733 = vmatprep.subr.mxu0 0.0
    %3734 = vmatpush1.msra.mxu0 0.0
    %3735 = vmatprep.subr.mxu0 0.0
    %3736 = vmatpush1.msra.mxu0 0.0
    %3737 = vmatprep.subr.mxu0 0.0
    %3738 = vmatpush1.msra.mxu0 0.0
    %3739 = vmatprep.subr.mxu0 0.0
    %3740 = vmatpush1.msra.mxu0 0.0
    %3741 = vmatprep.subr.mxu0 0.0
    %3742 = vmatpush1.msra.mxu0 0.0
    %3743 = vmatprep.subr.mxu0 0.0
    %3744 = vmatpush1.msra.mxu0 0.0
    %3745 = vmatprep.subr.mxu0 0.0
    %3746 = vmatpush1.msra.mxu0 0.0
    %3747 = vmatprep.subr.mxu0 0.0
    %3748 = vmatpush1.msra.mxu0 0.0
    %3749 = vmatprep.subr.mxu0 0.0
    %3750 = vmatpush1.msra.mxu0 0.0
    %3751 = vmatprep.subr.mxu0 0.0
    %3752 = vmatpush1.msra.mxu0 0.0
    %3753 = vmatprep.subr.mxu0 0.0
    %3754 = vmatpush1.msra.mxu0 0.0
    %3755 = vmatprep.subr.mxu0 0.0
    %3756 = vmatpush1.msra.mxu0 0.0
    %3757 = vmatprep.subr.mxu0 0.0
    %3758 = vmatpush1.msra.mxu0 0.0
    %3759 = vmatprep.subr.mxu0 0.0
    %3760 = vmatpush1.msra.mxu0 0.0
    %3761 = vmatprep.subr.mxu0 0.0
    %3762 = vmatpush1.msra.mxu0 0.0
    %3763 = vmatprep.subr.mxu0 0.0
    %3764 = vmatpush1.msra.mxu0 0.0
    %3765 = vmatprep.subr.mxu0 0.0
    %3766 = vmatpush1.msra.mxu0 0.0
    %3767 = vmatprep.subr.mxu0 0.0
    %3768 = vmatpush1.msra.mxu0 0.0
    %3769 = vmatprep.subr.mxu0 0.0
    %3770 = vmatpush1.msra.mxu0 0.0
    %3771 = vmatprep.mubr.f32.mxu0 0.0
    %3772 = vmatmul.mubr.f32.gmra.mrb[0].mxu0 %v3705
    %v3773 = vpop.f32.mrb[0].mxu0
    %v3774 = vadd.f32 %v3703, %v3773
    %v3775 = vpop.f32.mrb[0].mxu0
    %3776 = vdwg.mxu0
    %v3777 = vmax.f32 %v3774, 0.0
    %3778 = vmatprep.subr.mxu0 0.0
    %3779 = vmatpush1.msra.mxu0 %v3472
    %3780 = vmatprep.subr.mxu0 0.0
    %3781 = vmatpush1.msra.mxu0 0.0
    %3782 = vmatprep.subr.mxu0 0.0
    %3783 = vmatpush1.msra.mxu0 0.0
    %3784 = vmatprep.subr.mxu0 0.0
    %3785 = vmatpush1.msra.mxu0 0.0
    %3786 = vmatprep.subr.mxu0 0.0
    %3787 = vmatpush1.msra.mxu0 0.0
    %3788 = vmatprep.subr.mxu0 0.0
    %3789 = vmatpush1.msra.mxu0 0.0
    %3790 = vmatprep.subr.mxu0 0.0
    %3791 = vmatpush1.msra.mxu0 0.0
    %3792 = vmatprep.subr.mxu0 0.0
    %3793 = vmatpush1.msra.mxu0 0.0
    %3794 = vmatprep.subr.mxu0 0.0
    %3795 = vmatpush1.msra.mxu0 0.0
    %3796 = vmatprep.subr.mxu0 0.0
    %3797 = vmatpush1.msra.mxu0 0.0
    %3798 = vmatprep.subr.mxu0 0.0
    %3799 = vmatpush1.msra.mxu0 0.0
    %3800 = vmatprep.subr.mxu0 0.0
    %3801 = vmatpush1.msra.mxu0 0.0
    %3802 = vmatprep.subr.mxu0 0.0
    %3803 = vmatpush1.msra.mxu0 0.0
    %3804 = vmatprep.subr.mxu0 0.0
    %3805 = vmatpush1.msra.mxu0 0.0
    %3806 = vmatprep.subr.mxu0 0.0
    %3807 = vmatpush1.msra.mxu0 0.0
    %3808 = vmatprep.subr.mxu0 0.0
    %3809 = vmatpush1.msra.mxu0 0.0
    %3810 = vmatprep.subr.mxu0 0.0
    %3811 = vmatpush1.msra.mxu0 0.0
    %3812 = vmatprep.subr.mxu0 0.0
    %3813 = vmatpush1.msra.mxu0 0.0
    %3814 = vmatprep.subr.mxu0 0.0
    %3815 = vmatpush1.msra.mxu0 0.0
    %3816 = vmatprep.subr.mxu0 0.0
    %3817 = vmatpush1.msra.mxu0 0.0
    %3818 = vmatprep.subr.mxu0 0.0
    %3819 = vmatpush1.msra.mxu0 0.0
    %3820 = vmatprep.subr.mxu0 0.0
    %3821 = vmatpush1.msra.mxu0 0.0
    %3822 = vmatprep.subr.mxu0 0.0
    %3823 = vmatpush1.msra.mxu0 0.0
    %3824 = vmatprep.subr.mxu0 0.0
    %3825 = vmatpush1.msra.mxu0 0.0
    %3826 = vmatprep.subr.mxu0 0.0
    %3827 = vmatpush1.msra.mxu0 0.0
    %3828 = vmatprep.subr.mxu0 0.0
    %3829 = vmatpush1.msra.mxu0 0.0
    %3830 = vmatprep.subr.mxu0 0.0
    %3831 = vmatpush1.msra.mxu0 0.0
    %3832 = vmatprep.subr.mxu0 0.0
    %3833 = vmatpush1.msra.mxu0 0.0
    %3834 = vmatprep.subr.mxu0 0.0
    %3835 = vmatpush1.msra.mxu0 0.0
    %3836 = vmatprep.subr.mxu0 0.0
    %3837 = vmatpush1.msra.mxu0 0.0
    %3838 = vmatprep.subr.mxu0 0.0
    %3839 = vmatpush1.msra.mxu0 0.0
    %3840 = vmatprep.subr.mxu0 0.0
    %3841 = vmatpush1.msra.mxu0 0.0
    %3842 = vmatprep.mubr.f32.mxu0 0.0
    %3843 = vmatmul.mubr.f32.gmra.mrb[0].mxu0 %v1508
    %v3844 = vpop.f32.mrb[0].mxu0
    %v3845 = vadd.f32 0.0, %v3844
    %v3846 = vpop.f32.mrb[0].mxu0
    %3847 = vdwg.mxu0
    %s3848 = sld [smem:[#allocation12 + $0x2]]
    %v3849 = vstv %s3848
    %v3851 = vsel %vm1506, %v3845, 0
    %3853 = vmatprep.subr.mxu0 0.0
    %3854 = vmatpush1.msra.mxu0 %v109
    %3855 = vmatprep.subr.mxu0 0.0
    %3856 = vmatpush1.msra.mxu0 0.0
    %3857 = vmatprep.subr.mxu0 0.0
    %3858 = vmatpush1.msra.mxu0 0.0
    %3859 = vmatprep.subr.mxu0 0.0
    %3860 = vmatpush1.msra.mxu0 0.0
    %3861 = vmatprep.subr.mxu0 0.0
    %3862 = vmatpush1.msra.mxu0 0.0
    %3863 = vmatprep.subr.mxu0 0.0
    %3864 = vmatpush1.msra.mxu0 0.0
    %3865 = vmatprep.subr.mxu0 0.0
    %3866 = vmatpush1.msra.mxu0 0.0
    %3867 = vmatprep.subr.mxu0 0.0
    %3868 = vmatpush1.msra.mxu0 0.0
    %3869 = vmatprep.subr.mxu0 0.0
    %3870 = vmatpush1.msra.mxu0 0.0
    %3871 = vmatprep.subr.mxu0 0.0
    %3872 = vmatpush1.msra.mxu0 0.0
    %3873 = vmatprep.subr.mxu0 0.0
    %3874 = vmatpush1.msra.mxu0 0.0
    %3875 = vmatprep.subr.mxu0 0.0
    %3876 = vmatpush1.msra.mxu0 0.0
    %3877 = vmatprep.subr.mxu0 0.0
    %3878 = vmatpush1.msra.mxu0 0.0
    %3879 = vmatprep.subr.mxu0 0.0
    %3880 = vmatpush1.msra.mxu0 0.0
    %3881 = vmatprep.subr.mxu0 0.0
    %3882 = vmatpush1.msra.mxu0 0.0
    %3883 = vmatprep.subr.mxu0 0.0
    %3884 = vmatpush1.msra.mxu0 0.0
    %3885 = vmatprep.subr.mxu0 0.0
    %3886 = vmatpush1.msra.mxu0 0.0
    %3887 = vmatprep.subr.mxu0 0.0
    %3888 = vmatpush1.msra.mxu0 0.0
    %3889 = vmatprep.subr.mxu0 0.0
    %3890 = vmatpush1.msra.mxu0 0.0
    %3891 = vmatprep.subr.mxu0 0.0
    %3892 = vmatpush1.msra.mxu0 0.0
    %3893 = vmatprep.subr.mxu0 0.0
    %3894 = vmatpush1.msra.mxu0 0.0
    %3895 = vmatprep.subr.mxu0 0.0
    %3896 = vmatpush1.msra.mxu0 0.0
    %3897 = vmatprep.subr.mxu0 0.0
    %3898 = vmatpush1.msra.mxu0 0.0
    %3899 = vmatprep.subr.mxu0 0.0
    %3900 = vmatpush1.msra.mxu0 0.0
    %3901 = vmatprep.subr.mxu0 0.0
    %3902 = vmatpush1.msra.mxu0 0.0
    %3903 = vmatprep.subr.mxu0 0.0
    %3904 = vmatpush1.msra.mxu0 0.0
    %3905 = vmatprep.subr.mxu0 0.0
    %3906 = vmatpush1.msra.mxu0 0.0
    %3907 = vmatprep.subr.mxu0 0.0
    %3908 = vmatpush1.msra.mxu0 0.0
    %3909 = vmatprep.subr.mxu0 0.0
    %3910 = vmatpush1.msra.mxu0 0.0
    %3911 = vmatprep.subr.mxu0 0.0
    %3912 = vmatpush1.msra.mxu0 0.0
    %3913 = vmatprep.subr.mxu0 0.0
    %3914 = vmatpush1.msra.mxu0 0.0
    %3915 = vmatprep.subr.mxu0 0.0
    %3916 = vmatpush1.msra.mxu0 0.0
    %3917 = vmatprep.mubr.f32.mxu0 0.0
    %3918 = vmatmul.mubr.f32.gmra.mrb[0].mxu0 %v3851
    %v3919 = vpop.f32.mrb[0].mxu0
    %v3920 = vadd.f32 %v3849, %v3919
    %v3921 = vpop.f32.mrb[0].mxu0
    %3922 = vdwg.mxu0
    %v3923 = vmax.f32 %v3920, 0.0
    %3924 = vmatprep.subr.mxu0 0.0
    %3925 = vmatpush1.msra.mxu0 %v3485
    %3926 = vmatprep.subr.mxu0 0.0
    %3927 = vmatpush1.msra.mxu0 0.0
    %3928 = vmatprep.subr.mxu0 0.0
    %3929 = vmatpush1.msra.mxu0 0.0
    %3930 = vmatprep.subr.mxu0 0.0
    %3931 = vmatpush1.msra.mxu0 0.0
    %3932 = vmatprep.subr.mxu0 0.0
    %3933 = vmatpush1.msra.mxu0 0.0
    %3934 = vmatprep.subr.mxu0 0.0
    %3935 = vmatpush1.msra.mxu0 0.0
    %3936 = vmatprep.subr.mxu0 0.0
    %3937 = vmatpush1.msra.mxu0 0.0
    %3938 = vmatprep.subr.mxu0 0.0
    %3939 = vmatpush1.msra.mxu0 0.0
    %3940 = vmatprep.subr.mxu0 0.0
    %3941 = vmatpush1.msra.mxu0 0.0
    %3942 = vmatprep.subr.mxu0 0.0
    %3943 = vmatpush1.msra.mxu0 0.0
    %3944 = vmatprep.subr.mxu0 0.0
    %3945 = vmatpush1.msra.mxu0 0.0
    %3946 = vmatprep.subr.mxu0 0.0
    %3947 = vmatpush1.msra.mxu0 0.0
    %3948 = vmatprep.subr.mxu0 0.0
    %3949 = vmatpush1.msra.mxu0 0.0
    %3950 = vmatprep.subr.mxu0 0.0
    %3951 = vmatpush1.msra.mxu0 0.0
    %3952 = vmatprep.subr.mxu0 0.0
    %3953 = vmatpush1.msra.mxu0 0.0
    %3954 = vmatprep.subr.mxu0 0.0
    %3955 = vmatpush1.msra.mxu0 0.0
    %3956 = vmatprep.subr.mxu0 0.0
    %3957 = vmatpush1.msra.mxu0 0.0
    %3958 = vmatprep.subr.mxu0 0.0
    %3959 = vmatpush1.msra.mxu0 0.0
    %3960 = vmatprep.subr.mxu0 0.0
    %3961 = vmatpush1.msra.mxu0 0.0
    %3962 = vmatprep.subr.mxu0 0.0
    %3963 = vmatpush1.msra.mxu0 0.0
    %3964 = vmatprep.subr.mxu0 0.0
    %3965 = vmatpush1.msra.mxu0 0.0
    %3966 = vmatprep.subr.mxu0 0.0
    %3967 = vmatpush1.msra.mxu0 0.0
    %3968 = vmatprep.subr.mxu0 0.0
    %3969 = vmatpush1.msra.mxu0 0.0
    %3970 = vmatprep.subr.mxu0 0.0
    %3971 = vmatpush1.msra.mxu0 0.0
    %3972 = vmatprep.subr.mxu0 0.0
    %3973 = vmatpush1.msra.mxu0 0.0
    %3974 = vmatprep.subr.mxu0 0.0
    %3975 = vmatpush1.msra.mxu0 0.0
    %3976 = vmatprep.subr.mxu0 0.0
    %3977 = vmatpush1.msra.mxu0 0.0
    %3978 = vmatprep.subr.mxu0 0.0
    %3979 = vmatpush1.msra.mxu0 0.0
    %3980 = vmatprep.subr.mxu0 0.0
    %3981 = vmatpush1.msra.mxu0 0.0
    %3982 = vmatprep.subr.mxu0 0.0
    %3983 = vmatpush1.msra.mxu0 0.0
    %3984 = vmatprep.subr.mxu0 0.0
    %3985 = vmatpush1.msra.mxu0 0.0
    %3986 = vmatprep.subr.mxu0 0.0
    %3987 = vmatpush1.msra.mxu0 0.0
    %3988 = vmatprep.mubr.f32.mxu0 0.0
    %3989 = vmatmul.mubr.f32.gmra.mrb[0].mxu0 %v1508
    %v3990 = vpop.f32.mrb[0].mxu0
    %v3991 = vadd.f32 0.0, %v3990
    %v3992 = vpop.f32.mrb[0].mxu0
    %3993 = vdwg.mxu0
    %s3994 = sld [smem:[#allocation12 + $0x3]]
    %v3995 = vstv %s3994
    %v3997 = vsel %vm1506, %v3991, 0
    %3999 = vmatprep.subr.mxu0 0.0
    %4000 = vmatpush1.msra.mxu0 %v109
    %4001 = vmatprep.subr.mxu0 0.0
    %4002 = vmatpush1.msra.mxu0 0.0
    %4003 = vmatprep.subr.mxu0 0.0
    %4004 = vmatpush1.msra.mxu0 0.0
    %4005 = vmatprep.subr.mxu0 0.0
    %4006 = vmatpush1.msra.mxu0 0.0
    %4007 = vmatprep.subr.mxu0 0.0
    %4008 = vmatpush1.msra.mxu0 0.0
    %4009 = vmatprep.subr.mxu0 0.0
    %4010 = vmatpush1.msra.mxu0 0.0
    %4011 = vmatprep.subr.mxu0 0.0
    %4012 = vmatpush1.msra.mxu0 0.0
    %4013 = vmatprep.subr.mxu0 0.0
    %4014 = vmatpush1.msra.mxu0 0.0
    %4015 = vmatprep.subr.mxu0 0.0
    %4016 = vmatpush1.msra.mxu0 0.0
    %4017 = vmatprep.subr.mxu0 0.0
    %4018 = vmatpush1.msra.mxu0 0.0
    %4019 = vmatprep.subr.mxu0 0.0
    %4020 = vmatpush1.msra.mxu0 0.0
    %4021 = vmatprep.subr.mxu0 0.0
    %4022 = vmatpush1.msra.mxu0 0.0
    %4023 = vmatprep.subr.mxu0 0.0
    %4024 = vmatpush1.msra.mxu0 0.0
    %4025 = vmatprep.subr.mxu0 0.0
    %4026 = vmatpush1.msra.mxu0 0.0
    %4027 = vmatprep.subr.mxu0 0.0
    %4028 = vmatpush1.msra.mxu0 0.0
    %4029 = vmatprep.subr.mxu0 0.0
    %4030 = vmatpush1.msra.mxu0 0.0
    %4031 = vmatprep.subr.mxu0 0.0
    %4032 = vmatpush1.msra.mxu0 0.0
    %4033 = vmatprep.subr.mxu0 0.0
    %4034 = vmatpush1.msra.mxu0 0.0
    %4035 = vmatprep.subr.mxu0 0.0
    %4036 = vmatpush1.msra.mxu0 0.0
    %4037 = vmatprep.subr.mxu0 0.0
    %4038 = vmatpush1.msra.mxu0 0.0
    %4039 = vmatprep.subr.mxu0 0.0
    %4040 = vmatpush1.msra.mxu0 0.0
    %4041 = vmatprep.subr.mxu0 0.0
    %4042 = vmatpush1.msra.mxu0 0.0
    %4043 = vmatprep.subr.mxu0 0.0
    %4044 = vmatpush1.msra.mxu0 0.0
    %4045 = vmatprep.subr.mxu0 0.0
    %4046 = vmatpush1.msra.mxu0 0.0
    %4047 = vmatprep.subr.mxu0 0.0
    %4048 = vmatpush1.msra.mxu0 0.0
    %4049 = vmatprep.subr.mxu0 0.0
    %4050 = vmatpush1.msra.mxu0 0.0
    %4051 = vmatprep.subr.mxu0 0.0
    %4052 = vmatpush1.msra.mxu0 0.0
    %4053 = vmatprep.subr.mxu0 0.0
    %4054 = vmatpush1.msra.mxu0 0.0
    %4055 = vmatprep.subr.mxu0 0.0
    %4056 = vmatpush1.msra.mxu0 0.0
    %4057 = vmatprep.subr.mxu0 0.0
    %4058 = vmatpush1.msra.mxu0 0.0
    %4059 = vmatprep.subr.mxu0 0.0
    %4060 = vmatpush1.msra.mxu0 0.0
    %4061 = vmatprep.subr.mxu0 0.0
    %4062 = vmatpush1.msra.mxu0 0.0
    %4063 = vmatprep.mubr.f32.mxu0 0.0
    %4064 = vmatmul.mubr.f32.gmra.mrb[0].mxu0 %v3997
    %v4065 = vpop.f32.mrb[0].mxu0
    %v4066 = vadd.f32 %v3995, %v4065
    %v4067 = vpop.f32.mrb[0].mxu0
    %4068 = vdwg.mxu0
    %v4069 = vmax.f32 %v4066, 0.0
    %s4070 = scalar_lea.vmem [#allocation14], 16
    %4071 = vst.msk [vmem:[%s4070] sm:$0xf] %vm2094, %v3631
    %4072 = vst.msk [vmem:[%s4070 + $0x4] sm:$0xf] %vm2094, %v3777
    %4073 = vst.msk [vmem:[%s4070 + $0x8] sm:$0xf] %vm2094, %v3923
    %4074 = vst.msk [vmem:[%s4070 + $0xc] sm:$0xf] %vm2094, %v4069
    // Predicated region
    $region62: #{tpu_custom_call.1} parent=1 // pred_check
      _
    $region63: #{tpu_custom_call.1} parent=1 // pred_check_branch
      %4076 = sbr.rel (0) target = $region65
    $region64: #{tpu_custom_call.1} parent=1 // pred_region
      %s4078 = ssub.s32 512, 512
      %4079 = vsyncadd [#allocation4], %s4078
      %s4080 = sshll.u32 [#allocation14], 4
      %s4081 = int_to_ptr.vmem [resolvable:$true] %s4080
      %4086 = dma.vmem_to_hbm [thread:$0]  %s4081, 512, %s9, [#allocation4], 64, 64, 4
    $region65: #{tpu_custom_call.1} parent=1 // pred_fallthru
      _
    // Predicated region
    $region66: #{tpu_custom_call.1} parent=1 // pred_check
      _
    $region67: #{tpu_custom_call.1} parent=1 // pred_check_branch
      %4088 = sbr.rel (0) target = $region69
    $region68: #{tpu_custom_call.1} parent=1 // pred_region
      %4089 = dma.done [#allocation4], 512
    $region69: #{tpu_custom_call.1} parent=1 // pred_fallthru
      _
    %4090 = vsyncpa [#allocation3], 1
    %4091 = vsyncpa [#allocation7], 1
    %4092 = vsyncpa [#allocation4], 1
    %4093 = vsyncpa [#allocation5], 1
    %4094 = vsyncpa [#allocation10], 1
    %4095 = vsyncpa [#allocation13], 1

</llo_original>
